<compile_context>
chip_gen: v7x
topology: tpu7x:2x2x1
jax: 0.10.0
libtpu: 0.0.40
codegen_flags: <defaults>
</compile_context>

<pallas_src>
import jax
import jax.numpy as jnp
from jax.experimental import pallas as pl
from jax.experimental.pallas import tpu as pltpu


def _round_up(v, m):
    return (v + m - 1) // m * m


def _conv3x3_im2col(x, w_flat):
    """3x3 conv, stride 1, pad 1, no bias, as a single im2col matmul.

    x:      (Nb, H, W, Cp)  in input dtype
    w_flat: (9*Cp, Cp)      flattened (ky, kx, cin) x cout, input dtype
    returns (Nb, H, W, Cp)  float32 accumulator
    """
    Nb, H, W, Cp = x.shape
    xp = jnp.pad(x, ((0, 0), (1, 1), (1, 1), (0, 0)))
    taps = [xp[:, ky:ky + H, kx:kx + W, :] for ky in range(3) for kx in range(3)]
    patches = jnp.concatenate(taps, axis=-1).reshape(Nb * H * W, 9 * Cp)
    out = jnp.dot(patches, w_flat, preferred_element_type=jnp.float32)
    return out.reshape(Nb, H, W, Cp)


def resblock_kernel_noup(x_ref, w1_ref, w2_ref, o_ref):
    x = x_ref[...]                                      # (Nb, H, W, Cp)
    h = _conv3x3_im2col(jnp.maximum(x, 0), w1_ref[...])  # ReLU -> conv3x3 (f32 acc)
    h = jnp.maximum(h, 0.0).astype(x.dtype)             # ReLU, back to MXU dtype
    h = _conv3x3_im2col(h, w2_ref[...])                 # conv3x3 (f32 acc)
    o_ref[...] = (h + x.astype(jnp.float32)).astype(o_ref.dtype)   # + shortcut (= x)


def resblock_kernel_up(x_ref, w1_ref, w2_ref, wsc_ref, o_ref):
    # x_ref holds the 2x nearest-upsampled input (relu and nearest-upsample
    # commute, so relu(upsample(x)) == upsample(relu(x))).
    x = x_ref[...]                                      # (Nb, 2H, 2W, Cp)
    Nb, H2, W2, Cp = x.shape
    h = _conv3x3_im2col(jnp.maximum(x, 0), w1_ref[...])
    h = jnp.maximum(h, 0.0).astype(x.dtype)
    h = _conv3x3_im2col(h, w2_ref[...])
    # 1x1 shortcut conv on the upsampled (pre-ReLU) input.
    sc = jnp.dot(x.reshape(Nb * H2 * W2, Cp), wsc_ref[...],
                 preferred_element_type=jnp.float32).reshape(Nb, H2, W2, Cp)
    o_ref[...] = (h + sc).astype(o_ref.dtype)


def resblock_g_forward(x_nchw, w1_oihw, w2_oihw, wsc_oihw, up=False, nb=1):
    """Pallas implementation of ResBlock_G.forward.  x_nchw: (N, C, H, W)."""
    N, C, H, W = x_nchw.shape
    Cp = _round_up(C, 128)                       # lane-dense channel dim

    # NCHW -> NHWC; TODO(synk): accept/emit NHWC directly if the surrounding
    # model allows, to avoid HBM round-trips for the layout change.
    x = jnp.transpose(x_nchw, (0, 2, 3, 1))
    if up:
        # F.interpolate(scale_factor=2), default mode='nearest'.
        x = jnp.repeat(jnp.repeat(x, 2, axis=1), 2, axis=2)
        H, W = 2 * H, 2 * W
    if Cp != C:
        x = jnp.pad(x, ((0, 0), (0, 0), (0, 0), (0, Cp - C)))

    def prep3x3(w):
        # OIHW -> (kh, kw, Cin, Cout), zero-pad channels, flatten to (9*Cp, Cp)
        # in the same (ky, kx, cin) order used to build the im2col patches.
        w = jnp.transpose(w, (2, 3, 1, 0))
        if Cp != C:
            w = jnp.pad(w, ((0, 0), (0, 0), (0, Cp - C), (0, Cp - C)))
        return w.reshape(9 * Cp, Cp)

    w1 = prep3x3(w1_oihw)
    w2 = prep3x3(w2_oihw)

    assert N % nb == 0, "batch must be divisible by nb"
    grid = (N // nb,)

    in_specs = [
        pl.BlockSpec((nb, H, W, Cp), lambda n: (n, 0, 0, 0)),
        pl.BlockSpec((9 * Cp, Cp), lambda n: (0, 0)),
        pl.BlockSpec((9 * Cp, Cp), lambda n: (0, 0)),
    ]
    args = [x, w1, w2]
    kernel = resblock_kernel_noup

    if up:
        wsc = wsc_oihw[:, :, 0, 0].T             # (Cout, Cin) -> (Cin, Cout)
        if Cp != C:
            wsc = jnp.pad(wsc, ((0, Cp - C), (0, Cp - C)))
        in_specs.append(pl.BlockSpec((Cp, Cp), lambda n: (0, 0)))
        args.append(wsc)
        kernel = resblock_kernel_up

    out = pl.pallas_call(
        kernel,
        out_shape=jax.ShapeDtypeStruct((N, H, W, Cp), x.dtype),
        grid=grid,
        in_specs=in_specs,
        out_specs=pl.BlockSpec((nb, H, W, Cp), lambda n: (n, 0, 0, 0)),
        compiler_params=pltpu.CompilerParams(
            dimension_semantics=("parallel",),
            vmem_limit_bytes=32 * 1024 * 1024),
    )(*args)

    out = out[..., :C]                           # drop padded channels
    return jnp.transpose(out, (0, 3, 1, 2))      # back to NCHW


def resblock_g_ref(x, w1, w2, wsc, up=False):
    """Pure-JAX reference (NCHW, matches the PyTorch forward)."""
    dn = ("NCHW", "OIHW", "NCHW")
    out = jax.nn.relu(x)
    if up:
        out = jnp.repeat(jnp.repeat(out, 2, axis=2), 2, axis=3)
        sc = jnp.repeat(jnp.repeat(x, 2, axis=2), 2, axis=3)
        sc = jax.lax.conv_general_dilated(sc, wsc, (1, 1), "VALID",
                                          dimension_numbers=dn)
    else:
        sc = x
    out = jax.lax.conv_general_dilated(out, w1, (1, 1), ((1, 1), (1, 1)),
                                       dimension_numbers=dn)
    out = jax.nn.relu(out)
    out = jax.lax.conv_general_dilated(out, w2, (1, 1), ((1, 1), (1, 1)),
                                       dimension_numbers=dn)
    return out + sc


if __name__ == "__main__":
    N, nf, H, W = 2, 4, 16, 16

    key = jax.random.PRNGKey(0)
    kx, k1, k2, k3 = jax.random.split(key, 4)
    x = jax.random.normal(kx, (N, nf, H, W), dtype=jnp.float32)
    # Deterministic synthetic weights (PyTorch OIHW shapes from __init__).
    w1 = 0.1 * jax.random.normal(k1, (nf, nf, 3, 3), dtype=jnp.float32)
    w2 = 0.1 * jax.random.normal(k2, (nf, nf, 3, 3), dtype=jnp.float32)
    wsc = 0.1 * jax.random.normal(k3, (nf, nf, 1, 1), dtype=jnp.float32)

    # up=False path
    out = resblock_g_forward(x, w1, w2, wsc, up=False)
    out = jax.block_until_ready(out)
    ref = resblock_g_ref(x, w1, w2, wsc, up=False)
    assert out.shape == (N, nf, H, W)
    assert jnp.allclose(out, ref, atol=1e-4, rtol=1e-4)

    # up=True path (2x nearest upsample + 1x1 shortcut conv)
    out_up = resblock_g_forward(x, w1, w2, wsc, up=True)
    out_up = jax.block_until_ready(out_up)
    ref_up = resblock_g_ref(x, w1, w2, wsc, up=True)
    assert out_up.shape == (N, nf, 2 * H, 2 * W)
    assert jnp.allclose(out_up, ref_up, atol=1e-4, rtol=1e-4)

    print("KERNEL_OK")
</pallas_src>

<mosaic_0001>
module attributes {stable_mosaic.version = 11 : i64} {
  func.func @resblock_kernel_noup(%arg0: i32, %arg1: memref<1x16x16x128xf32, #tpu.memory_space<vmem>>, %arg2: memref<1152x128xf32, #tpu.memory_space<vmem>>, %arg3: memref<1152x128xf32, #tpu.memory_space<vmem>>, %arg4: memref<1x16x16x128xf32, #tpu.memory_space<vmem>>) attributes {dimension_semantics = [#tpu.dimension_semantics<parallel>], iteration_bounds = array<i64: 2>, scalar_prefetch = 0 : i64, scratch_operands = 0 : i64, tpu.core_type = #tpu.core_type<tc>, window_params = [{transform_indices = @transform_0, window_bounds = array<i64: 1, 16, 16, 128>}, {pipeline_mode = #tpu.pipeline_mode<synchronous>, transform_indices = @transform_1, window_bounds = array<i64: 1152, 128>}, {pipeline_mode = #tpu.pipeline_mode<synchronous>, transform_indices = @transform_2, window_bounds = array<i64: 1152, 128>}, {transform_indices = @transform_3, window_bounds = array<i64: 1, 16, 16, 128>}]} {
    %c0 = arith.constant 0 : index
    %c0_0 = arith.constant 0 : index
    %c0_1 = arith.constant 0 : index
    %c0_2 = arith.constant 0 : index
    %0 = vector.load %arg1[%c0, %c0_0, %c0_1, %c0_2] : memref<1x16x16x128xf32, #tpu.memory_space<vmem>>, vector<1x16x16x128xf32>
    %cst = arith.constant 0.000000e+00 : f32
    %1 = vector.broadcast %cst : f32 to vector<1x16x16x128xf32>
    %2 = arith.maximumf %0, %1 : vector<1x16x16x128xf32>
    %c0_3 = arith.constant 0 : index
    %c0_4 = arith.constant 0 : index
    %3 = vector.load %arg2[%c0_3, %c0_4] : memref<1152x128xf32, #tpu.memory_space<vmem>>, vector<1152x128xf32>
    %c0_i32 = arith.constant 0 : i32
    %4 = arith.sitofp %c0_i32 : i32 to f32
    %5 = vector.broadcast %4 : f32 to vector<1x1x16x128xf32>
    %6 = tpu.concatenate %5, %2 in 1 : vector<1x1x16x128xf32>, vector<1x16x16x128xf32> -> vector<1x17x16x128xf32>
    %7 = vector.broadcast %4 : f32 to vector<1x1x16x128xf32>
    %8 = tpu.concatenate %6, %7 in 1 : vector<1x17x16x128xf32>, vector<1x1x16x128xf32> -> vector<1x18x16x128xf32>
    %9 = vector.broadcast %4 : f32 to vector<1x18x1x128xf32>
    %10 = tpu.concatenate %9, %8 in 2 : vector<1x18x1x128xf32>, vector<1x18x16x128xf32> -> vector<1x18x17x128xf32>
    %11 = vector.broadcast %4 : f32 to vector<1x18x1x128xf32>
    %12 = tpu.concatenate %10, %11 in 2 : vector<1x18x17x128xf32>, vector<1x18x1x128xf32> -> vector<1x18x18x128xf32>
    %13 = vector.extract_strided_slice %12 {offsets = [0, 0, 0, 0], sizes = [1, 16, 16, 128], strides = [1, 1, 1, 1]} : vector<1x18x18x128xf32> to vector<1x16x16x128xf32>
    %14 = vector.extract_strided_slice %12 {offsets = [0, 0, 1, 0], sizes = [1, 16, 16, 128], strides = [1, 1, 1, 1]} : vector<1x18x18x128xf32> to vector<1x16x16x128xf32>
    %15 = vector.extract_strided_slice %12 {offsets = [0, 0, 2, 0], sizes = [1, 16, 16, 128], strides = [1, 1, 1, 1]} : vector<1x18x18x128xf32> to vector<1x16x16x128xf32>
    %16 = vector.extract_strided_slice %12 {offsets = [0, 1, 0, 0], sizes = [1, 16, 16, 128], strides = [1, 1, 1, 1]} : vector<1x18x18x128xf32> to vector<1x16x16x128xf32>
    %17 = vector.extract_strided_slice %12 {offsets = [0, 1, 1, 0], sizes = [1, 16, 16, 128], strides = [1, 1, 1, 1]} : vector<1x18x18x128xf32> to vector<1x16x16x128xf32>
    %18 = vector.extract_strided_slice %12 {offsets = [0, 1, 2, 0], sizes = [1, 16, 16, 128], strides = [1, 1, 1, 1]} : vector<1x18x18x128xf32> to vector<1x16x16x128xf32>
    %19 = vector.extract_strided_slice %12 {offsets = [0, 2, 0, 0], sizes = [1, 16, 16, 128], strides = [1, 1, 1, 1]} : vector<1x18x18x128xf32> to vector<1x16x16x128xf32>
    %20 = vector.extract_strided_slice %12 {offsets = [0, 2, 1, 0], sizes = [1, 16, 16, 128], strides = [1, 1, 1, 1]} : vector<1x18x18x128xf32> to vector<1x16x16x128xf32>
    %21 = vector.extract_strided_slice %12 {offsets = [0, 2, 2, 0], sizes = [1, 16, 16, 128], strides = [1, 1, 1, 1]} : vector<1x18x18x128xf32> to vector<1x16x16x128xf32>
    %22 = tpu.concatenate %13, %14, %15, %16, %17, %18, %19, %20, %21 in 3 : vector<1x16x16x128xf32>, vector<1x16x16x128xf32>, vector<1x16x16x128xf32>, vector<1x16x16x128xf32>, vector<1x16x16x128xf32>, vector<1x16x16x128xf32>, vector<1x16x16x128xf32>, vector<1x16x16x128xf32>, vector<1x16x16x128xf32> -> vector<1x16x16x1152xf32>
    %23 = vector.shape_cast %22 : vector<1x16x16x1152xf32> to vector<256x1152xf32>
    %cst_5 = arith.constant dense<0.000000e+00> : vector<256x128xf32>
    %24 = tpu.matmul %23, %3, %cst_5 {dimension_numbers = #tpu.dot_dimension_numbers<[1], [0], [0], [1], [0, 0, 1, 1], [], []>} : vector<256x1152xf32>, vector<1152x128xf32>, vector<256x128xf32> -> vector<256x128xf32>
    %25 = vector.shape_cast %24 : vector<256x128xf32> to vector<1x16x16x128xf32>
    %cst_6 = arith.constant 0.000000e+00 : f32
    %26 = vector.broadcast %cst_6 : f32 to vector<1x16x16x128xf32>
    %27 = arith.maximumf %25, %26 : vector<1x16x16x128xf32>
    %c0_7 = arith.constant 0 : index
    %c0_8 = arith.constant 0 : index
    %28 = vector.load %arg3[%c0_7, %c0_8] : memref<1152x128xf32, #tpu.memory_space<vmem>>, vector<1152x128xf32>
    %c0_i32_9 = arith.constant 0 : i32
    %29 = arith.sitofp %c0_i32_9 : i32 to f32
    %30 = vector.broadcast %29 : f32 to vector<1x1x16x128xf32>
    %31 = tpu.concatenate %30, %27 in 1 : vector<1x1x16x128xf32>, vector<1x16x16x128xf32> -> vector<1x17x16x128xf32>
    %32 = vector.broadcast %29 : f32 to vector<1x1x16x128xf32>
    %33 = tpu.concatenate %31, %32 in 1 : vector<1x17x16x128xf32>, vector<1x1x16x128xf32> -> vector<1x18x16x128xf32>
    %34 = vector.broadcast %29 : f32 to vector<1x18x1x128xf32>
    %35 = tpu.concatenate %34, %33 in 2 : vector<1x18x1x128xf32>, vector<1x18x16x128xf32> -> vector<1x18x17x128xf32>
    %36 = vector.broadcast %29 : f32 to vector<1x18x1x128xf32>
    %37 = tpu.concatenate %35, %36 in 2 : vector<1x18x17x128xf32>, vector<1x18x1x128xf32> -> vector<1x18x18x128xf32>
    %38 = vector.extract_strided_slice %37 {offsets = [0, 0, 0, 0], sizes = [1, 16, 16, 128], strides = [1, 1, 1, 1]} : vector<1x18x18x128xf32> to vector<1x16x16x128xf32>
    %39 = vector.extract_strided_slice %37 {offsets = [0, 0, 1, 0], sizes = [1, 16, 16, 128], strides = [1, 1, 1, 1]} : vector<1x18x18x128xf32> to vector<1x16x16x128xf32>
    %40 = vector.extract_strided_slice %37 {offsets = [0, 0, 2, 0], sizes = [1, 16, 16, 128], strides = [1, 1, 1, 1]} : vector<1x18x18x128xf32> to vector<1x16x16x128xf32>
    %41 = vector.extract_strided_slice %37 {offsets = [0, 1, 0, 0], sizes = [1, 16, 16, 128], strides = [1, 1, 1, 1]} : vector<1x18x18x128xf32> to vector<1x16x16x128xf32>
    %42 = vector.extract_strided_slice %37 {offsets = [0, 1, 1, 0], sizes = [1, 16, 16, 128], strides = [1, 1, 1, 1]} : vector<1x18x18x128xf32> to vector<1x16x16x128xf32>
    %43 = vector.extract_strided_slice %37 {offsets = [0, 1, 2, 0], sizes = [1, 16, 16, 128], strides = [1, 1, 1, 1]} : vector<1x18x18x128xf32> to vector<1x16x16x128xf32>
    %44 = vector.extract_strided_slice %37 {offsets = [0, 2, 0, 0], sizes = [1, 16, 16, 128], strides = [1, 1, 1, 1]} : vector<1x18x18x128xf32> to vector<1x16x16x128xf32>
    %45 = vector.extract_strided_slice %37 {offsets = [0, 2, 1, 0], sizes = [1, 16, 16, 128], strides = [1, 1, 1, 1]} : vector<1x18x18x128xf32> to vector<1x16x16x128xf32>
    %46 = vector.extract_strided_slice %37 {offsets = [0, 2, 2, 0], sizes = [1, 16, 16, 128], strides = [1, 1, 1, 1]} : vector<1x18x18x128xf32> to vector<1x16x16x128xf32>
    %47 = tpu.concatenate %38, %39, %40, %41, %42, %43, %44, %45, %46 in 3 : vector<1x16x16x128xf32>, vector<1x16x16x128xf32>, vector<1x16x16x128xf32>, vector<1x16x16x128xf32>, vector<1x16x16x128xf32>, vector<1x16x16x128xf32>, vector<1x16x16x128xf32>, vector<1x16x16x128xf32>, vector<1x16x16x128xf32> -> vector<1x16x16x1152xf32>
    %48 = vector.shape_cast %47 : vector<1x16x16x1152xf32> to vector<256x1152xf32>
    %cst_10 = arith.constant dense<0.000000e+00> : vector<256x128xf32>
    %49 = tpu.matmul %48, %28, %cst_10 {dimension_numbers = #tpu.dot_dimension_numbers<[1], [0], [0], [1], [0, 0, 1, 1], [], []>} : vector<256x1152xf32>, vector<1152x128xf32>, vector<256x128xf32> -> vector<256x128xf32>
    %50 = vector.shape_cast %49 : vector<256x128xf32> to vector<1x16x16x128xf32>
    %51 = arith.addf %50, %0 : vector<1x16x16x128xf32>
    %c0_11 = arith.constant 0 : index
    %c0_12 = arith.constant 0 : index
    %c0_13 = arith.constant 0 : index
    %c0_14 = arith.constant 0 : index
    %52 = vector.load %arg4[%c0_11, %c0_12, %c0_13, %c0_14] : memref<1x16x16x128xf32, #tpu.memory_space<vmem>>, vector<1x16x16x128xf32>
    tpu.vector_store %arg4[%c0_11, %c0_12, %c0_13, %c0_14], %51 {strides = array<i32>} : memref<1x16x16x128xf32, #tpu.memory_space<vmem>>, vector<1x16x16x128xf32>,
    return
  }
  func.func @transform_0(%arg0: i32) -> (i32, i32, i32, i32) {
    %c0_i32 = arith.constant 0 : i32
    %c0_i32_0 = arith.constant 0 : i32
    %c0_i32_1 = arith.constant 0 : i32
    %c0_i32_2 = arith.constant 0 : i32
    return %arg0, %c0_i32, %c0_i32_0, %c0_i32_1 : i32, i32, i32, i32
  }
  func.func @transform_1(%arg0: i32) -> (i32, i32) {
    %c0_i32 = arith.constant 0 : i32
    %c0_i32_0 = arith.constant 0 : i32
    %c0_i32_1 = arith.constant 0 : i32
    return %c0_i32, %c0_i32_0 : i32, i32
  }
  func.func @transform_2(%arg0: i32) -> (i32, i32) {
    %c0_i32 = arith.constant 0 : i32
    %c0_i32_0 = arith.constant 0 : i32
    %c0_i32_1 = arith.constant 0 : i32
    return %c0_i32, %c0_i32_0 : i32, i32
  }
  func.func @transform_3(%arg0: i32) -> (i32, i32, i32, i32) {
    %c0_i32 = arith.constant 0 : i32
    %c0_i32_0 = arith.constant 0 : i32
    %c0_i32_1 = arith.constant 0 : i32
    %c0_i32_2 = arith.constant 0 : i32
    return %arg0, %c0_i32, %c0_i32_0, %c0_i32_1 : i32, i32, i32, i32
  }
}

</mosaic_0001>

<llo_original>
// kernel: tpu_custom_call.1
$region0: #{tpu_custom_call.1}
  #allocation0 [shape = 'u32[]', space=smem, size = 0x4, offset = 0x4, fixed_abs, tag = 'smem constant byte address 0x4 - core index']
  #allocation1 [shape = 'u32[144,128]{1,0:T(1,128)}', space=vmem, size = 0x12000, scoped, tag = 'internal scratch']
  %s0 = inlined_call_operand.hbm [shape: f32[2,16,16,128], index: 0, kind: input, shape index: {}]
  %s1 = inlined_call_operand.hbm [shape: f32[1152,128], index: 1, kind: input, shape index: {}]
  %s2 = inlined_call_operand.hbm [shape: f32[1152,128], index: 2, kind: input, shape index: {}]
  %s3 = inlined_call_operand.hbm [shape: f32[2,16,16,128], index: 3, kind: output, shape index: {}]
  %s4 = sld [smem:[#allocation0]]
  $region57: #{tpu_custom_call.1} parent=0
    _
  %s6 = ssub.s32 1, %s4
  %s7 = scalar_select 0, %s6, %s4
  $region1: #{tpu_custom_call.1} parent=0
    #allocation2 [shape = 'u8[262144]{0}', space=vmem, size = 0x40000, scoped, tag = 'input window, operand 0']
    #allocation3 [shape = 's32[2]{0}', space=sflag, size = 0x8, scoped, tag = 'scoped memory for tpu_custom_call.1']
    #allocation4 [shape = 's32[2]{0}', space=sflag, size = 0x8, scoped, tag = 'scoped memory for tpu_custom_call.1']
    #allocation5 [shape = 'u8[589824]{0}', space=vmem, size = 0x90000, scoped, tag = 'input window, operand 1, single buffered']
    #allocation6 [shape = 's32[1]{0}', space=sflag, size = 0x4, scoped, tag = 'scoped memory for tpu_custom_call.1']
    #allocation7 [shape = 'u8[589824]{0}', space=vmem, size = 0x90000, scoped, tag = 'input window, operand 2, single buffered']
    #allocation8 [shape = 'u8[262144]{0}', space=vmem, size = 0x40000, scoped, tag = 'output window, operand 0']
    %8 = vsyncpa [#allocation3], 0
    %s9 = scalar_lea.sflag [#allocation3], 1
    %10 = vsyncpa %s9, 0
    %11 = vsyncpa [#allocation6], 0
    %12 = vsyncpa [#allocation4], 0
    %s13 = scalar_lea.sflag [#allocation4], 1
    %14 = vsyncpa %s13, 0
    loop: start=0, step=1, limit=4
    $region2: #{tpu_custom_call.1} parent=1 // loop_pre_header
      _
    $region3: #{tpu_custom_call.1} parent=1 // loop_header
      %s16 = sphi 0, %s20
      %p17 = scmp.ge.s32.totalorder %s16, 4
      %s26 = sphi 0, %s28
      %s29 = sphi 0, %s26
      %s30 = sphi 0, %s29
      %s46 = sphi 0, %s30
      %s50 = sphi 0, %s50
      %s52 = sphi 0, %s50
      %s53 = sphi 0, %s52
      %s67 = sphi 0, %s53
      %s71 = sphi 0, %s71
      %s73 = sphi 0, %s71
      %s74 = sphi 0, %s73
      %s88 = sphi 0, %s74
      %s94 = sphi 0, %s96
      %s97 = sphi 0, %s94
      %s98 = sphi 0, %s97
      %s114 = sphi 0, %s98
    $region4: #{tpu_custom_call.1} parent=1 // loop_header_branch
      %19 = sbr.rel (%p17) target = $region8
    $region5: #{tpu_custom_call.1} parent=1 // loop_body
      %s21 = ssub.s32 %s16, 1
      %s22 = ssub.s32 %s16, 2
      %s23 = sadd.s32 %s16, 1
      %s24 = ssub.s32 %s16, %s23
      %p25 = scmp.eq.s32.totalorder %s24, 0
      %s27 = sadd.s32 %s26, 1
      %s28 = scalar_select %p25, %s26, %s27
      %p31 = pneg %p25
      %p32 = scmp.eq.s32.totalorder %s16, 1
      %p33 = por %p31, %p32
      %p34 = scmp.ne.s32.totalorder %s26, %s29
      %p35 = scmp.eq.s32.totalorder %s16, 0
      %p36 = por %p34, %p35
      %p37 = scmp.ne.s32.totalorder %s26, %s29
      %p38 = scmp.eq.s32.totalorder %s21, 1
      %p39 = por %p37, %p38
      %p40 = scmp.ne.s32.totalorder %s29, %s30
      %p41 = scmp.eq.s32.totalorder %s21, 0
      %p42 = por %p40, %p41
      %p43 = scmp.ne.s32.totalorder %s29, %s30
      %p44 = scmp.eq.s32.totalorder %s22, 1
      %p45 = por %p43, %p44
      %p47 = scmp.ne.s32.totalorder %s30, %s46
      %p48 = scmp.eq.s32.totalorder %s22, 0
      %p49 = por %p47, %p48
      %s51 = sadd.s32 %s50, 1
      %p54 = scmp.eq.s32.totalorder %s16, 1
      %p55 = scmp.ne.s32.totalorder %s50, %s52
      %p56 = scmp.eq.s32.totalorder %s16, 0
      %p57 = por %p55, %p56
      %p58 = scmp.ne.s32.totalorder %s50, %s52
      %p59 = scmp.eq.s32.totalorder %s21, 1
      %p60 = por %p58, %p59
      %p61 = scmp.ne.s32.totalorder %s52, %s53
      %p62 = scmp.eq.s32.totalorder %s21, 0
      %p63 = por %p61, %p62
      %p64 = scmp.ne.s32.totalorder %s52, %s53
      %p65 = scmp.eq.s32.totalorder %s22, 1
      %p66 = por %p64, %p65
      %p68 = scmp.ne.s32.totalorder %s53, %s67
      %p69 = scmp.eq.s32.totalorder %s22, 0
      %p70 = por %p68, %p69
      %s72 = sadd.s32 %s71, 1
      %p75 = scmp.eq.s32.totalorder %s16, 1
      %p76 = scmp.ne.s32.totalorder %s71, %s73
      %p77 = scmp.eq.s32.totalorder %s16, 0
      %p78 = por %p76, %p77
      %p79 = scmp.ne.s32.totalorder %s71, %s73
      %p80 = scmp.eq.s32.totalorder %s21, 1
      %p81 = por %p79, %p80
      %p82 = scmp.ne.s32.totalorder %s73, %s74
      %p83 = scmp.eq.s32.totalorder %s21, 0
      %p84 = por %p82, %p83
      %p85 = scmp.ne.s32.totalorder %s73, %s74
      %p86 = scmp.eq.s32.totalorder %s22, 1
      %p87 = por %p85, %p86
      %p89 = scmp.ne.s32.totalorder %s74, %s88
      %p90 = scmp.eq.s32.totalorder %s22, 0
      %p91 = por %p89, %p90
      %s92 = ssub.s32 %s16, %s23
      %p93 = scmp.eq.s32.totalorder %s92, 0
      %s95 = sadd.s32 %s94, 1
      %s96 = scalar_select %p93, %s94, %s95
      %p99 = pneg %p93
      %p100 = scmp.eq.s32.totalorder %s16, 1
      %p101 = por %p99, %p100
      %p102 = scmp.ne.s32.totalorder %s94, %s97
      %p103 = scmp.eq.s32.totalorder %s16, 0
      %p104 = por %p102, %p103
      %p105 = scmp.ne.s32.totalorder %s94, %s97
      %p106 = scmp.eq.s32.totalorder %s21, 1
      %p107 = por %p105, %p106
      %p108 = scmp.ne.s32.totalorder %s97, %s98
      %p109 = scmp.eq.s32.totalorder %s21, 0
      %p110 = por %p108, %p109
      %p111 = scmp.ne.s32.totalorder %s97, %s98
      %p112 = scmp.eq.s32.totalorder %s22, 1
      %p113 = por %p111, %p112
      %p115 = scmp.ne.s32.totalorder %s98, %s114
      %p116 = scmp.eq.s32.totalorder %s22, 0
      %p117 = por %p115, %p116
      %p118 = scmp.le.s32.totalorder 1, %s16
      %p119 = scmp.lt.s32.totalorder %s16, 3
      %p120 = pnand %p118, %p119
      %p121 = pneg %p120
      // Predicated region
      $region9: #{tpu_custom_call.1} parent=5 // pred_check
        _
      $region10: #{tpu_custom_call.1} parent=5 // pred_check_branch
        %123 = sbr.rel (%p120) target = $region12
      $region11: #{tpu_custom_call.1} parent=5 // pred_region
        %s124 = ssub.s32 %s16, 1
        // Predicated region
        $region13: #{tpu_custom_call.1} parent=11 // pred_check
          %p125 = pneg %p63
        $region14: #{tpu_custom_call.1} parent=11 // pred_check_branch
          %127 = sbr.rel (%p125) target = $region16
        $region15: #{tpu_custom_call.1} parent=11 // pred_region
          %s129 = ssub.s32 18432, 18432
          %130 = vsyncadd [#allocation6], %s129
          %s131 = sshll.u32 [#allocation5], 4
          %s132 = int_to_ptr.vmem [resolvable:$true] %s131
          %137 = dma.hbm_to_vmem [thread:$0]  %s1, 18432, %s132, [#allocation6], 128, 128, 8
        $region16: #{tpu_custom_call.1} parent=11 // pred_fallthru
          _
        // Predicated region
        $region17: #{tpu_custom_call.1} parent=11 // pred_check
          %p138 = pneg %p84
        $region18: #{tpu_custom_call.1} parent=11 // pred_check_branch
          %140 = sbr.rel (%p138) target = $region20
        $region19: #{tpu_custom_call.1} parent=11 // pred_region
          %s142 = ssub.s32 18432, 18432
          %143 = vsyncadd [#allocation6], %s142
          %s144 = sshll.u32 [#allocation7], 4
          %s145 = int_to_ptr.vmem [resolvable:$true] %s144
          %150 = dma.hbm_to_vmem [thread:$0]  %s2, 18432, %s145, [#allocation6], 128, 128, 8
        $region20: #{tpu_custom_call.1} parent=11 // pred_fallthru
          _
      $region12: #{tpu_custom_call.1} parent=5 // pred_fallthru
        _
      %p151 = scmp.lt.s32.totalorder %s16, 2
      // Predicated region
      $region21: #{tpu_custom_call.1} parent=5 // pred_check
        %p152 = pneg %p151
      $region22: #{tpu_custom_call.1} parent=5 // pred_check_branch
        %154 = sbr.rel (%p152) target = $region24
      $region23: #{tpu_custom_call.1} parent=5 // pred_region
        // Predicated region
        $region25: #{tpu_custom_call.1} parent=23 // pred_check
          %p155 = pneg %p36
        $region26: #{tpu_custom_call.1} parent=23 // pred_check_branch
          %157 = sbr.rel (%p155) target = $region28
        $region27: #{tpu_custom_call.1} parent=23 // pred_region
          %s158 = sand.u32 %s26, 1
          %s159 = scalar_lea.sflag [#allocation3], %s158
          %s160 = sand.u32 %s26, 1
          %s161 = smul.addr %s160, 256
          %s162 = scalar_lea.vmem [#allocation2], %s161
          %s164 = ssub.s32 4096, 4096
          %165 = vsyncadd %s159, %s164
          %s166 = smul.addr %s16, 32
          %s167 = smul.addr %s166, 128
          %s168 = scalar_lea.hbm %s0, %s167
          %s169 = sshll.u32 %s162, 4
          %s170 = int_to_ptr.vmem [resolvable:$true] %s169
          %175 = dma.hbm_to_vmem [thread:$0]  %s168, 4096, %s170, %s159, 128, 128, 8
        $region28: #{tpu_custom_call.1} parent=23 // pred_fallthru
          _
      $region24: #{tpu_custom_call.1} parent=5 // pred_fallthru
        _
      %p176 = scmp.le.s32.totalorder 1, %s16
      %p177 = scmp.lt.s32.totalorder %s16, 3
      %p178 = pnand %p176, %p177
      %p179 = pneg %p178
      // Predicated region
      $region29: #{tpu_custom_call.1} parent=5 // pred_check
        _
      $region30: #{tpu_custom_call.1} parent=5 // pred_check_branch
        %181 = sbr.rel (%p178) target = $region32
      $region31: #{tpu_custom_call.1} parent=5 // pred_region
        %s182 = ssub.s32 %s16, 1
        %s183 = sand.u32 %s29, 1
        %s184 = scalar_lea.sflag [#allocation3], %s183
        %s185 = sand.u32 %s29, 1
        %s186 = smul.addr %s185, 256
        %s187 = scalar_lea.vmem [#allocation2], %s186
        // Predicated region
        $region33: #{tpu_custom_call.1} parent=31 // pred_check
          %p188 = pneg %p42
        $region34: #{tpu_custom_call.1} parent=31 // pred_check_branch
          %190 = sbr.rel (%p188) target = $region36
        $region35: #{tpu_custom_call.1} parent=31 // pred_region
          %191 = dma.done %s184, 4096
        $region36: #{tpu_custom_call.1} parent=31 // pred_fallthru
          _
        // Predicated region
        $region37: #{tpu_custom_call.1} parent=31 // pred_check
          %p192 = pneg %p63
        $region38: #{tpu_custom_call.1} parent=31 // pred_check_branch
          %194 = sbr.rel (%p192) target = $region40
        $region39: #{tpu_custom_call.1} parent=31 // pred_region
          %195 = dma.done [#allocation6], 18432
        $region40: #{tpu_custom_call.1} parent=31 // pred_fallthru
          _
        // Predicated region
        $region41: #{tpu_custom_call.1} parent=31 // pred_check
          %p196 = pneg %p84
        $region42: #{tpu_custom_call.1} parent=31 // pred_check_branch
          %198 = sbr.rel (%p196) target = $region44
        $region43: #{tpu_custom_call.1} parent=31 // pred_region
          %199 = dma.done [#allocation6], 18432
        $region44: #{tpu_custom_call.1} parent=31 // pred_fallthru
          _
        %s200 = sand.u32 %s29, 1
        %s201 = scalar_lea.sflag [#allocation3], %s200
        %s202 = sand.u32 %s29, 1
        %s203 = smul.addr %s202, 256
        %s204 = scalar_lea.vmem [#allocation2], %s203
        %p205 = pneg %p42
        %p206 = pneg %p39
        %p207 = pneg %p63
        %p208 = pneg %p60
        %p209 = pneg %p84
        %p210 = pneg %p81
        %p211 = pneg %p110
        %p212 = pneg %p107
        %s213 = sand.u32 %s97, 1
        %s214 = scalar_lea.sflag [#allocation4], %s213
        %s215 = sand.u32 %s97, 1
        %s216 = smul.addr %s215, 256
        %s217 = scalar_lea.vmem [#allocation8], %s216
        %v218 = vld [vmem:[%s187] sm:$0xff]
        %v219 = vld [vmem:[%s187 + $0x8] sm:$0xff]
        %v220 = vld [vmem:[%s187 + $0x10] sm:$0xff]
        %v221 = vld [vmem:[%s187 + $0x18] sm:$0xff]
        %v222 = vld [vmem:[%s187 + $0x20] sm:$0xff]
        %v223 = vld [vmem:[%s187 + $0x28] sm:$0xff]
        %v224 = vld [vmem:[%s187 + $0x30] sm:$0xff]
        %v225 = vld [vmem:[%s187 + $0x38] sm:$0xff]
        %v226 = vld [vmem:[%s187 + $0x40] sm:$0xff]
        %v227 = vld [vmem:[%s187 + $0x48] sm:$0xff]
        %v228 = vld [vmem:[%s187 + $0x50] sm:$0xff]
        %v229 = vld [vmem:[%s187 + $0x58] sm:$0xff]
        %v230 = vld [vmem:[%s187 + $0x60] sm:$0xff]
        %v231 = vld [vmem:[%s187 + $0x68] sm:$0xff]
        %v232 = vld [vmem:[%s187 + $0x70] sm:$0xff]
        %v233 = vld [vmem:[%s187 + $0x78] sm:$0xff]
        %v234 = vld [vmem:[%s187 + $0x80] sm:$0xff]
        %v235 = vld [vmem:[%s187 + $0x88] sm:$0xff]
        %v236 = vld [vmem:[%s187 + $0x90] sm:$0xff]
        %v237 = vld [vmem:[%s187 + $0x98] sm:$0xff]
        %v238 = vld [vmem:[%s187 + $0xa0] sm:$0xff]
        %v239 = vld [vmem:[%s187 + $0xa8] sm:$0xff]
        %v240 = vld [vmem:[%s187 + $0xb0] sm:$0xff]
        %v241 = vld [vmem:[%s187 + $0xb8] sm:$0xff]
        %v242 = vld [vmem:[%s187 + $0xc0] sm:$0xff]
        %v243 = vld [vmem:[%s187 + $0xc8] sm:$0xff]
        %v244 = vld [vmem:[%s187 + $0xd0] sm:$0xff]
        %v245 = vld [vmem:[%s187 + $0xd8] sm:$0xff]
        %v246 = vld [vmem:[%s187 + $0xe0] sm:$0xff]
        %v247 = vld [vmem:[%s187 + $0xe8] sm:$0xff]
        %v248 = vld [vmem:[%s187 + $0xf0] sm:$0xff]
        %v249 = vld [vmem:[%s187 + $0xf8] sm:$0xff]
        %v250 = vmax.f32 %v218, 0.0
        %v251 = vmax.f32 %v219, 0.0
        %v252 = vmax.f32 %v220, 0.0
        %v253 = vmax.f32 %v221, 0.0
        %v254 = vmax.f32 %v222, 0.0
        %v255 = vmax.f32 %v223, 0.0
        %v256 = vmax.f32 %v224, 0.0
        %v257 = vmax.f32 %v225, 0.0
        %v258 = vmax.f32 %v226, 0.0
        %v259 = vmax.f32 %v227, 0.0
        %v260 = vmax.f32 %v228, 0.0
        %v261 = vmax.f32 %v229, 0.0
        %v262 = vmax.f32 %v230, 0.0
        %v263 = vmax.f32 %v231, 0.0
        %v264 = vmax.f32 %v232, 0.0
        %v265 = vmax.f32 %v233, 0.0
        %v266 = vmax.f32 %v234, 0.0
        %v267 = vmax.f32 %v235, 0.0
        %v268 = vmax.f32 %v236, 0.0
        %v269 = vmax.f32 %v237, 0.0
        %v270 = vmax.f32 %v238, 0.0
        %v271 = vmax.f32 %v239, 0.0
        %v272 = vmax.f32 %v240, 0.0
        %v273 = vmax.f32 %v241, 0.0
        %v274 = vmax.f32 %v242, 0.0
        %v275 = vmax.f32 %v243, 0.0
        %v276 = vmax.f32 %v244, 0.0
        %v277 = vmax.f32 %v245, 0.0
        %v278 = vmax.f32 %v246, 0.0
        %v279 = vmax.f32 %v247, 0.0
        %v280 = vmax.f32 %v248, 0.0
        %v281 = vmax.f32 %v249, 0.0
        %v282 = vld [vmem:[#allocation5] sm:$0xff]
        %v283 = vld [vmem:[#allocation5 + $0x8] sm:$0xff]
        %v284 = vld [vmem:[#allocation5 + $0x10] sm:$0xff]
        %v285 = vld [vmem:[#allocation5 + $0x18] sm:$0xff]
        %v286 = vld [vmem:[#allocation5 + $0x20] sm:$0xff]
        %v287 = vld [vmem:[#allocation5 + $0x28] sm:$0xff]
        %v288 = vld [vmem:[#allocation5 + $0x30] sm:$0xff]
        %v289 = vld [vmem:[#allocation5 + $0x38] sm:$0xff]
        %v290 = vld [vmem:[#allocation5 + $0x40] sm:$0xff]
        %v291 = vld [vmem:[#allocation5 + $0x48] sm:$0xff]
        %v292 = vld [vmem:[#allocation5 + $0x50] sm:$0xff]
        %v293 = vld [vmem:[#allocation5 + $0x58] sm:$0xff]
        %v294 = vld [vmem:[#allocation5 + $0x60] sm:$0xff]
        %v295 = vld [vmem:[#allocation5 + $0x68] sm:$0xff]
        %v296 = vld [vmem:[#allocation5 + $0x70] sm:$0xff]
        %v297 = vld [vmem:[#allocation5 + $0x78] sm:$0xff]
        %v298 = vld [vmem:[#allocation5 + $0x80] sm:$0xff]
        %v299 = vld [vmem:[#allocation5 + $0x88] sm:$0xff]
        %v300 = vld [vmem:[#allocation5 + $0x90] sm:$0xff]
        %v301 = vld [vmem:[#allocation5 + $0x98] sm:$0xff]
        %v302 = vld [vmem:[#allocation5 + $0xa0] sm:$0xff]
        %v303 = vld [vmem:[#allocation5 + $0xa8] sm:$0xff]
        %v304 = vld [vmem:[#allocation5 + $0xb0] sm:$0xff]
        %v305 = vld [vmem:[#allocation5 + $0xb8] sm:$0xff]
        %v306 = vld [vmem:[#allocation5 + $0xc0] sm:$0xff]
        %v307 = vld [vmem:[#allocation5 + $0xc8] sm:$0xff]
        %v308 = vld [vmem:[#allocation5 + $0xd0] sm:$0xff]
        %v309 = vld [vmem:[#allocation5 + $0xd8] sm:$0xff]
        %v310 = vld [vmem:[#allocation5 + $0xe0] sm:$0xff]
        %v311 = vld [vmem:[#allocation5 + $0xe8] sm:$0xff]
        %v312 = vld [vmem:[#allocation5 + $0xf0] sm:$0xff]
        %v313 = vld [vmem:[#allocation5 + $0xf8] sm:$0xff]
        %v314 = vld [vmem:[#allocation5 + $0x100] sm:$0xff]
        %v315 = vld [vmem:[#allocation5 + $0x108] sm:$0xff]
        %v316 = vld [vmem:[#allocation5 + $0x110] sm:$0xff]
        %v317 = vld [vmem:[#allocation5 + $0x118] sm:$0xff]
        %v318 = vld [vmem:[#allocation5 + $0x120] sm:$0xff]
        %v319 = vld [vmem:[#allocation5 + $0x128] sm:$0xff]
        %v320 = vld [vmem:[#allocation5 + $0x130] sm:$0xff]
        %v321 = vld [vmem:[#allocation5 + $0x138] sm:$0xff]
        %v322 = vld [vmem:[#allocation5 + $0x140] sm:$0xff]
        %v323 = vld [vmem:[#allocation5 + $0x148] sm:$0xff]
        %v324 = vld [vmem:[#allocation5 + $0x150] sm:$0xff]
        %v325 = vld [vmem:[#allocation5 + $0x158] sm:$0xff]
        %v326 = vld [vmem:[#allocation5 + $0x160] sm:$0xff]
        %v327 = vld [vmem:[#allocation5 + $0x168] sm:$0xff]
        %v328 = vld [vmem:[#allocation5 + $0x170] sm:$0xff]
        %v329 = vld [vmem:[#allocation5 + $0x178] sm:$0xff]
        %v330 = vld [vmem:[#allocation5 + $0x180] sm:$0xff]
        %v331 = vld [vmem:[#allocation5 + $0x188] sm:$0xff]
        %v332 = vld [vmem:[#allocation5 + $0x190] sm:$0xff]
        %v333 = vld [vmem:[#allocation5 + $0x198] sm:$0xff]
        %v334 = vld [vmem:[#allocation5 + $0x1a0] sm:$0xff]
        %v335 = vld [vmem:[#allocation5 + $0x1a8] sm:$0xff]
        %v336 = vld [vmem:[#allocation5 + $0x1b0] sm:$0xff]
        %v337 = vld [vmem:[#allocation5 + $0x1b8] sm:$0xff]
        %v338 = vld [vmem:[#allocation5 + $0x1c0] sm:$0xff]
        %v339 = vld [vmem:[#allocation5 + $0x1c8] sm:$0xff]
        %v340 = vld [vmem:[#allocation5 + $0x1d0] sm:$0xff]
        %v341 = vld [vmem:[#allocation5 + $0x1d8] sm:$0xff]
        %v342 = vld [vmem:[#allocation5 + $0x1e0] sm:$0xff]
        %v343 = vld [vmem:[#allocation5 + $0x1e8] sm:$0xff]
        %v344 = vld [vmem:[#allocation5 + $0x1f0] sm:$0xff]
        %v345 = vld [vmem:[#allocation5 + $0x1f8] sm:$0xff]
        %v346 = vld [vmem:[#allocation5 + $0x200] sm:$0xff]
        %v347 = vld [vmem:[#allocation5 + $0x208] sm:$0xff]
        %v348 = vld [vmem:[#allocation5 + $0x210] sm:$0xff]
        %v349 = vld [vmem:[#allocation5 + $0x218] sm:$0xff]
        %v350 = vld [vmem:[#allocation5 + $0x220] sm:$0xff]
        %v351 = vld [vmem:[#allocation5 + $0x228] sm:$0xff]
        %v352 = vld [vmem:[#allocation5 + $0x230] sm:$0xff]
        %v353 = vld [vmem:[#allocation5 + $0x238] sm:$0xff]
        %v354 = vld [vmem:[#allocation5 + $0x240] sm:$0xff]
        %v355 = vld [vmem:[#allocation5 + $0x248] sm:$0xff]
        %v356 = vld [vmem:[#allocation5 + $0x250] sm:$0xff]
        %v357 = vld [vmem:[#allocation5 + $0x258] sm:$0xff]
        %v358 = vld [vmem:[#allocation5 + $0x260] sm:$0xff]
        %v359 = vld [vmem:[#allocation5 + $0x268] sm:$0xff]
        %v360 = vld [vmem:[#allocation5 + $0x270] sm:$0xff]
        %v361 = vld [vmem:[#allocation5 + $0x278] sm:$0xff]
        %v362 = vld [vmem:[#allocation5 + $0x280] sm:$0xff]
        %v363 = vld [vmem:[#allocation5 + $0x288] sm:$0xff]
        %v364 = vld [vmem:[#allocation5 + $0x290] sm:$0xff]
        %v365 = vld [vmem:[#allocation5 + $0x298] sm:$0xff]
        %v366 = vld [vmem:[#allocation5 + $0x2a0] sm:$0xff]
        %v367 = vld [vmem:[#allocation5 + $0x2a8] sm:$0xff]
        %v368 = vld [vmem:[#allocation5 + $0x2b0] sm:$0xff]
        %v369 = vld [vmem:[#allocation5 + $0x2b8] sm:$0xff]
        %v370 = vld [vmem:[#allocation5 + $0x2c0] sm:$0xff]
        %v371 = vld [vmem:[#allocation5 + $0x2c8] sm:$0xff]
        %v372 = vld [vmem:[#allocation5 + $0x2d0] sm:$0xff]
        %v373 = vld [vmem:[#allocation5 + $0x2d8] sm:$0xff]
        %v374 = vld [vmem:[#allocation5 + $0x2e0] sm:$0xff]
        %v375 = vld [vmem:[#allocation5 + $0x2e8] sm:$0xff]
        %v376 = vld [vmem:[#allocation5 + $0x2f0] sm:$0xff]
        %v377 = vld [vmem:[#allocation5 + $0x2f8] sm:$0xff]
        %v378 = vld [vmem:[#allocation5 + $0x300] sm:$0xff]
        %v379 = vld [vmem:[#allocation5 + $0x308] sm:$0xff]
        %v380 = vld [vmem:[#allocation5 + $0x310] sm:$0xff]
        %v381 = vld [vmem:[#allocation5 + $0x318] sm:$0xff]
        %v382 = vld [vmem:[#allocation5 + $0x320] sm:$0xff]
        %v383 = vld [vmem:[#allocation5 + $0x328] sm:$0xff]
        %v384 = vld [vmem:[#allocation5 + $0x330] sm:$0xff]
        %v385 = vld [vmem:[#allocation5 + $0x338] sm:$0xff]
        %v386 = vld [vmem:[#allocation5 + $0x340] sm:$0xff]
        %v387 = vld [vmem:[#allocation5 + $0x348] sm:$0xff]
        %v388 = vld [vmem:[#allocation5 + $0x350] sm:$0xff]
        %v389 = vld [vmem:[#allocation5 + $0x358] sm:$0xff]
        %v390 = vld [vmem:[#allocation5 + $0x360] sm:$0xff]
        %v391 = vld [vmem:[#allocation5 + $0x368] sm:$0xff]
        %v392 = vld [vmem:[#allocation5 + $0x370] sm:$0xff]
        %v393 = vld [vmem:[#allocation5 + $0x378] sm:$0xff]
        %v394 = vld [vmem:[#allocation5 + $0x380] sm:$0xff]
        %v395 = vld [vmem:[#allocation5 + $0x388] sm:$0xff]
        %v396 = vld [vmem:[#allocation5 + $0x390] sm:$0xff]
        %v397 = vld [vmem:[#allocation5 + $0x398] sm:$0xff]
        %v398 = vld [vmem:[#allocation5 + $0x3a0] sm:$0xff]
        %v399 = vld [vmem:[#allocation5 + $0x3a8] sm:$0xff]
        %v400 = vld [vmem:[#allocation5 + $0x3b0] sm:$0xff]
        %v401 = vld [vmem:[#allocation5 + $0x3b8] sm:$0xff]
        %v402 = vld [vmem:[#allocation5 + $0x3c0] sm:$0xff]
        %v403 = vld [vmem:[#allocation5 + $0x3c8] sm:$0xff]
        %v404 = vld [vmem:[#allocation5 + $0x3d0] sm:$0xff]
        %v405 = vld [vmem:[#allocation5 + $0x3d8] sm:$0xff]
        %v406 = vld [vmem:[#allocation5 + $0x3e0] sm:$0xff]
        %v407 = vld [vmem:[#allocation5 + $0x3e8] sm:$0xff]
        %v408 = vld [vmem:[#allocation5 + $0x3f0] sm:$0xff]
        %v409 = vld [vmem:[#allocation5 + $0x3f8] sm:$0xff]
        %v410 = vld [vmem:[#allocation5 + $0x400] sm:$0xff]
        %v411 = vld [vmem:[#allocation5 + $0x408] sm:$0xff]
        %v412 = vld [vmem:[#allocation5 + $0x410] sm:$0xff]
        %v413 = vld [vmem:[#allocation5 + $0x418] sm:$0xff]
        %v414 = vld [vmem:[#allocation5 + $0x420] sm:$0xff]
        %v415 = vld [vmem:[#allocation5 + $0x428] sm:$0xff]
        %v416 = vld [vmem:[#allocation5 + $0x430] sm:$0xff]
        %v417 = vld [vmem:[#allocation5 + $0x438] sm:$0xff]
        %v418 = vld [vmem:[#allocation5 + $0x440] sm:$0xff]
        %v419 = vld [vmem:[#allocation5 + $0x448] sm:$0xff]
        %v420 = vld [vmem:[#allocation5 + $0x450] sm:$0xff]
        %v421 = vld [vmem:[#allocation5 + $0x458] sm:$0xff]
        %v422 = vld [vmem:[#allocation5 + $0x460] sm:$0xff]
        %v423 = vld [vmem:[#allocation5 + $0x468] sm:$0xff]
        %v424 = vld [vmem:[#allocation5 + $0x470] sm:$0xff]
        %v425 = vld [vmem:[#allocation5 + $0x478] sm:$0xff]
        %vm459 = vcmask 1040384
        %v460 = vrot.slane 0.0, 7
        %v461 = vsel %vm459, %v460, %v460
        %v462 = vrot.slane %v250, 7
        %v463 = vrot.slane %v251, 7
        %v464 = vsel %vm459, %v462, %v463
        %v465 = vrot.slane %v252, 7
        %v466 = vrot.slane %v253, 7
        %v467 = vsel %vm459, %v465, %v466
        %v468 = vrot.slane %v254, 7
        %v469 = vrot.slane %v255, 7
        %v470 = vsel %vm459, %v468, %v469
        %v471 = vrot.slane %v256, 7
        %v472 = vrot.slane %v257, 7
        %v473 = vsel %vm459, %v471, %v472
        %v474 = vrot.slane %v258, 7
        %v475 = vrot.slane %v259, 7
        %v476 = vsel %vm459, %v474, %v475
        %v477 = vrot.slane %v260, 7
        %v478 = vrot.slane %v261, 7
        %v479 = vsel %vm459, %v477, %v478
        %v480 = vrot.slane %v262, 7
        %v481 = vrot.slane %v263, 7
        %v482 = vsel %vm459, %v480, %v481
        %v483 = vrot.slane %v264, 7
        %v484 = vrot.slane %v265, 7
        %v485 = vsel %vm459, %v483, %v484
        %v486 = vrot.slane %v266, 7
        %v487 = vrot.slane %v267, 7
        %v488 = vsel %vm459, %v486, %v487
        %v489 = vrot.slane %v268, 7
        %v490 = vrot.slane %v269, 7
        %v491 = vsel %vm459, %v489, %v490
        %v492 = vrot.slane %v270, 7
        %v493 = vrot.slane %v271, 7
        %v494 = vsel %vm459, %v492, %v493
        %v495 = vrot.slane %v272, 7
        %v496 = vrot.slane %v273, 7
        %v497 = vsel %vm459, %v495, %v496
        %v498 = vrot.slane %v274, 7
        %v499 = vrot.slane %v275, 7
        %v500 = vsel %vm459, %v498, %v499
        %v501 = vrot.slane %v276, 7
        %v502 = vrot.slane %v277, 7
        %v503 = vsel %vm459, %v501, %v502
        %v504 = vrot.slane %v278, 7
        %v505 = vrot.slane %v279, 7
        %v506 = vsel %vm459, %v504, %v505
        %v507 = vrot.slane %v280, 7
        %v508 = vrot.slane %v281, 7
        %v509 = vsel %vm459, %v507, %v508
        %v560 = vsel %vm459, 0.0, %v460
        %v561 = vsel %vm459, 0.0, %v462
        %v562 = vsel %vm459, 0.0, %v465
        %v563 = vsel %vm459, 0.0, %v468
        %v564 = vsel %vm459, 0.0, %v471
        %v565 = vsel %vm459, 0.0, %v474
        %v566 = vsel %vm459, 0.0, %v477
        %v567 = vsel %vm459, 0.0, %v480
        %v568 = vsel %vm459, 0.0, %v483
        %v569 = vsel %vm459, 0.0, %v486
        %v570 = vsel %vm459, 0.0, %v489
        %v571 = vsel %vm459, 0.0, %v492
        %v572 = vsel %vm459, 0.0, %v495
        %v573 = vsel %vm459, 0.0, %v498
        %v574 = vsel %vm459, 0.0, %v501
        %v575 = vsel %vm459, 0.0, %v504
        %v576 = vsel %vm459, 0.0, %v507
        %v577 = vsel %vm459, %v460, 0.0
        %v578 = vsel %vm459, %v463, 0.0
        %v579 = vsel %vm459, %v466, 0.0
        %v580 = vsel %vm459, %v469, 0.0
        %v581 = vsel %vm459, %v472, 0.0
        %v582 = vsel %vm459, %v475, 0.0
        %v583 = vsel %vm459, %v478, 0.0
        %v584 = vsel %vm459, %v481, 0.0
        %v585 = vsel %vm459, %v484, 0.0
        %v586 = vsel %vm459, %v487, 0.0
        %v587 = vsel %vm459, %v490, 0.0
        %v588 = vsel %vm459, %v493, 0.0
        %v589 = vsel %vm459, %v496, 0.0
        %v590 = vsel %vm459, %v499, 0.0
        %v591 = vsel %vm459, %v502, 0.0
        %v592 = vsel %vm459, %v505, 0.0
        %v593 = vsel %vm459, %v508, 0.0
        %vm626 = vcmask 1046528
        %v627 = vrot.slane %v560, 1
        %v628 = vrot.slane %v461, 1
        %v629 = vsel %vm626, %v627, %v628
        %v630 = vrot.slane %v577, 1
        %v631 = vsel %vm626, %v628, %v630
        %v632 = vrot.slane %v561, 1
        %v633 = vrot.slane %v464, 1
        %v634 = vsel %vm626, %v632, %v633
        %v635 = vrot.slane %v578, 1
        %v636 = vsel %vm626, %v633, %v635
        %v637 = vrot.slane %v562, 1
        %v638 = vrot.slane %v467, 1
        %v639 = vsel %vm626, %v637, %v638
        %v640 = vrot.slane %v579, 1
        %v641 = vsel %vm626, %v638, %v640
        %v642 = vrot.slane %v563, 1
        %v643 = vrot.slane %v470, 1
        %v644 = vsel %vm626, %v642, %v643
        %v645 = vrot.slane %v580, 1
        %v646 = vsel %vm626, %v643, %v645
        %v647 = vrot.slane %v564, 1
        %v648 = vrot.slane %v473, 1
        %v649 = vsel %vm626, %v647, %v648
        %v650 = vrot.slane %v581, 1
        %v651 = vsel %vm626, %v648, %v650
        %v652 = vrot.slane %v565, 1
        %v653 = vrot.slane %v476, 1
        %v654 = vsel %vm626, %v652, %v653
        %v655 = vrot.slane %v582, 1
        %v656 = vsel %vm626, %v653, %v655
        %v657 = vrot.slane %v566, 1
        %v658 = vrot.slane %v479, 1
        %v659 = vsel %vm626, %v657, %v658
        %v660 = vrot.slane %v583, 1
        %v661 = vsel %vm626, %v658, %v660
        %v662 = vrot.slane %v567, 1
        %v663 = vrot.slane %v482, 1
        %v664 = vsel %vm626, %v662, %v663
        %v665 = vrot.slane %v584, 1
        %v666 = vsel %vm626, %v663, %v665
        %v667 = vrot.slane %v568, 1
        %v668 = vrot.slane %v485, 1
        %v669 = vsel %vm626, %v667, %v668
        %v670 = vrot.slane %v585, 1
        %v671 = vsel %vm626, %v668, %v670
        %v672 = vrot.slane %v569, 1
        %v673 = vrot.slane %v488, 1
        %v674 = vsel %vm626, %v672, %v673
        %v675 = vrot.slane %v586, 1
        %v676 = vsel %vm626, %v673, %v675
        %v677 = vrot.slane %v570, 1
        %v678 = vrot.slane %v491, 1
        %v679 = vsel %vm626, %v677, %v678
        %v680 = vrot.slane %v587, 1
        %v681 = vsel %vm626, %v678, %v680
        %v682 = vrot.slane %v571, 1
        %v683 = vrot.slane %v494, 1
        %v684 = vsel %vm626, %v682, %v683
        %v685 = vrot.slane %v588, 1
        %v686 = vsel %vm626, %v683, %v685
        %v687 = vrot.slane %v572, 1
        %v688 = vrot.slane %v497, 1
        %v689 = vsel %vm626, %v687, %v688
        %v690 = vrot.slane %v589, 1
        %v691 = vsel %vm626, %v688, %v690
        %v692 = vrot.slane %v573, 1
        %v693 = vrot.slane %v500, 1
        %v694 = vsel %vm626, %v692, %v693
        %v695 = vrot.slane %v590, 1
        %v696 = vsel %vm626, %v693, %v695
        %v697 = vrot.slane %v574, 1
        %v698 = vrot.slane %v503, 1
        %v699 = vsel %vm626, %v697, %v698
        %v700 = vrot.slane %v591, 1
        %v701 = vsel %vm626, %v698, %v700
        %v702 = vrot.slane %v575, 1
        %v703 = vrot.slane %v506, 1
        %v704 = vsel %vm626, %v702, %v703
        %v705 = vrot.slane %v592, 1
        %v706 = vsel %vm626, %v703, %v705
        %vm739 = vcmask 1045504
        %v740 = vrot.slane %v560, 2
        %v741 = vrot.slane %v461, 2
        %v742 = vsel %vm739, %v740, %v741
        %v743 = vrot.slane %v577, 2
        %v744 = vsel %vm739, %v741, %v743
        %v745 = vrot.slane %v561, 2
        %v746 = vrot.slane %v464, 2
        %v747 = vsel %vm739, %v745, %v746
        %v748 = vrot.slane %v578, 2
        %v749 = vsel %vm739, %v746, %v748
        %v750 = vrot.slane %v562, 2
        %v751 = vrot.slane %v467, 2
        %v752 = vsel %vm739, %v750, %v751
        %v753 = vrot.slane %v579, 2
        %v754 = vsel %vm739, %v751, %v753
        %v755 = vrot.slane %v563, 2
        %v756 = vrot.slane %v470, 2
        %v757 = vsel %vm739, %v755, %v756
        %v758 = vrot.slane %v580, 2
        %v759 = vsel %vm739, %v756, %v758
        %v760 = vrot.slane %v564, 2
        %v761 = vrot.slane %v473, 2
        %v762 = vsel %vm739, %v760, %v761
        %v763 = vrot.slane %v581, 2
        %v764 = vsel %vm739, %v761, %v763
        %v765 = vrot.slane %v565, 2
        %v766 = vrot.slane %v476, 2
        %v767 = vsel %vm739, %v765, %v766
        %v768 = vrot.slane %v582, 2
        %v769 = vsel %vm739, %v766, %v768
        %v770 = vrot.slane %v566, 2
        %v771 = vrot.slane %v479, 2
        %v772 = vsel %vm739, %v770, %v771
        %v773 = vrot.slane %v583, 2
        %v774 = vsel %vm739, %v771, %v773
        %v775 = vrot.slane %v567, 2
        %v776 = vrot.slane %v482, 2
        %v777 = vsel %vm739, %v775, %v776
        %v778 = vrot.slane %v584, 2
        %v779 = vsel %vm739, %v776, %v778
        %v780 = vrot.slane %v568, 2
        %v781 = vrot.slane %v485, 2
        %v782 = vsel %vm739, %v780, %v781
        %v783 = vrot.slane %v585, 2
        %v784 = vsel %vm739, %v781, %v783
        %v785 = vrot.slane %v569, 2
        %v786 = vrot.slane %v488, 2
        %v787 = vsel %vm739, %v785, %v786
        %v788 = vrot.slane %v586, 2
        %v789 = vsel %vm739, %v786, %v788
        %v790 = vrot.slane %v570, 2
        %v791 = vrot.slane %v491, 2
        %v792 = vsel %vm739, %v790, %v791
        %v793 = vrot.slane %v587, 2
        %v794 = vsel %vm739, %v791, %v793
        %v795 = vrot.slane %v571, 2
        %v796 = vrot.slane %v494, 2
        %v797 = vsel %vm739, %v795, %v796
        %v798 = vrot.slane %v588, 2
        %v799 = vsel %vm739, %v796, %v798
        %v800 = vrot.slane %v572, 2
        %v801 = vrot.slane %v497, 2
        %v802 = vsel %vm739, %v800, %v801
        %v803 = vrot.slane %v589, 2
        %v804 = vsel %vm739, %v801, %v803
        %v805 = vrot.slane %v573, 2
        %v806 = vrot.slane %v500, 2
        %v807 = vsel %vm739, %v805, %v806
        %v808 = vrot.slane %v590, 2
        %v809 = vsel %vm739, %v806, %v808
        %v810 = vrot.slane %v574, 2
        %v811 = vrot.slane %v503, 2
        %v812 = vsel %vm739, %v810, %v811
        %v813 = vrot.slane %v591, 2
        %v814 = vsel %vm739, %v811, %v813
        %v815 = vrot.slane %v575, 2
        %v816 = vrot.slane %v506, 2
        %v817 = vsel %vm739, %v815, %v816
        %v818 = vrot.slane %v592, 2
        %v819 = vsel %vm739, %v816, %v818
        %v854 = vrot.slane %v576, 1
        %v855 = vrot.slane %v509, 1
        %v856 = vsel %vm626, %v854, %v855
        %v857 = vrot.slane %v593, 1
        %v858 = vsel %vm626, %v855, %v857
        %v861 = vrot.slane %v576, 2
        %v862 = vrot.slane %v509, 2
        %v863 = vsel %vm739, %v861, %v862
        %v864 = vrot.slane %v593, 2
        %v865 = vsel %vm739, %v862, %v864
        %868 = vmatprep.subr.mxu0 0.0
        %869 = vmatpush1.msra.mxu0 %v282
        %870 = vmatprep.subr.mxu0 0.0
        %871 = vmatpush1.msra.mxu0 %v283
        %872 = vmatprep.subr.mxu0 0.0
        %873 = vmatpush1.msra.mxu0 %v284
        %874 = vmatprep.subr.mxu0 0.0
        %875 = vmatpush1.msra.mxu0 %v285
        %876 = vmatprep.subr.mxu0 0.0
        %877 = vmatpush1.msra.mxu0 %v286
        %878 = vmatprep.subr.mxu0 0.0
        %879 = vmatpush1.msra.mxu0 %v287
        %880 = vmatprep.subr.mxu0 0.0
        %881 = vmatpush1.msra.mxu0 %v288
        %882 = vmatprep.subr.mxu0 0.0
        %883 = vmatpush1.msra.mxu0 %v289
        %884 = vmatprep.subr.mxu0 0.0
        %885 = vmatpush1.msra.mxu0 %v290
        %886 = vmatprep.subr.mxu0 0.0
        %887 = vmatpush1.msra.mxu0 %v291
        %888 = vmatprep.subr.mxu0 0.0
        %889 = vmatpush1.msra.mxu0 %v292
        %890 = vmatprep.subr.mxu0 0.0
        %891 = vmatpush1.msra.mxu0 %v293
        %892 = vmatprep.subr.mxu0 0.0
        %893 = vmatpush1.msra.mxu0 %v294
        %894 = vmatprep.subr.mxu0 0.0
        %895 = vmatpush1.msra.mxu0 %v295
        %896 = vmatprep.subr.mxu0 0.0
        %897 = vmatpush1.msra.mxu0 %v296
        %898 = vmatprep.subr.mxu0 0.0
        %899 = vmatpush1.msra.mxu0 %v297
        %900 = vmatprep.subr.mxu0 0.0
        %901 = vmatpush1.msra.mxu0 %v298
        %902 = vmatprep.subr.mxu0 0.0
        %903 = vmatpush1.msra.mxu0 %v299
        %904 = vmatprep.subr.mxu0 0.0
        %905 = vmatpush1.msra.mxu0 %v300
        %906 = vmatprep.subr.mxu0 0.0
        %907 = vmatpush1.msra.mxu0 %v301
        %908 = vmatprep.subr.mxu0 0.0
        %909 = vmatpush1.msra.mxu0 %v302
        %910 = vmatprep.subr.mxu0 0.0
        %911 = vmatpush1.msra.mxu0 %v303
        %912 = vmatprep.subr.mxu0 0.0
        %913 = vmatpush1.msra.mxu0 %v304
        %914 = vmatprep.subr.mxu0 0.0
        %915 = vmatpush1.msra.mxu0 %v305
        %916 = vmatprep.subr.mxu0 0.0
        %917 = vmatpush1.msra.mxu0 %v306
        %918 = vmatprep.subr.mxu0 0.0
        %919 = vmatpush1.msra.mxu0 %v307
        %920 = vmatprep.subr.mxu0 0.0
        %921 = vmatpush1.msra.mxu0 %v308
        %922 = vmatprep.subr.mxu0 0.0
        %923 = vmatpush1.msra.mxu0 %v309
        %924 = vmatprep.subr.mxu0 0.0
        %925 = vmatpush1.msra.mxu0 %v310
        %926 = vmatprep.subr.mxu0 0.0
        %927 = vmatpush1.msra.mxu0 %v311
        %928 = vmatprep.subr.mxu0 0.0
        %929 = vmatpush1.msra.mxu0 %v312
        %930 = vmatprep.subr.mxu0 0.0
        %931 = vmatpush1.msra.mxu0 %v313
        %932 = vmatprep.mubr.f32.mxu0 %v629
        %933 = vmatmul.mubr.f32.gmra.mrb[0].mxu0 %v560
        %v934 = vpop.f32.mrb[0].mxu0
        %v935 = vadd.f32 0.0, %v934
        %v936 = vpop.f32.mrb[0].mxu0
        %937 = vmatprep.mubr.f32.mxu0 %v631
        %938 = vmatmul.mubr.f32.gmra.mrb[0].mxu0 %v461
        %v939 = vpop.f32.mrb[0].mxu0
        %v940 = vadd.f32 0.0, %v939
        %v941 = vpop.f32.mrb[0].mxu0
        %942 = vmatprep.mubr.f32.mxu0 %v634
        %943 = vmatmul.mubr.f32.gmra.mrb[0].mxu0 %v561
        %v944 = vpop.f32.mrb[0].mxu0
        %v945 = vadd.f32 0.0, %v944
        %v946 = vpop.f32.mrb[0].mxu0
        %947 = vmatprep.mubr.f32.mxu0 %v636
        %948 = vmatmul.mubr.f32.gmra.mrb[0].mxu0 %v464
        %v949 = vpop.f32.mrb[0].mxu0
        %v950 = vadd.f32 0.0, %v949
        %v951 = vpop.f32.mrb[0].mxu0
        %952 = vmatprep.mubr.f32.mxu0 %v639
        %953 = vmatmul.mubr.f32.gmra.mrb[0].mxu0 %v562
        %v954 = vpop.f32.mrb[0].mxu0
        %v955 = vadd.f32 0.0, %v954
        %v956 = vpop.f32.mrb[0].mxu0
        %957 = vmatprep.mubr.f32.mxu0 %v641
        %958 = vmatmul.mubr.f32.gmra.mrb[0].mxu0 %v467
        %v959 = vpop.f32.mrb[0].mxu0
        %v960 = vadd.f32 0.0, %v959
        %v961 = vpop.f32.mrb[0].mxu0
        %962 = vmatprep.mubr.f32.mxu0 %v644
        %963 = vmatmul.mubr.f32.gmra.mrb[0].mxu0 %v563
        %v964 = vpop.f32.mrb[0].mxu0
        %v965 = vadd.f32 0.0, %v964
        %v966 = vpop.f32.mrb[0].mxu0
        %967 = vmatprep.mubr.f32.mxu0 %v646
        %968 = vmatmul.mubr.f32.gmra.mrb[0].mxu0 %v470
        %v969 = vpop.f32.mrb[0].mxu0
        %v970 = vadd.f32 0.0, %v969
        %v971 = vpop.f32.mrb[0].mxu0
        %972 = vmatprep.mubr.f32.mxu0 %v649
        %973 = vmatmul.mubr.f32.gmra.mrb[0].mxu0 %v564
        %v974 = vpop.f32.mrb[0].mxu0
        %v975 = vadd.f32 0.0, %v974
        %v976 = vpop.f32.mrb[0].mxu0
        %977 = vmatprep.mubr.f32.mxu0 %v651
        %978 = vmatmul.mubr.f32.gmra.mrb[0].mxu0 %v473
        %v979 = vpop.f32.mrb[0].mxu0
        %v980 = vadd.f32 0.0, %v979
        %v981 = vpop.f32.mrb[0].mxu0
        %982 = vmatprep.mubr.f32.mxu0 %v654
        %983 = vmatmul.mubr.f32.gmra.mrb[0].mxu0 %v565
        %v984 = vpop.f32.mrb[0].mxu0
        %v985 = vadd.f32 0.0, %v984
        %v986 = vpop.f32.mrb[0].mxu0
        %987 = vmatprep.mubr.f32.mxu0 %v656
        %988 = vmatmul.mubr.f32.gmra.mrb[0].mxu0 %v476
        %v989 = vpop.f32.mrb[0].mxu0
        %v990 = vadd.f32 0.0, %v989
        %v991 = vpop.f32.mrb[0].mxu0
        %992 = vmatprep.mubr.f32.mxu0 %v659
        %993 = vmatmul.mubr.f32.gmra.mrb[0].mxu0 %v566
        %v994 = vpop.f32.mrb[0].mxu0
        %v995 = vadd.f32 0.0, %v994
        %v996 = vpop.f32.mrb[0].mxu0
        %997 = vmatprep.mubr.f32.mxu0 %v661
        %998 = vmatmul.mubr.f32.gmra.mrb[0].mxu0 %v479
        %v999 = vpop.f32.mrb[0].mxu0
        %v1000 = vadd.f32 0.0, %v999
        %v1001 = vpop.f32.mrb[0].mxu0
        %1002 = vmatprep.mubr.f32.mxu0 %v664
        %1003 = vmatmul.mubr.f32.gmra.mrb[0].mxu0 %v567
        %v1004 = vpop.f32.mrb[0].mxu0
        %v1005 = vadd.f32 0.0, %v1004
        %v1006 = vpop.f32.mrb[0].mxu0
        %1007 = vmatprep.mubr.f32.mxu0 %v666
        %1008 = vmatmul.mubr.f32.gmra.mrb[0].mxu0 %v482
        %v1009 = vpop.f32.mrb[0].mxu0
        %v1010 = vadd.f32 0.0, %v1009
        %v1011 = vpop.f32.mrb[0].mxu0
        %1012 = vmatprep.mubr.f32.mxu0 %v669
        %1013 = vmatmul.mubr.f32.gmra.mrb[0].mxu0 %v568
        %v1014 = vpop.f32.mrb[0].mxu0
        %v1015 = vadd.f32 0.0, %v1014
        %v1016 = vpop.f32.mrb[0].mxu0
        %1017 = vmatprep.mubr.f32.mxu0 %v671
        %1018 = vmatmul.mubr.f32.gmra.mrb[0].mxu0 %v485
        %v1019 = vpop.f32.mrb[0].mxu0
        %v1020 = vadd.f32 0.0, %v1019
        %v1021 = vpop.f32.mrb[0].mxu0
        %1022 = vmatprep.mubr.f32.mxu0 %v674
        %1023 = vmatmul.mubr.f32.gmra.mrb[0].mxu0 %v569
        %v1024 = vpop.f32.mrb[0].mxu0
        %v1025 = vadd.f32 0.0, %v1024
        %v1026 = vpop.f32.mrb[0].mxu0
        %1027 = vmatprep.mubr.f32.mxu0 %v676
        %1028 = vmatmul.mubr.f32.gmra.mrb[0].mxu0 %v488
        %v1029 = vpop.f32.mrb[0].mxu0
        %v1030 = vadd.f32 0.0, %v1029
        %v1031 = vpop.f32.mrb[0].mxu0
        %1032 = vmatprep.mubr.f32.mxu0 %v679
        %1033 = vmatmul.mubr.f32.gmra.mrb[0].mxu0 %v570
        %v1034 = vpop.f32.mrb[0].mxu0
        %v1035 = vadd.f32 0.0, %v1034
        %v1036 = vpop.f32.mrb[0].mxu0
        %1037 = vmatprep.mubr.f32.mxu0 %v681
        %1038 = vmatmul.mubr.f32.gmra.mrb[0].mxu0 %v491
        %v1039 = vpop.f32.mrb[0].mxu0
        %v1040 = vadd.f32 0.0, %v1039
        %v1041 = vpop.f32.mrb[0].mxu0
        %1042 = vmatprep.mubr.f32.mxu0 %v684
        %1043 = vmatmul.mubr.f32.gmra.mrb[0].mxu0 %v571
        %v1044 = vpop.f32.mrb[0].mxu0
        %v1045 = vadd.f32 0.0, %v1044
        %v1046 = vpop.f32.mrb[0].mxu0
        %1047 = vmatprep.mubr.f32.mxu0 %v686
        %1048 = vmatmul.mubr.f32.gmra.mrb[0].mxu0 %v494
        %v1049 = vpop.f32.mrb[0].mxu0
        %v1050 = vadd.f32 0.0, %v1049
        %v1051 = vpop.f32.mrb[0].mxu0
        %1052 = vmatprep.mubr.f32.mxu0 %v689
        %1053 = vmatmul.mubr.f32.gmra.mrb[0].mxu0 %v572
        %v1054 = vpop.f32.mrb[0].mxu0
        %v1055 = vadd.f32 0.0, %v1054
        %v1056 = vpop.f32.mrb[0].mxu0
        %1057 = vmatprep.mubr.f32.mxu0 %v691
        %1058 = vmatmul.mubr.f32.gmra.mrb[0].mxu0 %v497
        %v1059 = vpop.f32.mrb[0].mxu0
        %v1060 = vadd.f32 0.0, %v1059
        %v1061 = vpop.f32.mrb[0].mxu0
        %1062 = vmatprep.mubr.f32.mxu0 %v694
        %1063 = vmatmul.mubr.f32.gmra.mrb[0].mxu0 %v573
        %v1064 = vpop.f32.mrb[0].mxu0
        %v1065 = vadd.f32 0.0, %v1064
        %v1066 = vpop.f32.mrb[0].mxu0
        %1067 = vmatprep.mubr.f32.mxu0 %v696
        %1068 = vmatmul.mubr.f32.gmra.mrb[0].mxu0 %v500
        %v1069 = vpop.f32.mrb[0].mxu0
        %v1070 = vadd.f32 0.0, %v1069
        %v1071 = vpop.f32.mrb[0].mxu0
        %1072 = vmatprep.mubr.f32.mxu0 %v699
        %1073 = vmatmul.mubr.f32.gmra.mrb[0].mxu0 %v574
        %v1074 = vpop.f32.mrb[0].mxu0
        %v1075 = vadd.f32 0.0, %v1074
        %v1076 = vpop.f32.mrb[0].mxu0
        %1077 = vmatprep.mubr.f32.mxu0 %v701
        %1078 = vmatmul.mubr.f32.gmra.mrb[0].mxu0 %v503
        %v1079 = vpop.f32.mrb[0].mxu0
        %v1080 = vadd.f32 0.0, %v1079
        %v1081 = vpop.f32.mrb[0].mxu0
        %1082 = vmatprep.mubr.f32.mxu0 %v704
        %1083 = vmatmul.mubr.f32.gmra.mrb[0].mxu0 %v575
        %v1084 = vpop.f32.mrb[0].mxu0
        %v1085 = vadd.f32 0.0, %v1084
        %v1086 = vpop.f32.mrb[0].mxu0
        %1087 = vmatprep.mubr.f32.mxu0 %v706
        %1088 = vmatmul.mubr.f32.gmra.mrb[0].mxu0 %v506
        %v1089 = vpop.f32.mrb[0].mxu0
        %v1090 = vadd.f32 0.0, %v1089
        %v1091 = vpop.f32.mrb[0].mxu0
        %1092 = vdwg.mxu0
        %1093 = vmatprep.subr.mxu0 0.0
        %1094 = vmatpush1.msra.mxu0 %v314
        %1095 = vmatprep.subr.mxu0 0.0
        %1096 = vmatpush1.msra.mxu0 %v315
        %1097 = vmatprep.subr.mxu0 0.0
        %1098 = vmatpush1.msra.mxu0 %v316
        %1099 = vmatprep.subr.mxu0 0.0
        %1100 = vmatpush1.msra.mxu0 %v317
        %1101 = vmatprep.subr.mxu0 0.0
        %1102 = vmatpush1.msra.mxu0 %v318
        %1103 = vmatprep.subr.mxu0 0.0
        %1104 = vmatpush1.msra.mxu0 %v319
        %1105 = vmatprep.subr.mxu0 0.0
        %1106 = vmatpush1.msra.mxu0 %v320
        %1107 = vmatprep.subr.mxu0 0.0
        %1108 = vmatpush1.msra.mxu0 %v321
        %1109 = vmatprep.subr.mxu0 0.0
        %1110 = vmatpush1.msra.mxu0 %v322
        %1111 = vmatprep.subr.mxu0 0.0
        %1112 = vmatpush1.msra.mxu0 %v323
        %1113 = vmatprep.subr.mxu0 0.0
        %1114 = vmatpush1.msra.mxu0 %v324
        %1115 = vmatprep.subr.mxu0 0.0
        %1116 = vmatpush1.msra.mxu0 %v325
        %1117 = vmatprep.subr.mxu0 0.0
        %1118 = vmatpush1.msra.mxu0 %v326
        %1119 = vmatprep.subr.mxu0 0.0
        %1120 = vmatpush1.msra.mxu0 %v327
        %1121 = vmatprep.subr.mxu0 0.0
        %1122 = vmatpush1.msra.mxu0 %v328
        %1123 = vmatprep.subr.mxu0 0.0
        %1124 = vmatpush1.msra.mxu0 %v329
        %1125 = vmatprep.subr.mxu0 0.0
        %1126 = vmatpush1.msra.mxu0 %v330
        %1127 = vmatprep.subr.mxu0 0.0
        %1128 = vmatpush1.msra.mxu0 %v331
        %1129 = vmatprep.subr.mxu0 0.0
        %1130 = vmatpush1.msra.mxu0 %v332
        %1131 = vmatprep.subr.mxu0 0.0
        %1132 = vmatpush1.msra.mxu0 %v333
        %1133 = vmatprep.subr.mxu0 0.0
        %1134 = vmatpush1.msra.mxu0 %v334
        %1135 = vmatprep.subr.mxu0 0.0
        %1136 = vmatpush1.msra.mxu0 %v335
        %1137 = vmatprep.subr.mxu0 0.0
        %1138 = vmatpush1.msra.mxu0 %v336
        %1139 = vmatprep.subr.mxu0 0.0
        %1140 = vmatpush1.msra.mxu0 %v337
        %1141 = vmatprep.subr.mxu0 0.0
        %1142 = vmatpush1.msra.mxu0 %v338
        %1143 = vmatprep.subr.mxu0 0.0
        %1144 = vmatpush1.msra.mxu0 %v339
        %1145 = vmatprep.subr.mxu0 0.0
        %1146 = vmatpush1.msra.mxu0 %v340
        %1147 = vmatprep.subr.mxu0 0.0
        %1148 = vmatpush1.msra.mxu0 %v341
        %1149 = vmatprep.subr.mxu0 0.0
        %1150 = vmatpush1.msra.mxu0 %v342
        %1151 = vmatprep.subr.mxu0 0.0
        %1152 = vmatpush1.msra.mxu0 %v343
        %1153 = vmatprep.subr.mxu0 0.0
        %1154 = vmatpush1.msra.mxu0 %v344
        %1155 = vmatprep.subr.mxu0 0.0
        %1156 = vmatpush1.msra.mxu0 %v345
        %1157 = vmatprep.mubr.f32.mxu0 %v561
        %1158 = vmatmul.mubr.f32.gmra.mrb[0].mxu0 %v742
        %v1159 = vpop.f32.mrb[0].mxu0
        %v1160 = vadd.f32 %v935, %v1159
        %v1161 = vpop.f32.mrb[0].mxu0
        %1162 = vmatprep.mubr.f32.mxu0 %v464
        %1163 = vmatmul.mubr.f32.gmra.mrb[0].mxu0 %v744
        %v1164 = vpop.f32.mrb[0].mxu0
        %v1165 = vadd.f32 %v940, %v1164
        %v1166 = vpop.f32.mrb[0].mxu0
        %1167 = vmatprep.mubr.f32.mxu0 %v562
        %1168 = vmatmul.mubr.f32.gmra.mrb[0].mxu0 %v747
        %v1169 = vpop.f32.mrb[0].mxu0
        %v1170 = vadd.f32 %v945, %v1169
        %v1171 = vpop.f32.mrb[0].mxu0
        %1172 = vmatprep.mubr.f32.mxu0 %v467
        %1173 = vmatmul.mubr.f32.gmra.mrb[0].mxu0 %v749
        %v1174 = vpop.f32.mrb[0].mxu0
        %v1175 = vadd.f32 %v950, %v1174
        %v1176 = vpop.f32.mrb[0].mxu0
        %1177 = vmatprep.mubr.f32.mxu0 %v563
        %1178 = vmatmul.mubr.f32.gmra.mrb[0].mxu0 %v752
        %v1179 = vpop.f32.mrb[0].mxu0
        %v1180 = vadd.f32 %v955, %v1179
        %v1181 = vpop.f32.mrb[0].mxu0
        %1182 = vmatprep.mubr.f32.mxu0 %v470
        %1183 = vmatmul.mubr.f32.gmra.mrb[0].mxu0 %v754
        %v1184 = vpop.f32.mrb[0].mxu0
        %v1185 = vadd.f32 %v960, %v1184
        %v1186 = vpop.f32.mrb[0].mxu0
        %1187 = vmatprep.mubr.f32.mxu0 %v564
        %1188 = vmatmul.mubr.f32.gmra.mrb[0].mxu0 %v757
        %v1189 = vpop.f32.mrb[0].mxu0
        %v1190 = vadd.f32 %v965, %v1189
        %v1191 = vpop.f32.mrb[0].mxu0
        %1192 = vmatprep.mubr.f32.mxu0 %v473
        %1193 = vmatmul.mubr.f32.gmra.mrb[0].mxu0 %v759
        %v1194 = vpop.f32.mrb[0].mxu0
        %v1195 = vadd.f32 %v970, %v1194
        %v1196 = vpop.f32.mrb[0].mxu0
        %1197 = vmatprep.mubr.f32.mxu0 %v565
        %1198 = vmatmul.mubr.f32.gmra.mrb[0].mxu0 %v762
        %v1199 = vpop.f32.mrb[0].mxu0
        %v1200 = vadd.f32 %v975, %v1199
        %v1201 = vpop.f32.mrb[0].mxu0
        %1202 = vmatprep.mubr.f32.mxu0 %v476
        %1203 = vmatmul.mubr.f32.gmra.mrb[0].mxu0 %v764
        %v1204 = vpop.f32.mrb[0].mxu0
        %v1205 = vadd.f32 %v980, %v1204
        %v1206 = vpop.f32.mrb[0].mxu0
        %1207 = vmatprep.mubr.f32.mxu0 %v566
        %1208 = vmatmul.mubr.f32.gmra.mrb[0].mxu0 %v767
        %v1209 = vpop.f32.mrb[0].mxu0
        %v1210 = vadd.f32 %v985, %v1209
        %v1211 = vpop.f32.mrb[0].mxu0
        %1212 = vmatprep.mubr.f32.mxu0 %v479
        %1213 = vmatmul.mubr.f32.gmra.mrb[0].mxu0 %v769
        %v1214 = vpop.f32.mrb[0].mxu0
        %v1215 = vadd.f32 %v990, %v1214
        %v1216 = vpop.f32.mrb[0].mxu0
        %1217 = vmatprep.mubr.f32.mxu0 %v567
        %1218 = vmatmul.mubr.f32.gmra.mrb[0].mxu0 %v772
        %v1219 = vpop.f32.mrb[0].mxu0
        %v1220 = vadd.f32 %v995, %v1219
        %v1221 = vpop.f32.mrb[0].mxu0
        %1222 = vmatprep.mubr.f32.mxu0 %v482
        %1223 = vmatmul.mubr.f32.gmra.mrb[0].mxu0 %v774
        %v1224 = vpop.f32.mrb[0].mxu0
        %v1225 = vadd.f32 %v1000, %v1224
        %v1226 = vpop.f32.mrb[0].mxu0
        %1227 = vmatprep.mubr.f32.mxu0 %v568
        %1228 = vmatmul.mubr.f32.gmra.mrb[0].mxu0 %v777
        %v1229 = vpop.f32.mrb[0].mxu0
        %v1230 = vadd.f32 %v1005, %v1229
        %v1231 = vpop.f32.mrb[0].mxu0
        %1232 = vmatprep.mubr.f32.mxu0 %v485
        %1233 = vmatmul.mubr.f32.gmra.mrb[0].mxu0 %v779
        %v1234 = vpop.f32.mrb[0].mxu0
        %v1235 = vadd.f32 %v1010, %v1234
        %v1236 = vpop.f32.mrb[0].mxu0
        %1237 = vmatprep.mubr.f32.mxu0 %v569
        %1238 = vmatmul.mubr.f32.gmra.mrb[0].mxu0 %v782
        %v1239 = vpop.f32.mrb[0].mxu0
        %v1240 = vadd.f32 %v1015, %v1239
        %v1241 = vpop.f32.mrb[0].mxu0
        %1242 = vmatprep.mubr.f32.mxu0 %v488
        %1243 = vmatmul.mubr.f32.gmra.mrb[0].mxu0 %v784
        %v1244 = vpop.f32.mrb[0].mxu0
        %v1245 = vadd.f32 %v1020, %v1244
        %v1246 = vpop.f32.mrb[0].mxu0
        %1247 = vmatprep.mubr.f32.mxu0 %v570
        %1248 = vmatmul.mubr.f32.gmra.mrb[0].mxu0 %v787
        %v1249 = vpop.f32.mrb[0].mxu0
        %v1250 = vadd.f32 %v1025, %v1249
        %v1251 = vpop.f32.mrb[0].mxu0
        %1252 = vmatprep.mubr.f32.mxu0 %v491
        %1253 = vmatmul.mubr.f32.gmra.mrb[0].mxu0 %v789
        %v1254 = vpop.f32.mrb[0].mxu0
        %v1255 = vadd.f32 %v1030, %v1254
        %v1256 = vpop.f32.mrb[0].mxu0
        %1257 = vmatprep.mubr.f32.mxu0 %v571
        %1258 = vmatmul.mubr.f32.gmra.mrb[0].mxu0 %v792
        %v1259 = vpop.f32.mrb[0].mxu0
        %v1260 = vadd.f32 %v1035, %v1259
        %v1261 = vpop.f32.mrb[0].mxu0
        %1262 = vmatprep.mubr.f32.mxu0 %v494
        %1263 = vmatmul.mubr.f32.gmra.mrb[0].mxu0 %v794
        %v1264 = vpop.f32.mrb[0].mxu0
        %v1265 = vadd.f32 %v1040, %v1264
        %v1266 = vpop.f32.mrb[0].mxu0
        %1267 = vmatprep.mubr.f32.mxu0 %v572
        %1268 = vmatmul.mubr.f32.gmra.mrb[0].mxu0 %v797
        %v1269 = vpop.f32.mrb[0].mxu0
        %v1270 = vadd.f32 %v1045, %v1269
        %v1271 = vpop.f32.mrb[0].mxu0
        %1272 = vmatprep.mubr.f32.mxu0 %v497
        %1273 = vmatmul.mubr.f32.gmra.mrb[0].mxu0 %v799
        %v1274 = vpop.f32.mrb[0].mxu0
        %v1275 = vadd.f32 %v1050, %v1274
        %v1276 = vpop.f32.mrb[0].mxu0
        %1277 = vmatprep.mubr.f32.mxu0 %v573
        %1278 = vmatmul.mubr.f32.gmra.mrb[0].mxu0 %v802
        %v1279 = vpop.f32.mrb[0].mxu0
        %v1280 = vadd.f32 %v1055, %v1279
        %v1281 = vpop.f32.mrb[0].mxu0
        %1282 = vmatprep.mubr.f32.mxu0 %v500
        %1283 = vmatmul.mubr.f32.gmra.mrb[0].mxu0 %v804
        %v1284 = vpop.f32.mrb[0].mxu0
        %v1285 = vadd.f32 %v1060, %v1284
        %v1286 = vpop.f32.mrb[0].mxu0
        %1287 = vmatprep.mubr.f32.mxu0 %v574
        %1288 = vmatmul.mubr.f32.gmra.mrb[0].mxu0 %v807
        %v1289 = vpop.f32.mrb[0].mxu0
        %v1290 = vadd.f32 %v1065, %v1289
        %v1291 = vpop.f32.mrb[0].mxu0
        %1292 = vmatprep.mubr.f32.mxu0 %v503
        %1293 = vmatmul.mubr.f32.gmra.mrb[0].mxu0 %v809
        %v1294 = vpop.f32.mrb[0].mxu0
        %v1295 = vadd.f32 %v1070, %v1294
        %v1296 = vpop.f32.mrb[0].mxu0
        %1297 = vmatprep.mubr.f32.mxu0 %v575
        %1298 = vmatmul.mubr.f32.gmra.mrb[0].mxu0 %v812
        %v1299 = vpop.f32.mrb[0].mxu0
        %v1300 = vadd.f32 %v1075, %v1299
        %v1301 = vpop.f32.mrb[0].mxu0
        %1302 = vmatprep.mubr.f32.mxu0 %v506
        %1303 = vmatmul.mubr.f32.gmra.mrb[0].mxu0 %v814
        %v1304 = vpop.f32.mrb[0].mxu0
        %v1305 = vadd.f32 %v1080, %v1304
        %v1306 = vpop.f32.mrb[0].mxu0
        %1307 = vmatprep.mubr.f32.mxu0 %v576
        %1308 = vmatmul.mubr.f32.gmra.mrb[0].mxu0 %v817
        %v1309 = vpop.f32.mrb[0].mxu0
        %v1310 = vadd.f32 %v1085, %v1309
        %v1311 = vpop.f32.mrb[0].mxu0
        %1312 = vmatprep.mubr.f32.mxu0 %v509
        %1313 = vmatmul.mubr.f32.gmra.mrb[0].mxu0 %v819
        %v1314 = vpop.f32.mrb[0].mxu0
        %v1315 = vadd.f32 %v1090, %v1314
        %v1316 = vpop.f32.mrb[0].mxu0
        %1317 = vdwg.mxu0
        %1318 = vmatprep.subr.mxu0 0.0
        %1319 = vmatpush1.msra.mxu0 %v346
        %1320 = vmatprep.subr.mxu0 0.0
        %1321 = vmatpush1.msra.mxu0 %v347
        %1322 = vmatprep.subr.mxu0 0.0
        %1323 = vmatpush1.msra.mxu0 %v348
        %1324 = vmatprep.subr.mxu0 0.0
        %1325 = vmatpush1.msra.mxu0 %v349
        %1326 = vmatprep.subr.mxu0 0.0
        %1327 = vmatpush1.msra.mxu0 %v350
        %1328 = vmatprep.subr.mxu0 0.0
        %1329 = vmatpush1.msra.mxu0 %v351
        %1330 = vmatprep.subr.mxu0 0.0
        %1331 = vmatpush1.msra.mxu0 %v352
        %1332 = vmatprep.subr.mxu0 0.0
        %1333 = vmatpush1.msra.mxu0 %v353
        %1334 = vmatprep.subr.mxu0 0.0
        %1335 = vmatpush1.msra.mxu0 %v354
        %1336 = vmatprep.subr.mxu0 0.0
        %1337 = vmatpush1.msra.mxu0 %v355
        %1338 = vmatprep.subr.mxu0 0.0
        %1339 = vmatpush1.msra.mxu0 %v356
        %1340 = vmatprep.subr.mxu0 0.0
        %1341 = vmatpush1.msra.mxu0 %v357
        %1342 = vmatprep.subr.mxu0 0.0
        %1343 = vmatpush1.msra.mxu0 %v358
        %1344 = vmatprep.subr.mxu0 0.0
        %1345 = vmatpush1.msra.mxu0 %v359
        %1346 = vmatprep.subr.mxu0 0.0
        %1347 = vmatpush1.msra.mxu0 %v360
        %1348 = vmatprep.subr.mxu0 0.0
        %1349 = vmatpush1.msra.mxu0 %v361
        %1350 = vmatprep.subr.mxu0 0.0
        %1351 = vmatpush1.msra.mxu0 %v362
        %1352 = vmatprep.subr.mxu0 0.0
        %1353 = vmatpush1.msra.mxu0 %v363
        %1354 = vmatprep.subr.mxu0 0.0
        %1355 = vmatpush1.msra.mxu0 %v364
        %1356 = vmatprep.subr.mxu0 0.0
        %1357 = vmatpush1.msra.mxu0 %v365
        %1358 = vmatprep.subr.mxu0 0.0
        %1359 = vmatpush1.msra.mxu0 %v366
        %1360 = vmatprep.subr.mxu0 0.0
        %1361 = vmatpush1.msra.mxu0 %v367
        %1362 = vmatprep.subr.mxu0 0.0
        %1363 = vmatpush1.msra.mxu0 %v368
        %1364 = vmatprep.subr.mxu0 0.0
        %1365 = vmatpush1.msra.mxu0 %v369
        %1366 = vmatprep.subr.mxu0 0.0
        %1367 = vmatpush1.msra.mxu0 %v370
        %1368 = vmatprep.subr.mxu0 0.0
        %1369 = vmatpush1.msra.mxu0 %v371
        %1370 = vmatprep.subr.mxu0 0.0
        %1371 = vmatpush1.msra.mxu0 %v372
        %1372 = vmatprep.subr.mxu0 0.0
        %1373 = vmatpush1.msra.mxu0 %v373
        %1374 = vmatprep.subr.mxu0 0.0
        %1375 = vmatpush1.msra.mxu0 %v374
        %1376 = vmatprep.subr.mxu0 0.0
        %1377 = vmatpush1.msra.mxu0 %v375
        %1378 = vmatprep.subr.mxu0 0.0
        %1379 = vmatpush1.msra.mxu0 %v376
        %1380 = vmatprep.subr.mxu0 0.0
        %1381 = vmatpush1.msra.mxu0 %v377
        %1382 = vmatprep.mubr.f32.mxu0 %v747
        %1383 = vmatmul.mubr.f32.gmra.mrb[0].mxu0 %v634
        %v1384 = vpop.f32.mrb[0].mxu0
        %v1385 = vadd.f32 %v1160, %v1384
        %v1386 = vpop.f32.mrb[0].mxu0
        %1387 = vmatprep.mubr.f32.mxu0 %v749
        %1388 = vmatmul.mubr.f32.gmra.mrb[0].mxu0 %v636
        %v1389 = vpop.f32.mrb[0].mxu0
        %v1390 = vadd.f32 %v1165, %v1389
        %v1391 = vpop.f32.mrb[0].mxu0
        %1392 = vmatprep.mubr.f32.mxu0 %v752
        %1393 = vmatmul.mubr.f32.gmra.mrb[0].mxu0 %v639
        %v1394 = vpop.f32.mrb[0].mxu0
        %v1395 = vadd.f32 %v1170, %v1394
        %v1396 = vpop.f32.mrb[0].mxu0
        %1397 = vmatprep.mubr.f32.mxu0 %v754
        %1398 = vmatmul.mubr.f32.gmra.mrb[0].mxu0 %v641
        %v1399 = vpop.f32.mrb[0].mxu0
        %v1400 = vadd.f32 %v1175, %v1399
        %v1401 = vpop.f32.mrb[0].mxu0
        %1402 = vmatprep.mubr.f32.mxu0 %v757
        %1403 = vmatmul.mubr.f32.gmra.mrb[0].mxu0 %v644
        %v1404 = vpop.f32.mrb[0].mxu0
        %v1405 = vadd.f32 %v1180, %v1404
        %v1406 = vpop.f32.mrb[0].mxu0
        %1407 = vmatprep.mubr.f32.mxu0 %v759
        %1408 = vmatmul.mubr.f32.gmra.mrb[0].mxu0 %v646
        %v1409 = vpop.f32.mrb[0].mxu0
        %v1410 = vadd.f32 %v1185, %v1409
        %v1411 = vpop.f32.mrb[0].mxu0
        %1412 = vmatprep.mubr.f32.mxu0 %v762
        %1413 = vmatmul.mubr.f32.gmra.mrb[0].mxu0 %v649
        %v1414 = vpop.f32.mrb[0].mxu0
        %v1415 = vadd.f32 %v1190, %v1414
        %v1416 = vpop.f32.mrb[0].mxu0
        %1417 = vmatprep.mubr.f32.mxu0 %v764
        %1418 = vmatmul.mubr.f32.gmra.mrb[0].mxu0 %v651
        %v1419 = vpop.f32.mrb[0].mxu0
        %v1420 = vadd.f32 %v1195, %v1419
        %v1421 = vpop.f32.mrb[0].mxu0
        %1422 = vmatprep.mubr.f32.mxu0 %v767
        %1423 = vmatmul.mubr.f32.gmra.mrb[0].mxu0 %v654
        %v1424 = vpop.f32.mrb[0].mxu0
        %v1425 = vadd.f32 %v1200, %v1424
        %v1426 = vpop.f32.mrb[0].mxu0
        %1427 = vmatprep.mubr.f32.mxu0 %v769
        %1428 = vmatmul.mubr.f32.gmra.mrb[0].mxu0 %v656
        %v1429 = vpop.f32.mrb[0].mxu0
        %v1430 = vadd.f32 %v1205, %v1429
        %v1431 = vpop.f32.mrb[0].mxu0
        %1432 = vmatprep.mubr.f32.mxu0 %v772
        %1433 = vmatmul.mubr.f32.gmra.mrb[0].mxu0 %v659
        %v1434 = vpop.f32.mrb[0].mxu0
        %v1435 = vadd.f32 %v1210, %v1434
        %v1436 = vpop.f32.mrb[0].mxu0
        %1437 = vmatprep.mubr.f32.mxu0 %v774
        %1438 = vmatmul.mubr.f32.gmra.mrb[0].mxu0 %v661
        %v1439 = vpop.f32.mrb[0].mxu0
        %v1440 = vadd.f32 %v1215, %v1439
        %v1441 = vpop.f32.mrb[0].mxu0
        %1442 = vmatprep.mubr.f32.mxu0 %v777
        %1443 = vmatmul.mubr.f32.gmra.mrb[0].mxu0 %v664
        %v1444 = vpop.f32.mrb[0].mxu0
        %v1445 = vadd.f32 %v1220, %v1444
        %v1446 = vpop.f32.mrb[0].mxu0
        %1447 = vmatprep.mubr.f32.mxu0 %v779
        %1448 = vmatmul.mubr.f32.gmra.mrb[0].mxu0 %v666
        %v1449 = vpop.f32.mrb[0].mxu0
        %v1450 = vadd.f32 %v1225, %v1449
        %v1451 = vpop.f32.mrb[0].mxu0
        %1452 = vmatprep.mubr.f32.mxu0 %v782
        %1453 = vmatmul.mubr.f32.gmra.mrb[0].mxu0 %v669
        %v1454 = vpop.f32.mrb[0].mxu0
        %v1455 = vadd.f32 %v1230, %v1454
        %v1456 = vpop.f32.mrb[0].mxu0
        %1457 = vmatprep.mubr.f32.mxu0 %v784
        %1458 = vmatmul.mubr.f32.gmra.mrb[0].mxu0 %v671
        %v1459 = vpop.f32.mrb[0].mxu0
        %v1460 = vadd.f32 %v1235, %v1459
        %v1461 = vpop.f32.mrb[0].mxu0
        %1462 = vmatprep.mubr.f32.mxu0 %v787
        %1463 = vmatmul.mubr.f32.gmra.mrb[0].mxu0 %v674
        %v1464 = vpop.f32.mrb[0].mxu0
        %v1465 = vadd.f32 %v1240, %v1464
        %v1466 = vpop.f32.mrb[0].mxu0
        %1467 = vmatprep.mubr.f32.mxu0 %v789
        %1468 = vmatmul.mubr.f32.gmra.mrb[0].mxu0 %v676
        %v1469 = vpop.f32.mrb[0].mxu0
        %v1470 = vadd.f32 %v1245, %v1469
        %v1471 = vpop.f32.mrb[0].mxu0
        %1472 = vmatprep.mubr.f32.mxu0 %v792
        %1473 = vmatmul.mubr.f32.gmra.mrb[0].mxu0 %v679
        %v1474 = vpop.f32.mrb[0].mxu0
        %v1475 = vadd.f32 %v1250, %v1474
        %v1476 = vpop.f32.mrb[0].mxu0
        %1477 = vmatprep.mubr.f32.mxu0 %v794
        %1478 = vmatmul.mubr.f32.gmra.mrb[0].mxu0 %v681
        %v1479 = vpop.f32.mrb[0].mxu0
        %v1480 = vadd.f32 %v1255, %v1479
        %v1481 = vpop.f32.mrb[0].mxu0
        %1482 = vmatprep.mubr.f32.mxu0 %v797
        %1483 = vmatmul.mubr.f32.gmra.mrb[0].mxu0 %v684
        %v1484 = vpop.f32.mrb[0].mxu0
        %v1485 = vadd.f32 %v1260, %v1484
        %v1486 = vpop.f32.mrb[0].mxu0
        %1487 = vmatprep.mubr.f32.mxu0 %v799
        %1488 = vmatmul.mubr.f32.gmra.mrb[0].mxu0 %v686
        %v1489 = vpop.f32.mrb[0].mxu0
        %v1490 = vadd.f32 %v1265, %v1489
        %v1491 = vpop.f32.mrb[0].mxu0
        %1492 = vmatprep.mubr.f32.mxu0 %v802
        %1493 = vmatmul.mubr.f32.gmra.mrb[0].mxu0 %v689
        %v1494 = vpop.f32.mrb[0].mxu0
        %v1495 = vadd.f32 %v1270, %v1494
        %v1496 = vpop.f32.mrb[0].mxu0
        %1497 = vmatprep.mubr.f32.mxu0 %v804
        %1498 = vmatmul.mubr.f32.gmra.mrb[0].mxu0 %v691
        %v1499 = vpop.f32.mrb[0].mxu0
        %v1500 = vadd.f32 %v1275, %v1499
        %v1501 = vpop.f32.mrb[0].mxu0
        %1502 = vmatprep.mubr.f32.mxu0 %v807
        %1503 = vmatmul.mubr.f32.gmra.mrb[0].mxu0 %v694
        %v1504 = vpop.f32.mrb[0].mxu0
        %v1505 = vadd.f32 %v1280, %v1504
        %v1506 = vpop.f32.mrb[0].mxu0
        %1507 = vmatprep.mubr.f32.mxu0 %v809
        %1508 = vmatmul.mubr.f32.gmra.mrb[0].mxu0 %v696
        %v1509 = vpop.f32.mrb[0].mxu0
        %v1510 = vadd.f32 %v1285, %v1509
        %v1511 = vpop.f32.mrb[0].mxu0
        %1512 = vmatprep.mubr.f32.mxu0 %v812
        %1513 = vmatmul.mubr.f32.gmra.mrb[0].mxu0 %v699
        %v1514 = vpop.f32.mrb[0].mxu0
        %v1515 = vadd.f32 %v1290, %v1514
        %v1516 = vpop.f32.mrb[0].mxu0
        %1517 = vmatprep.mubr.f32.mxu0 %v814
        %1518 = vmatmul.mubr.f32.gmra.mrb[0].mxu0 %v701
        %v1519 = vpop.f32.mrb[0].mxu0
        %v1520 = vadd.f32 %v1295, %v1519
        %v1521 = vpop.f32.mrb[0].mxu0
        %1522 = vmatprep.mubr.f32.mxu0 %v817
        %1523 = vmatmul.mubr.f32.gmra.mrb[0].mxu0 %v704
        %v1524 = vpop.f32.mrb[0].mxu0
        %v1525 = vadd.f32 %v1300, %v1524
        %v1526 = vpop.f32.mrb[0].mxu0
        %1527 = vmatprep.mubr.f32.mxu0 %v819
        %1528 = vmatmul.mubr.f32.gmra.mrb[0].mxu0 %v706
        %v1529 = vpop.f32.mrb[0].mxu0
        %v1530 = vadd.f32 %v1305, %v1529
        %v1531 = vpop.f32.mrb[0].mxu0
        %1532 = vmatprep.mubr.f32.mxu0 %v863
        %1533 = vmatmul.mubr.f32.gmra.mrb[0].mxu0 %v856
        %v1534 = vpop.f32.mrb[0].mxu0
        %v1535 = vadd.f32 %v1310, %v1534
        %v1536 = vpop.f32.mrb[0].mxu0
        %1537 = vmatprep.mubr.f32.mxu0 %v865
        %1538 = vmatmul.mubr.f32.gmra.mrb[0].mxu0 %v858
        %v1539 = vpop.f32.mrb[0].mxu0
        %v1540 = vadd.f32 %v1315, %v1539
        %v1541 = vpop.f32.mrb[0].mxu0
        %1542 = vdwg.mxu0
        %1543 = vmatprep.subr.mxu0 0.0
        %1544 = vmatpush1.msra.mxu0 %v378
        %1545 = vmatprep.subr.mxu0 0.0
        %1546 = vmatpush1.msra.mxu0 %v379
        %1547 = vmatprep.subr.mxu0 0.0
        %1548 = vmatpush1.msra.mxu0 %v380
        %1549 = vmatprep.subr.mxu0 0.0
        %1550 = vmatpush1.msra.mxu0 %v381
        %1551 = vmatprep.subr.mxu0 0.0
        %1552 = vmatpush1.msra.mxu0 %v382
        %1553 = vmatprep.subr.mxu0 0.0
        %1554 = vmatpush1.msra.mxu0 %v383
        %1555 = vmatprep.subr.mxu0 0.0
        %1556 = vmatpush1.msra.mxu0 %v384
        %1557 = vmatprep.subr.mxu0 0.0
        %1558 = vmatpush1.msra.mxu0 %v385
        %1559 = vmatprep.subr.mxu0 0.0
        %1560 = vmatpush1.msra.mxu0 %v386
        %1561 = vmatprep.subr.mxu0 0.0
        %1562 = vmatpush1.msra.mxu0 %v387
        %1563 = vmatprep.subr.mxu0 0.0
        %1564 = vmatpush1.msra.mxu0 %v388
        %1565 = vmatprep.subr.mxu0 0.0
        %1566 = vmatpush1.msra.mxu0 %v389
        %1567 = vmatprep.subr.mxu0 0.0
        %1568 = vmatpush1.msra.mxu0 %v390
        %1569 = vmatprep.subr.mxu0 0.0
        %1570 = vmatpush1.msra.mxu0 %v391
        %1571 = vmatprep.subr.mxu0 0.0
        %1572 = vmatpush1.msra.mxu0 %v392
        %1573 = vmatprep.subr.mxu0 0.0
        %1574 = vmatpush1.msra.mxu0 %v393
        %1575 = vmatprep.subr.mxu0 0.0
        %1576 = vmatpush1.msra.mxu0 %v394
        %1577 = vmatprep.subr.mxu0 0.0
        %1578 = vmatpush1.msra.mxu0 %v395
        %1579 = vmatprep.subr.mxu0 0.0
        %1580 = vmatpush1.msra.mxu0 %v396
        %1581 = vmatprep.subr.mxu0 0.0
        %1582 = vmatpush1.msra.mxu0 %v397
        %1583 = vmatprep.subr.mxu0 0.0
        %1584 = vmatpush1.msra.mxu0 %v398
        %1585 = vmatprep.subr.mxu0 0.0
        %1586 = vmatpush1.msra.mxu0 %v399
        %1587 = vmatprep.subr.mxu0 0.0
        %1588 = vmatpush1.msra.mxu0 %v400
        %1589 = vmatprep.subr.mxu0 0.0
        %1590 = vmatpush1.msra.mxu0 %v401
        %1591 = vmatprep.subr.mxu0 0.0
        %1592 = vmatpush1.msra.mxu0 %v402
        %1593 = vmatprep.subr.mxu0 0.0
        %1594 = vmatpush1.msra.mxu0 %v403
        %1595 = vmatprep.subr.mxu0 0.0
        %1596 = vmatpush1.msra.mxu0 %v404
        %1597 = vmatprep.subr.mxu0 0.0
        %1598 = vmatpush1.msra.mxu0 %v405
        %1599 = vmatprep.subr.mxu0 0.0
        %1600 = vmatpush1.msra.mxu0 %v406
        %1601 = vmatprep.subr.mxu0 0.0
        %1602 = vmatpush1.msra.mxu0 %v407
        %1603 = vmatprep.subr.mxu0 0.0
        %1604 = vmatpush1.msra.mxu0 %v408
        %1605 = vmatprep.subr.mxu0 0.0
        %1606 = vmatpush1.msra.mxu0 %v409
        %1607 = vmatprep.mubr.f32.mxu0 %v639
        %1608 = vmatmul.mubr.f32.gmra.mrb[0].mxu0 %v562
        %v1609 = vpop.f32.mrb[0].mxu0
        %v1610 = vadd.f32 %v1385, %v1609
        %v1611 = vpop.f32.mrb[0].mxu0
        %1612 = vmatprep.mubr.f32.mxu0 %v641
        %1613 = vmatmul.mubr.f32.gmra.mrb[0].mxu0 %v467
        %v1614 = vpop.f32.mrb[0].mxu0
        %v1615 = vadd.f32 %v1390, %v1614
        %v1616 = vpop.f32.mrb[0].mxu0
        %1617 = vmatprep.mubr.f32.mxu0 %v644
        %1618 = vmatmul.mubr.f32.gmra.mrb[0].mxu0 %v563
        %v1619 = vpop.f32.mrb[0].mxu0
        %v1620 = vadd.f32 %v1395, %v1619
        %v1621 = vpop.f32.mrb[0].mxu0
        %1622 = vmatprep.mubr.f32.mxu0 %v646
        %1623 = vmatmul.mubr.f32.gmra.mrb[0].mxu0 %v470
        %v1624 = vpop.f32.mrb[0].mxu0
        %v1625 = vadd.f32 %v1400, %v1624
        %v1626 = vpop.f32.mrb[0].mxu0
        %1627 = vmatprep.mubr.f32.mxu0 %v649
        %1628 = vmatmul.mubr.f32.gmra.mrb[0].mxu0 %v564
        %v1629 = vpop.f32.mrb[0].mxu0
        %v1630 = vadd.f32 %v1405, %v1629
        %v1631 = vpop.f32.mrb[0].mxu0
        %1632 = vmatprep.mubr.f32.mxu0 %v651
        %1633 = vmatmul.mubr.f32.gmra.mrb[0].mxu0 %v473
        %v1634 = vpop.f32.mrb[0].mxu0
        %v1635 = vadd.f32 %v1410, %v1634
        %v1636 = vpop.f32.mrb[0].mxu0
        %1637 = vmatprep.mubr.f32.mxu0 %v654
        %1638 = vmatmul.mubr.f32.gmra.mrb[0].mxu0 %v565
        %v1639 = vpop.f32.mrb[0].mxu0
        %v1640 = vadd.f32 %v1415, %v1639
        %v1641 = vpop.f32.mrb[0].mxu0
        %1642 = vmatprep.mubr.f32.mxu0 %v656
        %1643 = vmatmul.mubr.f32.gmra.mrb[0].mxu0 %v476
        %v1644 = vpop.f32.mrb[0].mxu0
        %v1645 = vadd.f32 %v1420, %v1644
        %v1646 = vpop.f32.mrb[0].mxu0
        %1647 = vmatprep.mubr.f32.mxu0 %v659
        %1648 = vmatmul.mubr.f32.gmra.mrb[0].mxu0 %v566
        %v1649 = vpop.f32.mrb[0].mxu0
        %v1650 = vadd.f32 %v1425, %v1649
        %v1651 = vpop.f32.mrb[0].mxu0
        %1652 = vmatprep.mubr.f32.mxu0 %v661
        %1653 = vmatmul.mubr.f32.gmra.mrb[0].mxu0 %v479
        %v1654 = vpop.f32.mrb[0].mxu0
        %v1655 = vadd.f32 %v1430, %v1654
        %v1656 = vpop.f32.mrb[0].mxu0
        %1657 = vmatprep.mubr.f32.mxu0 %v664
        %1658 = vmatmul.mubr.f32.gmra.mrb[0].mxu0 %v567
        %v1659 = vpop.f32.mrb[0].mxu0
        %v1660 = vadd.f32 %v1435, %v1659
        %v1661 = vpop.f32.mrb[0].mxu0
        %1662 = vmatprep.mubr.f32.mxu0 %v666
        %1663 = vmatmul.mubr.f32.gmra.mrb[0].mxu0 %v482
        %v1664 = vpop.f32.mrb[0].mxu0
        %v1665 = vadd.f32 %v1440, %v1664
        %v1666 = vpop.f32.mrb[0].mxu0
        %1667 = vmatprep.mubr.f32.mxu0 %v669
        %1668 = vmatmul.mubr.f32.gmra.mrb[0].mxu0 %v568
        %v1669 = vpop.f32.mrb[0].mxu0
        %v1670 = vadd.f32 %v1445, %v1669
        %v1671 = vpop.f32.mrb[0].mxu0
        %1672 = vmatprep.mubr.f32.mxu0 %v671
        %1673 = vmatmul.mubr.f32.gmra.mrb[0].mxu0 %v485
        %v1674 = vpop.f32.mrb[0].mxu0
        %v1675 = vadd.f32 %v1450, %v1674
        %v1676 = vpop.f32.mrb[0].mxu0
        %1677 = vmatprep.mubr.f32.mxu0 %v674
        %1678 = vmatmul.mubr.f32.gmra.mrb[0].mxu0 %v569
        %v1679 = vpop.f32.mrb[0].mxu0
        %v1680 = vadd.f32 %v1455, %v1679
        %v1681 = vpop.f32.mrb[0].mxu0
        %1682 = vmatprep.mubr.f32.mxu0 %v676
        %1683 = vmatmul.mubr.f32.gmra.mrb[0].mxu0 %v488
        %v1684 = vpop.f32.mrb[0].mxu0
        %v1685 = vadd.f32 %v1460, %v1684
        %v1686 = vpop.f32.mrb[0].mxu0
        %1687 = vmatprep.mubr.f32.mxu0 %v679
        %1688 = vmatmul.mubr.f32.gmra.mrb[0].mxu0 %v570
        %v1689 = vpop.f32.mrb[0].mxu0
        %v1690 = vadd.f32 %v1465, %v1689
        %v1691 = vpop.f32.mrb[0].mxu0
        %1692 = vmatprep.mubr.f32.mxu0 %v681
        %1693 = vmatmul.mubr.f32.gmra.mrb[0].mxu0 %v491
        %v1694 = vpop.f32.mrb[0].mxu0
        %v1695 = vadd.f32 %v1470, %v1694
        %v1696 = vpop.f32.mrb[0].mxu0
        %1697 = vmatprep.mubr.f32.mxu0 %v684
        %1698 = vmatmul.mubr.f32.gmra.mrb[0].mxu0 %v571
        %v1699 = vpop.f32.mrb[0].mxu0
        %v1700 = vadd.f32 %v1475, %v1699
        %v1701 = vpop.f32.mrb[0].mxu0
        %1702 = vmatprep.mubr.f32.mxu0 %v686
        %1703 = vmatmul.mubr.f32.gmra.mrb[0].mxu0 %v494
        %v1704 = vpop.f32.mrb[0].mxu0
        %v1705 = vadd.f32 %v1480, %v1704
        %v1706 = vpop.f32.mrb[0].mxu0
        %1707 = vmatprep.mubr.f32.mxu0 %v689
        %1708 = vmatmul.mubr.f32.gmra.mrb[0].mxu0 %v572
        %v1709 = vpop.f32.mrb[0].mxu0
        %v1710 = vadd.f32 %v1485, %v1709
        %v1711 = vpop.f32.mrb[0].mxu0
        %1712 = vmatprep.mubr.f32.mxu0 %v691
        %1713 = vmatmul.mubr.f32.gmra.mrb[0].mxu0 %v497
        %v1714 = vpop.f32.mrb[0].mxu0
        %v1715 = vadd.f32 %v1490, %v1714
        %v1716 = vpop.f32.mrb[0].mxu0
        %1717 = vmatprep.mubr.f32.mxu0 %v694
        %1718 = vmatmul.mubr.f32.gmra.mrb[0].mxu0 %v573
        %v1719 = vpop.f32.mrb[0].mxu0
        %v1720 = vadd.f32 %v1495, %v1719
        %v1721 = vpop.f32.mrb[0].mxu0
        %1722 = vmatprep.mubr.f32.mxu0 %v696
        %1723 = vmatmul.mubr.f32.gmra.mrb[0].mxu0 %v500
        %v1724 = vpop.f32.mrb[0].mxu0
        %v1725 = vadd.f32 %v1500, %v1724
        %v1726 = vpop.f32.mrb[0].mxu0
        %1727 = vmatprep.mubr.f32.mxu0 %v699
        %1728 = vmatmul.mubr.f32.gmra.mrb[0].mxu0 %v574
        %v1729 = vpop.f32.mrb[0].mxu0
        %v1730 = vadd.f32 %v1505, %v1729
        %v1731 = vpop.f32.mrb[0].mxu0
        %1732 = vmatprep.mubr.f32.mxu0 %v701
        %1733 = vmatmul.mubr.f32.gmra.mrb[0].mxu0 %v503
        %v1734 = vpop.f32.mrb[0].mxu0
        %v1735 = vadd.f32 %v1510, %v1734
        %v1736 = vpop.f32.mrb[0].mxu0
        %1737 = vmatprep.mubr.f32.mxu0 %v704
        %1738 = vmatmul.mubr.f32.gmra.mrb[0].mxu0 %v575
        %v1739 = vpop.f32.mrb[0].mxu0
        %v1740 = vadd.f32 %v1515, %v1739
        %v1741 = vpop.f32.mrb[0].mxu0
        %1742 = vmatprep.mubr.f32.mxu0 %v706
        %1743 = vmatmul.mubr.f32.gmra.mrb[0].mxu0 %v506
        %v1744 = vpop.f32.mrb[0].mxu0
        %v1745 = vadd.f32 %v1520, %v1744
        %v1746 = vpop.f32.mrb[0].mxu0
        %1747 = vmatprep.mubr.f32.mxu0 %v856
        %1748 = vmatmul.mubr.f32.gmra.mrb[0].mxu0 %v576
        %v1749 = vpop.f32.mrb[0].mxu0
        %v1750 = vadd.f32 %v1525, %v1749
        %v1751 = vpop.f32.mrb[0].mxu0
        %1752 = vmatprep.mubr.f32.mxu0 %v858
        %1753 = vmatmul.mubr.f32.gmra.mrb[0].mxu0 %v509
        %v1754 = vpop.f32.mrb[0].mxu0
        %v1755 = vadd.f32 %v1530, %v1754
        %v1756 = vpop.f32.mrb[0].mxu0
        %1757 = vmatprep.mubr.f32.mxu0 %v629
        %1758 = vmatmul.mubr.f32.gmra.mrb[0].mxu0 %v560
        %v1759 = vpop.f32.mrb[0].mxu0
        %v1760 = vadd.f32 %v1535, %v1759
        %v1761 = vpop.f32.mrb[0].mxu0
        %1762 = vmatprep.mubr.f32.mxu0 %v631
        %1763 = vmatmul.mubr.f32.gmra.mrb[0].mxu0 %v461
        %v1764 = vpop.f32.mrb[0].mxu0
        %v1765 = vadd.f32 %v1540, %v1764
        %v1766 = vpop.f32.mrb[0].mxu0
        %1767 = vdwg.mxu0
        %1768 = vmatprep.subr.mxu0 0.0
        %1769 = vmatpush1.msra.mxu0 %v410
        %1770 = vmatprep.subr.mxu0 0.0
        %1771 = vmatpush1.msra.mxu0 %v411
        %1772 = vmatprep.subr.mxu0 0.0
        %1773 = vmatpush1.msra.mxu0 %v412
        %1774 = vmatprep.subr.mxu0 0.0
        %1775 = vmatpush1.msra.mxu0 %v413
        %1776 = vmatprep.subr.mxu0 0.0
        %1777 = vmatpush1.msra.mxu0 %v414
        %1778 = vmatprep.subr.mxu0 0.0
        %1779 = vmatpush1.msra.mxu0 %v415
        %1780 = vmatprep.subr.mxu0 0.0
        %1781 = vmatpush1.msra.mxu0 %v416
        %1782 = vmatprep.subr.mxu0 0.0
        %1783 = vmatpush1.msra.mxu0 %v417
        %1784 = vmatprep.subr.mxu0 0.0
        %1785 = vmatpush1.msra.mxu0 %v418
        %1786 = vmatprep.subr.mxu0 0.0
        %1787 = vmatpush1.msra.mxu0 %v419
        %1788 = vmatprep.subr.mxu0 0.0
        %1789 = vmatpush1.msra.mxu0 %v420
        %1790 = vmatprep.subr.mxu0 0.0
        %1791 = vmatpush1.msra.mxu0 %v421
        %1792 = vmatprep.subr.mxu0 0.0
        %1793 = vmatpush1.msra.mxu0 %v422
        %1794 = vmatprep.subr.mxu0 0.0
        %1795 = vmatpush1.msra.mxu0 %v423
        %1796 = vmatprep.subr.mxu0 0.0
        %1797 = vmatpush1.msra.mxu0 %v424
        %1798 = vmatprep.subr.mxu0 0.0
        %1799 = vmatpush1.msra.mxu0 %v425
        %1800 = vmatprep.subr.mxu0 0.0
        %1801 = vmatpush1.msra.mxu0 0.0
        %1802 = vmatprep.subr.mxu0 0.0
        %1803 = vmatpush1.msra.mxu0 0.0
        %1804 = vmatprep.subr.mxu0 0.0
        %1805 = vmatpush1.msra.mxu0 0.0
        %1806 = vmatprep.subr.mxu0 0.0
        %1807 = vmatpush1.msra.mxu0 0.0
        %1808 = vmatprep.subr.mxu0 0.0
        %1809 = vmatpush1.msra.mxu0 0.0
        %1810 = vmatprep.subr.mxu0 0.0
        %1811 = vmatpush1.msra.mxu0 0.0
        %1812 = vmatprep.subr.mxu0 0.0
        %1813 = vmatpush1.msra.mxu0 0.0
        %1814 = vmatprep.subr.mxu0 0.0
        %1815 = vmatpush1.msra.mxu0 0.0
        %1816 = vmatprep.subr.mxu0 0.0
        %1817 = vmatpush1.msra.mxu0 0.0
        %1818 = vmatprep.subr.mxu0 0.0
        %1819 = vmatpush1.msra.mxu0 0.0
        %1820 = vmatprep.subr.mxu0 0.0
        %1821 = vmatpush1.msra.mxu0 0.0
        %1822 = vmatprep.subr.mxu0 0.0
        %1823 = vmatpush1.msra.mxu0 0.0
        %1824 = vmatprep.subr.mxu0 0.0
        %1825 = vmatpush1.msra.mxu0 0.0
        %1826 = vmatprep.subr.mxu0 0.0
        %1827 = vmatpush1.msra.mxu0 0.0
        %1828 = vmatprep.subr.mxu0 0.0
        %1829 = vmatpush1.msra.mxu0 0.0
        %1830 = vmatprep.subr.mxu0 0.0
        %1831 = vmatpush1.msra.mxu0 0.0
        %1832 = vmatprep.mubr.f32.mxu0 0.0
        %1833 = vmatmul.mubr.f32.gmra.mrb[0].mxu0 %v752
        %v1834 = vpop.f32.mrb[0].mxu0
        %v1835 = vadd.f32 %v1610, %v1834
        %v1836 = vpop.f32.mrb[0].mxu0
        %1837 = vmatprep.mubr.f32.mxu0 0.0
        %1838 = vmatmul.mubr.f32.gmra.mrb[0].mxu0 %v754
        %v1839 = vpop.f32.mrb[0].mxu0
        %v1840 = vadd.f32 %v1615, %v1839
        %v1841 = vpop.f32.mrb[0].mxu0
        %1842 = vmatprep.mubr.f32.mxu0 0.0
        %1843 = vmatmul.mubr.f32.gmra.mrb[0].mxu0 %v757
        %v1844 = vpop.f32.mrb[0].mxu0
        %v1845 = vadd.f32 %v1620, %v1844
        %v1846 = vpop.f32.mrb[0].mxu0
        %1847 = vmatprep.mubr.f32.mxu0 0.0
        %1848 = vmatmul.mubr.f32.gmra.mrb[0].mxu0 %v759
        %v1849 = vpop.f32.mrb[0].mxu0
        %v1850 = vadd.f32 %v1625, %v1849
        %v1851 = vpop.f32.mrb[0].mxu0
        %1852 = vmatprep.mubr.f32.mxu0 0.0
        %1853 = vmatmul.mubr.f32.gmra.mrb[0].mxu0 %v762
        %v1854 = vpop.f32.mrb[0].mxu0
        %v1855 = vadd.f32 %v1630, %v1854
        %v1856 = vpop.f32.mrb[0].mxu0
        %1857 = vmatprep.mubr.f32.mxu0 0.0
        %1858 = vmatmul.mubr.f32.gmra.mrb[0].mxu0 %v764
        %v1859 = vpop.f32.mrb[0].mxu0
        %v1860 = vadd.f32 %v1635, %v1859
        %v1861 = vpop.f32.mrb[0].mxu0
        %1862 = vmatprep.mubr.f32.mxu0 0.0
        %1863 = vmatmul.mubr.f32.gmra.mrb[0].mxu0 %v767
        %v1864 = vpop.f32.mrb[0].mxu0
        %v1865 = vadd.f32 %v1640, %v1864
        %v1866 = vpop.f32.mrb[0].mxu0
        %1867 = vmatprep.mubr.f32.mxu0 0.0
        %1868 = vmatmul.mubr.f32.gmra.mrb[0].mxu0 %v769
        %v1869 = vpop.f32.mrb[0].mxu0
        %v1870 = vadd.f32 %v1645, %v1869
        %v1871 = vpop.f32.mrb[0].mxu0
        %1872 = vmatprep.mubr.f32.mxu0 0.0
        %1873 = vmatmul.mubr.f32.gmra.mrb[0].mxu0 %v772
        %v1874 = vpop.f32.mrb[0].mxu0
        %v1875 = vadd.f32 %v1650, %v1874
        %v1876 = vpop.f32.mrb[0].mxu0
        %1877 = vmatprep.mubr.f32.mxu0 0.0
        %1878 = vmatmul.mubr.f32.gmra.mrb[0].mxu0 %v774
        %v1879 = vpop.f32.mrb[0].mxu0
        %v1880 = vadd.f32 %v1655, %v1879
        %v1881 = vpop.f32.mrb[0].mxu0
        %1882 = vmatprep.mubr.f32.mxu0 0.0
        %1883 = vmatmul.mubr.f32.gmra.mrb[0].mxu0 %v777
        %v1884 = vpop.f32.mrb[0].mxu0
        %v1885 = vadd.f32 %v1660, %v1884
        %v1886 = vpop.f32.mrb[0].mxu0
        %1887 = vmatprep.mubr.f32.mxu0 0.0
        %1888 = vmatmul.mubr.f32.gmra.mrb[0].mxu0 %v779
        %v1889 = vpop.f32.mrb[0].mxu0
        %v1890 = vadd.f32 %v1665, %v1889
        %v1891 = vpop.f32.mrb[0].mxu0
        %1892 = vmatprep.mubr.f32.mxu0 0.0
        %1893 = vmatmul.mubr.f32.gmra.mrb[0].mxu0 %v782
        %v1894 = vpop.f32.mrb[0].mxu0
        %v1895 = vadd.f32 %v1670, %v1894
        %v1896 = vpop.f32.mrb[0].mxu0
        %1897 = vmatprep.mubr.f32.mxu0 0.0
        %1898 = vmatmul.mubr.f32.gmra.mrb[0].mxu0 %v784
        %v1899 = vpop.f32.mrb[0].mxu0
        %v1900 = vadd.f32 %v1675, %v1899
        %v1901 = vpop.f32.mrb[0].mxu0
        %1902 = vmatprep.mubr.f32.mxu0 0.0
        %1903 = vmatmul.mubr.f32.gmra.mrb[0].mxu0 %v787
        %v1904 = vpop.f32.mrb[0].mxu0
        %v1905 = vadd.f32 %v1680, %v1904
        %v1906 = vpop.f32.mrb[0].mxu0
        %1907 = vmatprep.mubr.f32.mxu0 0.0
        %1908 = vmatmul.mubr.f32.gmra.mrb[0].mxu0 %v789
        %v1909 = vpop.f32.mrb[0].mxu0
        %v1910 = vadd.f32 %v1685, %v1909
        %v1911 = vpop.f32.mrb[0].mxu0
        %1912 = vmatprep.mubr.f32.mxu0 0.0
        %1913 = vmatmul.mubr.f32.gmra.mrb[0].mxu0 %v792
        %v1914 = vpop.f32.mrb[0].mxu0
        %v1915 = vadd.f32 %v1690, %v1914
        %v1916 = vpop.f32.mrb[0].mxu0
        %1917 = vmatprep.mubr.f32.mxu0 0.0
        %1918 = vmatmul.mubr.f32.gmra.mrb[0].mxu0 %v794
        %v1919 = vpop.f32.mrb[0].mxu0
        %v1920 = vadd.f32 %v1695, %v1919
        %v1921 = vpop.f32.mrb[0].mxu0
        %1922 = vmatprep.mubr.f32.mxu0 0.0
        %1923 = vmatmul.mubr.f32.gmra.mrb[0].mxu0 %v797
        %v1924 = vpop.f32.mrb[0].mxu0
        %v1925 = vadd.f32 %v1700, %v1924
        %v1926 = vpop.f32.mrb[0].mxu0
        %1927 = vmatprep.mubr.f32.mxu0 0.0
        %1928 = vmatmul.mubr.f32.gmra.mrb[0].mxu0 %v799
        %v1929 = vpop.f32.mrb[0].mxu0
        %v1930 = vadd.f32 %v1705, %v1929
        %v1931 = vpop.f32.mrb[0].mxu0
        %1932 = vmatprep.mubr.f32.mxu0 0.0
        %1933 = vmatmul.mubr.f32.gmra.mrb[0].mxu0 %v802
        %v1934 = vpop.f32.mrb[0].mxu0
        %v1935 = vadd.f32 %v1710, %v1934
        %v1936 = vpop.f32.mrb[0].mxu0
        %1937 = vmatprep.mubr.f32.mxu0 0.0
        %1938 = vmatmul.mubr.f32.gmra.mrb[0].mxu0 %v804
        %v1939 = vpop.f32.mrb[0].mxu0
        %v1940 = vadd.f32 %v1715, %v1939
        %v1941 = vpop.f32.mrb[0].mxu0
        %1942 = vmatprep.mubr.f32.mxu0 0.0
        %1943 = vmatmul.mubr.f32.gmra.mrb[0].mxu0 %v807
        %v1944 = vpop.f32.mrb[0].mxu0
        %v1945 = vadd.f32 %v1720, %v1944
        %v1946 = vpop.f32.mrb[0].mxu0
        %1947 = vmatprep.mubr.f32.mxu0 0.0
        %1948 = vmatmul.mubr.f32.gmra.mrb[0].mxu0 %v809
        %v1949 = vpop.f32.mrb[0].mxu0
        %v1950 = vadd.f32 %v1725, %v1949
        %v1951 = vpop.f32.mrb[0].mxu0
        %1952 = vmatprep.mubr.f32.mxu0 0.0
        %1953 = vmatmul.mubr.f32.gmra.mrb[0].mxu0 %v812
        %v1954 = vpop.f32.mrb[0].mxu0
        %v1955 = vadd.f32 %v1730, %v1954
        %v1956 = vpop.f32.mrb[0].mxu0
        %1957 = vmatprep.mubr.f32.mxu0 0.0
        %1958 = vmatmul.mubr.f32.gmra.mrb[0].mxu0 %v814
        %v1959 = vpop.f32.mrb[0].mxu0
        %v1960 = vadd.f32 %v1735, %v1959
        %v1961 = vpop.f32.mrb[0].mxu0
        %1962 = vmatprep.mubr.f32.mxu0 0.0
        %1963 = vmatmul.mubr.f32.gmra.mrb[0].mxu0 %v817
        %v1964 = vpop.f32.mrb[0].mxu0
        %v1965 = vadd.f32 %v1740, %v1964
        %v1966 = vpop.f32.mrb[0].mxu0
        %1967 = vmatprep.mubr.f32.mxu0 0.0
        %1968 = vmatmul.mubr.f32.gmra.mrb[0].mxu0 %v819
        %v1969 = vpop.f32.mrb[0].mxu0
        %v1970 = vadd.f32 %v1745, %v1969
        %v1971 = vpop.f32.mrb[0].mxu0
        %1972 = vmatprep.mubr.f32.mxu0 0.0
        %1973 = vmatmul.mubr.f32.gmra.mrb[0].mxu0 %v863
        %v1974 = vpop.f32.mrb[0].mxu0
        %v1975 = vadd.f32 %v1750, %v1974
        %v1976 = vpop.f32.mrb[0].mxu0
        %1977 = vmatprep.mubr.f32.mxu0 0.0
        %1978 = vmatmul.mubr.f32.gmra.mrb[0].mxu0 %v865
        %v1979 = vpop.f32.mrb[0].mxu0
        %v1980 = vadd.f32 %v1755, %v1979
        %v1981 = vpop.f32.mrb[0].mxu0
        %1982 = vmatprep.mubr.f32.mxu0 0.0
        %1983 = vmatmul.mubr.f32.gmra.mrb[0].mxu0 %v742
        %v1984 = vpop.f32.mrb[0].mxu0
        %v1985 = vadd.f32 %v1760, %v1984
        %v1986 = vpop.f32.mrb[0].mxu0
        %1987 = vmatprep.mubr.f32.mxu0 0.0
        %1988 = vmatmul.mubr.f32.gmra.mrb[0].mxu0 %v744
        %v1989 = vpop.f32.mrb[0].mxu0
        %v1990 = vadd.f32 %v1765, %v1989
        %v1991 = vpop.f32.mrb[0].mxu0
        %1992 = vdwg.mxu0
        %v1993 = vmax.f32 %v1835, 0.0
        %v1994 = vmax.f32 %v1840, 0.0
        %v1995 = vmax.f32 %v1845, 0.0
        %v1996 = vmax.f32 %v1850, 0.0
        %v1997 = vmax.f32 %v1855, 0.0
        %v1998 = vmax.f32 %v1860, 0.0
        %v1999 = vmax.f32 %v1865, 0.0
        %v2000 = vmax.f32 %v1870, 0.0
        %v2001 = vmax.f32 %v1875, 0.0
        %v2002 = vmax.f32 %v1880, 0.0
        %v2003 = vmax.f32 %v1885, 0.0
        %v2004 = vmax.f32 %v1890, 0.0
        %v2005 = vmax.f32 %v1895, 0.0
        %v2006 = vmax.f32 %v1900, 0.0
        %v2007 = vmax.f32 %v1905, 0.0
        %v2008 = vmax.f32 %v1910, 0.0
        %v2009 = vmax.f32 %v1915, 0.0
        %v2010 = vmax.f32 %v1920, 0.0
        %v2011 = vmax.f32 %v1925, 0.0
        %v2012 = vmax.f32 %v1930, 0.0
        %v2013 = vmax.f32 %v1935, 0.0
        %v2014 = vmax.f32 %v1940, 0.0
        %v2015 = vmax.f32 %v1945, 0.0
        %v2016 = vmax.f32 %v1950, 0.0
        %v2017 = vmax.f32 %v1955, 0.0
        %v2018 = vmax.f32 %v1960, 0.0
        %v2019 = vmax.f32 %v1965, 0.0
        %v2020 = vmax.f32 %v1970, 0.0
        %v2021 = vmax.f32 %v1975, 0.0
        %v2022 = vmax.f32 %v1980, 0.0
        %v2023 = vmax.f32 %v1985, 0.0
        %v2024 = vmax.f32 %v1990, 0.0
        %v2025 = vld [vmem:[#allocation7] sm:$0xff]
        %v2026 = vld [vmem:[#allocation7 + $0x8] sm:$0xff]
        %v2027 = vld [vmem:[#allocation7 + $0x10] sm:$0xff]
        %v2028 = vld [vmem:[#allocation7 + $0x18] sm:$0xff]
        %v2029 = vld [vmem:[#allocation7 + $0x20] sm:$0xff]
        %v2030 = vld [vmem:[#allocation7 + $0x28] sm:$0xff]
        %v2031 = vld [vmem:[#allocation7 + $0x30] sm:$0xff]
        %v2032 = vld [vmem:[#allocation7 + $0x38] sm:$0xff]
        %v2033 = vld [vmem:[#allocation7 + $0x40] sm:$0xff]
        %v2034 = vld [vmem:[#allocation7 + $0x48] sm:$0xff]
        %v2035 = vld [vmem:[#allocation7 + $0x50] sm:$0xff]
        %v2036 = vld [vmem:[#allocation7 + $0x58] sm:$0xff]
        %v2037 = vld [vmem:[#allocation7 + $0x60] sm:$0xff]
        %v2038 = vld [vmem:[#allocation7 + $0x68] sm:$0xff]
        %v2039 = vld [vmem:[#allocation7 + $0x70] sm:$0xff]
        %v2040 = vld [vmem:[#allocation7 + $0x78] sm:$0xff]
        %v2041 = vld [vmem:[#allocation7 + $0x80] sm:$0xff]
        %v2042 = vld [vmem:[#allocation7 + $0x88] sm:$0xff]
        %v2043 = vld [vmem:[#allocation7 + $0x90] sm:$0xff]
        %v2044 = vld [vmem:[#allocation7 + $0x98] sm:$0xff]
        %v2045 = vld [vmem:[#allocation7 + $0xa0] sm:$0xff]
        %v2046 = vld [vmem:[#allocation7 + $0xa8] sm:$0xff]
        %v2047 = vld [vmem:[#allocation7 + $0xb0] sm:$0xff]
        %v2048 = vld [vmem:[#allocation7 + $0xb8] sm:$0xff]
        %v2049 = vld [vmem:[#allocation7 + $0xc0] sm:$0xff]
        %v2050 = vld [vmem:[#allocation7 + $0xc8] sm:$0xff]
        %v2051 = vld [vmem:[#allocation7 + $0xd0] sm:$0xff]
        %v2052 = vld [vmem:[#allocation7 + $0xd8] sm:$0xff]
        %v2053 = vld [vmem:[#allocation7 + $0xe0] sm:$0xff]
        %v2054 = vld [vmem:[#allocation7 + $0xe8] sm:$0xff]
        %v2055 = vld [vmem:[#allocation7 + $0xf0] sm:$0xff]
        %v2056 = vld [vmem:[#allocation7 + $0xf8] sm:$0xff]
        %v2057 = vld [vmem:[#allocation7 + $0x100] sm:$0xff]
        %v2058 = vld [vmem:[#allocation7 + $0x108] sm:$0xff]
        %v2059 = vld [vmem:[#allocation7 + $0x110] sm:$0xff]
        %v2060 = vld [vmem:[#allocation7 + $0x118] sm:$0xff]
        %v2061 = vld [vmem:[#allocation7 + $0x120] sm:$0xff]
        %v2062 = vld [vmem:[#allocation7 + $0x128] sm:$0xff]
        %v2063 = vld [vmem:[#allocation7 + $0x130] sm:$0xff]
        %v2064 = vld [vmem:[#allocation7 + $0x138] sm:$0xff]
        %v2065 = vld [vmem:[#allocation7 + $0x140] sm:$0xff]
        %v2066 = vld [vmem:[#allocation7 + $0x148] sm:$0xff]
        %v2067 = vld [vmem:[#allocation7 + $0x150] sm:$0xff]
        %v2068 = vld [vmem:[#allocation7 + $0x158] sm:$0xff]
        %v2069 = vld [vmem:[#allocation7 + $0x160] sm:$0xff]
        %v2070 = vld [vmem:[#allocation7 + $0x168] sm:$0xff]
        %v2071 = vld [vmem:[#allocation7 + $0x170] sm:$0xff]
        %v2072 = vld [vmem:[#allocation7 + $0x178] sm:$0xff]
        %v2073 = vld [vmem:[#allocation7 + $0x180] sm:$0xff]
        %v2074 = vld [vmem:[#allocation7 + $0x188] sm:$0xff]
        %v2075 = vld [vmem:[#allocation7 + $0x190] sm:$0xff]
        %v2076 = vld [vmem:[#allocation7 + $0x198] sm:$0xff]
        %v2077 = vld [vmem:[#allocation7 + $0x1a0] sm:$0xff]
        %v2078 = vld [vmem:[#allocation7 + $0x1a8] sm:$0xff]
        %v2079 = vld [vmem:[#allocation7 + $0x1b0] sm:$0xff]
        %v2080 = vld [vmem:[#allocation7 + $0x1b8] sm:$0xff]
        %v2081 = vld [vmem:[#allocation7 + $0x1c0] sm:$0xff]
        %v2082 = vld [vmem:[#allocation7 + $0x1c8] sm:$0xff]
        %v2083 = vld [vmem:[#allocation7 + $0x1d0] sm:$0xff]
        %v2084 = vld [vmem:[#allocation7 + $0x1d8] sm:$0xff]
        %v2085 = vld [vmem:[#allocation7 + $0x1e0] sm:$0xff]
        %v2086 = vld [vmem:[#allocation7 + $0x1e8] sm:$0xff]
        %v2087 = vld [vmem:[#allocation7 + $0x1f0] sm:$0xff]
        %v2088 = vld [vmem:[#allocation7 + $0x1f8] sm:$0xff]
        %v2089 = vld [vmem:[#allocation7 + $0x200] sm:$0xff]
        %v2090 = vld [vmem:[#allocation7 + $0x208] sm:$0xff]
        %v2091 = vld [vmem:[#allocation7 + $0x210] sm:$0xff]
        %v2092 = vld [vmem:[#allocation7 + $0x218] sm:$0xff]
        %v2093 = vld [vmem:[#allocation7 + $0x220] sm:$0xff]
        %v2094 = vld [vmem:[#allocation7 + $0x228] sm:$0xff]
        %v2095 = vld [vmem:[#allocation7 + $0x230] sm:$0xff]
        %v2096 = vld [vmem:[#allocation7 + $0x238] sm:$0xff]
        %v2097 = vld [vmem:[#allocation7 + $0x240] sm:$0xff]
        %v2098 = vld [vmem:[#allocation7 + $0x248] sm:$0xff]
        %v2099 = vld [vmem:[#allocation7 + $0x250] sm:$0xff]
        %v2100 = vld [vmem:[#allocation7 + $0x258] sm:$0xff]
        %v2101 = vld [vmem:[#allocation7 + $0x260] sm:$0xff]
        %v2102 = vld [vmem:[#allocation7 + $0x268] sm:$0xff]
        %v2103 = vld [vmem:[#allocation7 + $0x270] sm:$0xff]
        %v2104 = vld [vmem:[#allocation7 + $0x278] sm:$0xff]
        %v2105 = vld [vmem:[#allocation7 + $0x280] sm:$0xff]
        %v2106 = vld [vmem:[#allocation7 + $0x288] sm:$0xff]
        %v2107 = vld [vmem:[#allocation7 + $0x290] sm:$0xff]
        %v2108 = vld [vmem:[#allocation7 + $0x298] sm:$0xff]
        %v2109 = vld [vmem:[#allocation7 + $0x2a0] sm:$0xff]
        %v2110 = vld [vmem:[#allocation7 + $0x2a8] sm:$0xff]
        %v2111 = vld [vmem:[#allocation7 + $0x2b0] sm:$0xff]
        %v2112 = vld [vmem:[#allocation7 + $0x2b8] sm:$0xff]
        %v2113 = vld [vmem:[#allocation7 + $0x2c0] sm:$0xff]
        %v2114 = vld [vmem:[#allocation7 + $0x2c8] sm:$0xff]
        %v2115 = vld [vmem:[#allocation7 + $0x2d0] sm:$0xff]
        %v2116 = vld [vmem:[#allocation7 + $0x2d8] sm:$0xff]
        %v2117 = vld [vmem:[#allocation7 + $0x2e0] sm:$0xff]
        %v2118 = vld [vmem:[#allocation7 + $0x2e8] sm:$0xff]
        %v2119 = vld [vmem:[#allocation7 + $0x2f0] sm:$0xff]
        %v2120 = vld [vmem:[#allocation7 + $0x2f8] sm:$0xff]
        %v2121 = vld [vmem:[#allocation7 + $0x300] sm:$0xff]
        %v2122 = vld [vmem:[#allocation7 + $0x308] sm:$0xff]
        %v2123 = vld [vmem:[#allocation7 + $0x310] sm:$0xff]
        %v2124 = vld [vmem:[#allocation7 + $0x318] sm:$0xff]
        %v2125 = vld [vmem:[#allocation7 + $0x320] sm:$0xff]
        %v2126 = vld [vmem:[#allocation7 + $0x328] sm:$0xff]
        %v2127 = vld [vmem:[#allocation7 + $0x330] sm:$0xff]
        %v2128 = vld [vmem:[#allocation7 + $0x338] sm:$0xff]
        %v2129 = vld [vmem:[#allocation7 + $0x340] sm:$0xff]
        %v2130 = vld [vmem:[#allocation7 + $0x348] sm:$0xff]
        %v2131 = vld [vmem:[#allocation7 + $0x350] sm:$0xff]
        %v2132 = vld [vmem:[#allocation7 + $0x358] sm:$0xff]
        %v2133 = vld [vmem:[#allocation7 + $0x360] sm:$0xff]
        %v2134 = vld [vmem:[#allocation7 + $0x368] sm:$0xff]
        %v2135 = vld [vmem:[#allocation7 + $0x370] sm:$0xff]
        %v2136 = vld [vmem:[#allocation7 + $0x378] sm:$0xff]
        %v2137 = vld [vmem:[#allocation7 + $0x380] sm:$0xff]
        %v2138 = vld [vmem:[#allocation7 + $0x388] sm:$0xff]
        %v2139 = vld [vmem:[#allocation7 + $0x390] sm:$0xff]
        %v2140 = vld [vmem:[#allocation7 + $0x398] sm:$0xff]
        %v2141 = vld [vmem:[#allocation7 + $0x3a0] sm:$0xff]
        %v2142 = vld [vmem:[#allocation7 + $0x3a8] sm:$0xff]
        %v2143 = vld [vmem:[#allocation7 + $0x3b0] sm:$0xff]
        %v2144 = vld [vmem:[#allocation7 + $0x3b8] sm:$0xff]
        %v2145 = vld [vmem:[#allocation7 + $0x3c0] sm:$0xff]
        %v2146 = vld [vmem:[#allocation7 + $0x3c8] sm:$0xff]
        %v2147 = vld [vmem:[#allocation7 + $0x3d0] sm:$0xff]
        %v2148 = vld [vmem:[#allocation7 + $0x3d8] sm:$0xff]
        %v2149 = vld [vmem:[#allocation7 + $0x3e0] sm:$0xff]
        %v2150 = vld [vmem:[#allocation7 + $0x3e8] sm:$0xff]
        %v2151 = vld [vmem:[#allocation7 + $0x3f0] sm:$0xff]
        %v2152 = vld [vmem:[#allocation7 + $0x3f8] sm:$0xff]
        %v2153 = vld [vmem:[#allocation7 + $0x400] sm:$0xff]
        %v2154 = vld [vmem:[#allocation7 + $0x408] sm:$0xff]
        %v2155 = vld [vmem:[#allocation7 + $0x410] sm:$0xff]
        %v2156 = vld [vmem:[#allocation7 + $0x418] sm:$0xff]
        %v2157 = vld [vmem:[#allocation7 + $0x420] sm:$0xff]
        %v2158 = vld [vmem:[#allocation7 + $0x428] sm:$0xff]
        %v2159 = vld [vmem:[#allocation7 + $0x430] sm:$0xff]
        %v2160 = vld [vmem:[#allocation7 + $0x438] sm:$0xff]
        %v2161 = vld [vmem:[#allocation7 + $0x440] sm:$0xff]
        %v2162 = vld [vmem:[#allocation7 + $0x448] sm:$0xff]
        %v2163 = vld [vmem:[#allocation7 + $0x450] sm:$0xff]
        %v2164 = vld [vmem:[#allocation7 + $0x458] sm:$0xff]
        %v2165 = vld [vmem:[#allocation7 + $0x460] sm:$0xff]
        %v2166 = vld [vmem:[#allocation7 + $0x468] sm:$0xff]
        %v2167 = vld [vmem:[#allocation7 + $0x470] sm:$0xff]
        %v2168 = vld [vmem:[#allocation7 + $0x478] sm:$0xff]
        %v2201 = vrot.slane %v1993, 7
        %v2202 = vrot.slane %v1994, 7
        %v2203 = vsel %vm459, %v2201, %v2202
        %v2204 = vrot.slane %v1995, 7
        %v2205 = vrot.slane %v1996, 7
        %v2206 = vsel %vm459, %v2204, %v2205
        %v2207 = vrot.slane %v1997, 7
        %v2208 = vrot.slane %v1998, 7
        %v2209 = vsel %vm459, %v2207, %v2208
        %v2210 = vrot.slane %v1999, 7
        %v2211 = vrot.slane %v2000, 7
        %v2212 = vsel %vm459, %v2210, %v2211
        %v2213 = vrot.slane %v2001, 7
        %v2214 = vrot.slane %v2002, 7
        %v2215 = vsel %vm459, %v2213, %v2214
        %v2216 = vrot.slane %v2003, 7
        %v2217 = vrot.slane %v2004, 7
        %v2218 = vsel %vm459, %v2216, %v2217
        %v2219 = vrot.slane %v2005, 7
        %v2220 = vrot.slane %v2006, 7
        %v2221 = vsel %vm459, %v2219, %v2220
        %v2222 = vrot.slane %v2007, 7
        %v2223 = vrot.slane %v2008, 7
        %v2224 = vsel %vm459, %v2222, %v2223
        %v2225 = vrot.slane %v2009, 7
        %v2226 = vrot.slane %v2010, 7
        %v2227 = vsel %vm459, %v2225, %v2226
        %v2228 = vrot.slane %v2011, 7
        %v2229 = vrot.slane %v2012, 7
        %v2230 = vsel %vm459, %v2228, %v2229
        %v2231 = vrot.slane %v2013, 7
        %v2232 = vrot.slane %v2014, 7
        %v2233 = vsel %vm459, %v2231, %v2232
        %v2234 = vrot.slane %v2015, 7
        %v2235 = vrot.slane %v2016, 7
        %v2236 = vsel %vm459, %v2234, %v2235
        %v2237 = vrot.slane %v2017, 7
        %v2238 = vrot.slane %v2018, 7
        %v2239 = vsel %vm459, %v2237, %v2238
        %v2240 = vrot.slane %v2019, 7
        %v2241 = vrot.slane %v2020, 7
        %v2242 = vsel %vm459, %v2240, %v2241
        %v2243 = vrot.slane %v2021, 7
        %v2244 = vrot.slane %v2022, 7
        %v2245 = vsel %vm459, %v2243, %v2244
        %v2246 = vrot.slane %v2023, 7
        %v2247 = vrot.slane %v2024, 7
        %v2248 = vsel %vm459, %v2246, %v2247
        %v2297 = vsel %vm459, 0.0, %v2201
        %v2298 = vsel %vm459, 0.0, %v2204
        %v2299 = vsel %vm459, 0.0, %v2207
        %v2300 = vsel %vm459, 0.0, %v2210
        %v2301 = vsel %vm459, 0.0, %v2213
        %v2302 = vsel %vm459, 0.0, %v2216
        %v2303 = vsel %vm459, 0.0, %v2219
        %v2304 = vsel %vm459, 0.0, %v2222
        %v2305 = vsel %vm459, 0.0, %v2225
        %v2306 = vsel %vm459, 0.0, %v2228
        %v2307 = vsel %vm459, 0.0, %v2231
        %v2308 = vsel %vm459, 0.0, %v2234
        %v2309 = vsel %vm459, 0.0, %v2237
        %v2310 = vsel %vm459, 0.0, %v2240
        %v2311 = vsel %vm459, 0.0, %v2243
        %v2312 = vsel %vm459, 0.0, %v2246
        %v2313 = vsel %vm459, %v2202, 0.0
        %v2314 = vsel %vm459, %v2205, 0.0
        %v2315 = vsel %vm459, %v2208, 0.0
        %v2316 = vsel %vm459, %v2211, 0.0
        %v2317 = vsel %vm459, %v2214, 0.0
        %v2318 = vsel %vm459, %v2217, 0.0
        %v2319 = vsel %vm459, %v2220, 0.0
        %v2320 = vsel %vm459, %v2223, 0.0
        %v2321 = vsel %vm459, %v2226, 0.0
        %v2322 = vsel %vm459, %v2229, 0.0
        %v2323 = vsel %vm459, %v2232, 0.0
        %v2324 = vsel %vm459, %v2235, 0.0
        %v2325 = vsel %vm459, %v2238, 0.0
        %v2326 = vsel %vm459, %v2241, 0.0
        %v2327 = vsel %vm459, %v2244, 0.0
        %v2328 = vsel %vm459, %v2247, 0.0
        %v2359 = vrot.slane %v2297, 1
        %v2360 = vrot.slane %v2203, 1
        %v2361 = vsel %vm626, %v2359, %v2360
        %v2362 = vrot.slane %v2313, 1
        %v2363 = vsel %vm626, %v2360, %v2362
        %v2364 = vrot.slane %v2298, 1
        %v2365 = vrot.slane %v2206, 1
        %v2366 = vsel %vm626, %v2364, %v2365
        %v2367 = vrot.slane %v2314, 1
        %v2368 = vsel %vm626, %v2365, %v2367
        %v2369 = vrot.slane %v2299, 1
        %v2370 = vrot.slane %v2209, 1
        %v2371 = vsel %vm626, %v2369, %v2370
        %v2372 = vrot.slane %v2315, 1
        %v2373 = vsel %vm626, %v2370, %v2372
        %v2374 = vrot.slane %v2300, 1
        %v2375 = vrot.slane %v2212, 1
        %v2376 = vsel %vm626, %v2374, %v2375
        %v2377 = vrot.slane %v2316, 1
        %v2378 = vsel %vm626, %v2375, %v2377
        %v2379 = vrot.slane %v2301, 1
        %v2380 = vrot.slane %v2215, 1
        %v2381 = vsel %vm626, %v2379, %v2380
        %v2382 = vrot.slane %v2317, 1
        %v2383 = vsel %vm626, %v2380, %v2382
        %v2384 = vrot.slane %v2302, 1
        %v2385 = vrot.slane %v2218, 1
        %v2386 = vsel %vm626, %v2384, %v2385
        %v2387 = vrot.slane %v2318, 1
        %v2388 = vsel %vm626, %v2385, %v2387
        %v2389 = vrot.slane %v2303, 1
        %v2390 = vrot.slane %v2221, 1
        %v2391 = vsel %vm626, %v2389, %v2390
        %v2392 = vrot.slane %v2319, 1
        %v2393 = vsel %vm626, %v2390, %v2392
        %v2394 = vrot.slane %v2304, 1
        %v2395 = vrot.slane %v2224, 1
        %v2396 = vsel %vm626, %v2394, %v2395
        %v2397 = vrot.slane %v2320, 1
        %v2398 = vsel %vm626, %v2395, %v2397
        %v2399 = vrot.slane %v2305, 1
        %v2400 = vrot.slane %v2227, 1
        %v2401 = vsel %vm626, %v2399, %v2400
        %v2402 = vrot.slane %v2321, 1
        %v2403 = vsel %vm626, %v2400, %v2402
        %v2404 = vrot.slane %v2306, 1
        %v2405 = vrot.slane %v2230, 1
        %v2406 = vsel %vm626, %v2404, %v2405
        %v2407 = vrot.slane %v2322, 1
        %v2408 = vsel %vm626, %v2405, %v2407
        %v2409 = vrot.slane %v2307, 1
        %v2410 = vrot.slane %v2233, 1
        %v2411 = vsel %vm626, %v2409, %v2410
        %v2412 = vrot.slane %v2323, 1
        %v2413 = vsel %vm626, %v2410, %v2412
        %v2414 = vrot.slane %v2308, 1
        %v2415 = vrot.slane %v2236, 1
        %v2416 = vsel %vm626, %v2414, %v2415
        %v2417 = vrot.slane %v2324, 1
        %v2418 = vsel %vm626, %v2415, %v2417
        %v2419 = vrot.slane %v2309, 1
        %v2420 = vrot.slane %v2239, 1
        %v2421 = vsel %vm626, %v2419, %v2420
        %v2422 = vrot.slane %v2325, 1
        %v2423 = vsel %vm626, %v2420, %v2422
        %v2424 = vrot.slane %v2310, 1
        %v2425 = vrot.slane %v2242, 1
        %v2426 = vsel %vm626, %v2424, %v2425
        %v2427 = vrot.slane %v2326, 1
        %v2428 = vsel %vm626, %v2425, %v2427
        %v2429 = vrot.slane %v2311, 1
        %v2430 = vrot.slane %v2245, 1
        %v2431 = vsel %vm626, %v2429, %v2430
        %v2432 = vrot.slane %v2327, 1
        %v2433 = vsel %vm626, %v2430, %v2432
        %v2464 = vrot.slane %v2297, 2
        %v2465 = vrot.slane %v2203, 2
        %v2466 = vsel %vm739, %v2464, %v2465
        %v2467 = vrot.slane %v2313, 2
        %v2468 = vsel %vm739, %v2465, %v2467
        %v2469 = vrot.slane %v2298, 2
        %v2470 = vrot.slane %v2206, 2
        %v2471 = vsel %vm739, %v2469, %v2470
        %v2472 = vrot.slane %v2314, 2
        %v2473 = vsel %vm739, %v2470, %v2472
        %v2474 = vrot.slane %v2299, 2
        %v2475 = vrot.slane %v2209, 2
        %v2476 = vsel %vm739, %v2474, %v2475
        %v2477 = vrot.slane %v2315, 2
        %v2478 = vsel %vm739, %v2475, %v2477
        %v2479 = vrot.slane %v2300, 2
        %v2480 = vrot.slane %v2212, 2
        %v2481 = vsel %vm739, %v2479, %v2480
        %v2482 = vrot.slane %v2316, 2
        %v2483 = vsel %vm739, %v2480, %v2482
        %v2484 = vrot.slane %v2301, 2
        %v2485 = vrot.slane %v2215, 2
        %v2486 = vsel %vm739, %v2484, %v2485
        %v2487 = vrot.slane %v2317, 2
        %v2488 = vsel %vm739, %v2485, %v2487
        %v2489 = vrot.slane %v2302, 2
        %v2490 = vrot.slane %v2218, 2
        %v2491 = vsel %vm739, %v2489, %v2490
        %v2492 = vrot.slane %v2318, 2
        %v2493 = vsel %vm739, %v2490, %v2492
        %v2494 = vrot.slane %v2303, 2
        %v2495 = vrot.slane %v2221, 2
        %v2496 = vsel %vm739, %v2494, %v2495
        %v2497 = vrot.slane %v2319, 2
        %v2498 = vsel %vm739, %v2495, %v2497
        %v2499 = vrot.slane %v2304, 2
        %v2500 = vrot.slane %v2224, 2
        %v2501 = vsel %vm739, %v2499, %v2500
        %v2502 = vrot.slane %v2320, 2
        %v2503 = vsel %vm739, %v2500, %v2502
        %v2504 = vrot.slane %v2305, 2
        %v2505 = vrot.slane %v2227, 2
        %v2506 = vsel %vm739, %v2504, %v2505
        %v2507 = vrot.slane %v2321, 2
        %v2508 = vsel %vm739, %v2505, %v2507
        %v2509 = vrot.slane %v2306, 2
        %v2510 = vrot.slane %v2230, 2
        %v2511 = vsel %vm739, %v2509, %v2510
        %v2512 = vrot.slane %v2322, 2
        %v2513 = vsel %vm739, %v2510, %v2512
        %v2514 = vrot.slane %v2307, 2
        %v2515 = vrot.slane %v2233, 2
        %v2516 = vsel %vm739, %v2514, %v2515
        %v2517 = vrot.slane %v2323, 2
        %v2518 = vsel %vm739, %v2515, %v2517
        %v2519 = vrot.slane %v2308, 2
        %v2520 = vrot.slane %v2236, 2
        %v2521 = vsel %vm739, %v2519, %v2520
        %v2522 = vrot.slane %v2324, 2
        %v2523 = vsel %vm739, %v2520, %v2522
        %v2524 = vrot.slane %v2309, 2
        %v2525 = vrot.slane %v2239, 2
        %v2526 = vsel %vm739, %v2524, %v2525
        %v2527 = vrot.slane %v2325, 2
        %v2528 = vsel %vm739, %v2525, %v2527
        %v2529 = vrot.slane %v2310, 2
        %v2530 = vrot.slane %v2242, 2
        %v2531 = vsel %vm739, %v2529, %v2530
        %v2532 = vrot.slane %v2326, 2
        %v2533 = vsel %vm739, %v2530, %v2532
        %v2534 = vrot.slane %v2311, 2
        %v2535 = vrot.slane %v2245, 2
        %v2536 = vsel %vm739, %v2534, %v2535
        %v2537 = vrot.slane %v2327, 2
        %v2538 = vsel %vm739, %v2535, %v2537
        %v2571 = vrot.slane %v2312, 1
        %v2572 = vrot.slane %v2248, 1
        %v2573 = vsel %vm626, %v2571, %v2572
        %v2574 = vrot.slane %v2328, 1
        %v2575 = vsel %vm626, %v2572, %v2574
        %v2578 = vrot.slane %v2312, 2
        %v2579 = vrot.slane %v2248, 2
        %v2580 = vsel %vm739, %v2578, %v2579
        %v2581 = vrot.slane %v2328, 2
        %v2582 = vsel %vm739, %v2579, %v2581
        %2585 = vmatprep.subr.mxu0 0.0
        %2586 = vmatpush1.msra.mxu0 %v2025
        %2587 = vmatprep.subr.mxu0 0.0
        %2588 = vmatpush1.msra.mxu0 %v2026
        %2589 = vmatprep.subr.mxu0 0.0
        %2590 = vmatpush1.msra.mxu0 %v2027
        %2591 = vmatprep.subr.mxu0 0.0
        %2592 = vmatpush1.msra.mxu0 %v2028
        %2593 = vmatprep.subr.mxu0 0.0
        %2594 = vmatpush1.msra.mxu0 %v2029
        %2595 = vmatprep.subr.mxu0 0.0
        %2596 = vmatpush1.msra.mxu0 %v2030
        %2597 = vmatprep.subr.mxu0 0.0
        %2598 = vmatpush1.msra.mxu0 %v2031
        %2599 = vmatprep.subr.mxu0 0.0
        %2600 = vmatpush1.msra.mxu0 %v2032
        %2601 = vmatprep.subr.mxu0 0.0
        %2602 = vmatpush1.msra.mxu0 %v2033
        %2603 = vmatprep.subr.mxu0 0.0
        %2604 = vmatpush1.msra.mxu0 %v2034
        %2605 = vmatprep.subr.mxu0 0.0
        %2606 = vmatpush1.msra.mxu0 %v2035
        %2607 = vmatprep.subr.mxu0 0.0
        %2608 = vmatpush1.msra.mxu0 %v2036
        %2609 = vmatprep.subr.mxu0 0.0
        %2610 = vmatpush1.msra.mxu0 %v2037
        %2611 = vmatprep.subr.mxu0 0.0
        %2612 = vmatpush1.msra.mxu0 %v2038
        %2613 = vmatprep.subr.mxu0 0.0
        %2614 = vmatpush1.msra.mxu0 %v2039
        %2615 = vmatprep.subr.mxu0 0.0
        %2616 = vmatpush1.msra.mxu0 %v2040
        %2617 = vmatprep.subr.mxu0 0.0
        %2618 = vmatpush1.msra.mxu0 %v2041
        %2619 = vmatprep.subr.mxu0 0.0
        %2620 = vmatpush1.msra.mxu0 %v2042
        %2621 = vmatprep.subr.mxu0 0.0
        %2622 = vmatpush1.msra.mxu0 %v2043
        %2623 = vmatprep.subr.mxu0 0.0
        %2624 = vmatpush1.msra.mxu0 %v2044
        %2625 = vmatprep.subr.mxu0 0.0
        %2626 = vmatpush1.msra.mxu0 %v2045
        %2627 = vmatprep.subr.mxu0 0.0
        %2628 = vmatpush1.msra.mxu0 %v2046
        %2629 = vmatprep.subr.mxu0 0.0
        %2630 = vmatpush1.msra.mxu0 %v2047
        %2631 = vmatprep.subr.mxu0 0.0
        %2632 = vmatpush1.msra.mxu0 %v2048
        %2633 = vmatprep.subr.mxu0 0.0
        %2634 = vmatpush1.msra.mxu0 %v2049
        %2635 = vmatprep.subr.mxu0 0.0
        %2636 = vmatpush1.msra.mxu0 %v2050
        %2637 = vmatprep.subr.mxu0 0.0
        %2638 = vmatpush1.msra.mxu0 %v2051
        %2639 = vmatprep.subr.mxu0 0.0
        %2640 = vmatpush1.msra.mxu0 %v2052
        %2641 = vmatprep.subr.mxu0 0.0
        %2642 = vmatpush1.msra.mxu0 %v2053
        %2643 = vmatprep.subr.mxu0 0.0
        %2644 = vmatpush1.msra.mxu0 %v2054
        %2645 = vmatprep.subr.mxu0 0.0
        %2646 = vmatpush1.msra.mxu0 %v2055
        %2647 = vmatprep.subr.mxu0 0.0
        %2648 = vmatpush1.msra.mxu0 %v2056
        %2649 = vmatprep.mubr.f32.mxu0 %v629
        %2650 = vmatmul.mubr.f32.gmra.mrb[0].mxu0 %v560
        %v2651 = vpop.f32.mrb[0].mxu0
        %v2652 = vadd.f32 0.0, %v2651
        %v2653 = vpop.f32.mrb[0].mxu0
        %2654 = vmatprep.mubr.f32.mxu0 %v631
        %2655 = vmatmul.mubr.f32.gmra.mrb[0].mxu0 %v461
        %v2656 = vpop.f32.mrb[0].mxu0
        %v2657 = vadd.f32 0.0, %v2656
        %v2658 = vpop.f32.mrb[0].mxu0
        %2659 = vmatprep.mubr.f32.mxu0 %v2361
        %2660 = vmatmul.mubr.f32.gmra.mrb[0].mxu0 %v2297
        %v2661 = vpop.f32.mrb[0].mxu0
        %v2662 = vadd.f32 0.0, %v2661
        %v2663 = vpop.f32.mrb[0].mxu0
        %2664 = vmatprep.mubr.f32.mxu0 %v2363
        %2665 = vmatmul.mubr.f32.gmra.mrb[0].mxu0 %v2203
        %v2666 = vpop.f32.mrb[0].mxu0
        %v2667 = vadd.f32 0.0, %v2666
        %v2668 = vpop.f32.mrb[0].mxu0
        %2669 = vmatprep.mubr.f32.mxu0 %v2366
        %2670 = vmatmul.mubr.f32.gmra.mrb[0].mxu0 %v2298
        %v2671 = vpop.f32.mrb[0].mxu0
        %v2672 = vadd.f32 0.0, %v2671
        %v2673 = vpop.f32.mrb[0].mxu0
        %2674 = vmatprep.mubr.f32.mxu0 %v2368
        %2675 = vmatmul.mubr.f32.gmra.mrb[0].mxu0 %v2206
        %v2676 = vpop.f32.mrb[0].mxu0
        %v2677 = vadd.f32 0.0, %v2676
        %v2678 = vpop.f32.mrb[0].mxu0
        %2679 = vmatprep.mubr.f32.mxu0 %v2371
        %2680 = vmatmul.mubr.f32.gmra.mrb[0].mxu0 %v2299
        %v2681 = vpop.f32.mrb[0].mxu0
        %v2682 = vadd.f32 0.0, %v2681
        %v2683 = vpop.f32.mrb[0].mxu0
        %2684 = vmatprep.mubr.f32.mxu0 %v2373
        %2685 = vmatmul.mubr.f32.gmra.mrb[0].mxu0 %v2209
        %v2686 = vpop.f32.mrb[0].mxu0
        %v2687 = vadd.f32 0.0, %v2686
        %v2688 = vpop.f32.mrb[0].mxu0
        %2689 = vmatprep.mubr.f32.mxu0 %v2376
        %2690 = vmatmul.mubr.f32.gmra.mrb[0].mxu0 %v2300
        %v2691 = vpop.f32.mrb[0].mxu0
        %v2692 = vadd.f32 0.0, %v2691
        %v2693 = vpop.f32.mrb[0].mxu0
        %2694 = vmatprep.mubr.f32.mxu0 %v2378
        %2695 = vmatmul.mubr.f32.gmra.mrb[0].mxu0 %v2212
        %v2696 = vpop.f32.mrb[0].mxu0
        %v2697 = vadd.f32 0.0, %v2696
        %v2698 = vpop.f32.mrb[0].mxu0
        %2699 = vmatprep.mubr.f32.mxu0 %v2381
        %2700 = vmatmul.mubr.f32.gmra.mrb[0].mxu0 %v2301
        %v2701 = vpop.f32.mrb[0].mxu0
        %v2702 = vadd.f32 0.0, %v2701
        %v2703 = vpop.f32.mrb[0].mxu0
        %2704 = vmatprep.mubr.f32.mxu0 %v2383
        %2705 = vmatmul.mubr.f32.gmra.mrb[0].mxu0 %v2215
        %v2706 = vpop.f32.mrb[0].mxu0
        %v2707 = vadd.f32 0.0, %v2706
        %v2708 = vpop.f32.mrb[0].mxu0
        %2709 = vmatprep.mubr.f32.mxu0 %v2386
        %2710 = vmatmul.mubr.f32.gmra.mrb[0].mxu0 %v2302
        %v2711 = vpop.f32.mrb[0].mxu0
        %v2712 = vadd.f32 0.0, %v2711
        %v2713 = vpop.f32.mrb[0].mxu0
        %2714 = vmatprep.mubr.f32.mxu0 %v2388
        %2715 = vmatmul.mubr.f32.gmra.mrb[0].mxu0 %v2218
        %v2716 = vpop.f32.mrb[0].mxu0
        %v2717 = vadd.f32 0.0, %v2716
        %v2718 = vpop.f32.mrb[0].mxu0
        %2719 = vmatprep.mubr.f32.mxu0 %v2391
        %2720 = vmatmul.mubr.f32.gmra.mrb[0].mxu0 %v2303
        %v2721 = vpop.f32.mrb[0].mxu0
        %v2722 = vadd.f32 0.0, %v2721
        %v2723 = vpop.f32.mrb[0].mxu0
        %2724 = vmatprep.mubr.f32.mxu0 %v2393
        %2725 = vmatmul.mubr.f32.gmra.mrb[0].mxu0 %v2221
        %v2726 = vpop.f32.mrb[0].mxu0
        %v2727 = vadd.f32 0.0, %v2726
        %v2728 = vpop.f32.mrb[0].mxu0
        %2729 = vmatprep.mubr.f32.mxu0 %v2396
        %2730 = vmatmul.mubr.f32.gmra.mrb[0].mxu0 %v2304
        %v2731 = vpop.f32.mrb[0].mxu0
        %v2732 = vadd.f32 0.0, %v2731
        %v2733 = vpop.f32.mrb[0].mxu0
        %2734 = vmatprep.mubr.f32.mxu0 %v2398
        %2735 = vmatmul.mubr.f32.gmra.mrb[0].mxu0 %v2224
        %v2736 = vpop.f32.mrb[0].mxu0
        %v2737 = vadd.f32 0.0, %v2736
        %v2738 = vpop.f32.mrb[0].mxu0
        %2739 = vmatprep.mubr.f32.mxu0 %v2401
        %2740 = vmatmul.mubr.f32.gmra.mrb[0].mxu0 %v2305
        %v2741 = vpop.f32.mrb[0].mxu0
        %v2742 = vadd.f32 0.0, %v2741
        %v2743 = vpop.f32.mrb[0].mxu0
        %2744 = vmatprep.mubr.f32.mxu0 %v2403
        %2745 = vmatmul.mubr.f32.gmra.mrb[0].mxu0 %v2227
        %v2746 = vpop.f32.mrb[0].mxu0
        %v2747 = vadd.f32 0.0, %v2746
        %v2748 = vpop.f32.mrb[0].mxu0
        %2749 = vmatprep.mubr.f32.mxu0 %v2406
        %2750 = vmatmul.mubr.f32.gmra.mrb[0].mxu0 %v2306
        %v2751 = vpop.f32.mrb[0].mxu0
        %v2752 = vadd.f32 0.0, %v2751
        %v2753 = vpop.f32.mrb[0].mxu0
        %2754 = vmatprep.mubr.f32.mxu0 %v2408
        %2755 = vmatmul.mubr.f32.gmra.mrb[0].mxu0 %v2230
        %v2756 = vpop.f32.mrb[0].mxu0
        %v2757 = vadd.f32 0.0, %v2756
        %v2758 = vpop.f32.mrb[0].mxu0
        %2759 = vmatprep.mubr.f32.mxu0 %v2411
        %2760 = vmatmul.mubr.f32.gmra.mrb[0].mxu0 %v2307
        %v2761 = vpop.f32.mrb[0].mxu0
        %v2762 = vadd.f32 0.0, %v2761
        %v2763 = vpop.f32.mrb[0].mxu0
        %2764 = vmatprep.mubr.f32.mxu0 %v2413
        %2765 = vmatmul.mubr.f32.gmra.mrb[0].mxu0 %v2233
        %v2766 = vpop.f32.mrb[0].mxu0
        %v2767 = vadd.f32 0.0, %v2766
        %v2768 = vpop.f32.mrb[0].mxu0
        %2769 = vmatprep.mubr.f32.mxu0 %v2416
        %2770 = vmatmul.mubr.f32.gmra.mrb[0].mxu0 %v2308
        %v2771 = vpop.f32.mrb[0].mxu0
        %v2772 = vadd.f32 0.0, %v2771
        %v2773 = vpop.f32.mrb[0].mxu0
        %2774 = vmatprep.mubr.f32.mxu0 %v2418
        %2775 = vmatmul.mubr.f32.gmra.mrb[0].mxu0 %v2236
        %v2776 = vpop.f32.mrb[0].mxu0
        %v2777 = vadd.f32 0.0, %v2776
        %v2778 = vpop.f32.mrb[0].mxu0
        %2779 = vmatprep.mubr.f32.mxu0 %v2421
        %2780 = vmatmul.mubr.f32.gmra.mrb[0].mxu0 %v2309
        %v2781 = vpop.f32.mrb[0].mxu0
        %v2782 = vadd.f32 0.0, %v2781
        %v2783 = vpop.f32.mrb[0].mxu0
        %2784 = vmatprep.mubr.f32.mxu0 %v2423
        %2785 = vmatmul.mubr.f32.gmra.mrb[0].mxu0 %v2239
        %v2786 = vpop.f32.mrb[0].mxu0
        %v2787 = vadd.f32 0.0, %v2786
        %v2788 = vpop.f32.mrb[0].mxu0
        %2789 = vmatprep.mubr.f32.mxu0 %v2426
        %2790 = vmatmul.mubr.f32.gmra.mrb[0].mxu0 %v2310
        %v2791 = vpop.f32.mrb[0].mxu0
        %v2792 = vadd.f32 0.0, %v2791
        %v2793 = vpop.f32.mrb[0].mxu0
        %2794 = vmatprep.mubr.f32.mxu0 %v2428
        %2795 = vmatmul.mubr.f32.gmra.mrb[0].mxu0 %v2242
        %v2796 = vpop.f32.mrb[0].mxu0
        %v2797 = vadd.f32 0.0, %v2796
        %v2798 = vpop.f32.mrb[0].mxu0
        %2799 = vmatprep.mubr.f32.mxu0 %v2431
        %2800 = vmatmul.mubr.f32.gmra.mrb[0].mxu0 %v2311
        %v2801 = vpop.f32.mrb[0].mxu0
        %v2802 = vadd.f32 0.0, %v2801
        %v2803 = vpop.f32.mrb[0].mxu0
        %2804 = vmatprep.mubr.f32.mxu0 %v2433
        %2805 = vmatmul.mubr.f32.gmra.mrb[0].mxu0 %v2245
        %v2806 = vpop.f32.mrb[0].mxu0
        %v2807 = vadd.f32 0.0, %v2806
        %v2808 = vpop.f32.mrb[0].mxu0
        %2809 = vdwg.mxu0
        %2810 = vmatprep.subr.mxu0 0.0
        %2811 = vmatpush1.msra.mxu0 %v2057
        %2812 = vmatprep.subr.mxu0 0.0
        %2813 = vmatpush1.msra.mxu0 %v2058
        %2814 = vmatprep.subr.mxu0 0.0
        %2815 = vmatpush1.msra.mxu0 %v2059
        %2816 = vmatprep.subr.mxu0 0.0
        %2817 = vmatpush1.msra.mxu0 %v2060
        %2818 = vmatprep.subr.mxu0 0.0
        %2819 = vmatpush1.msra.mxu0 %v2061
        %2820 = vmatprep.subr.mxu0 0.0
        %2821 = vmatpush1.msra.mxu0 %v2062
        %2822 = vmatprep.subr.mxu0 0.0
        %2823 = vmatpush1.msra.mxu0 %v2063
        %2824 = vmatprep.subr.mxu0 0.0
        %2825 = vmatpush1.msra.mxu0 %v2064
        %2826 = vmatprep.subr.mxu0 0.0
        %2827 = vmatpush1.msra.mxu0 %v2065
        %2828 = vmatprep.subr.mxu0 0.0
        %2829 = vmatpush1.msra.mxu0 %v2066
        %2830 = vmatprep.subr.mxu0 0.0
        %2831 = vmatpush1.msra.mxu0 %v2067
        %2832 = vmatprep.subr.mxu0 0.0
        %2833 = vmatpush1.msra.mxu0 %v2068
        %2834 = vmatprep.subr.mxu0 0.0
        %2835 = vmatpush1.msra.mxu0 %v2069
        %2836 = vmatprep.subr.mxu0 0.0
        %2837 = vmatpush1.msra.mxu0 %v2070
        %2838 = vmatprep.subr.mxu0 0.0
        %2839 = vmatpush1.msra.mxu0 %v2071
        %2840 = vmatprep.subr.mxu0 0.0
        %2841 = vmatpush1.msra.mxu0 %v2072
        %2842 = vmatprep.subr.mxu0 0.0
        %2843 = vmatpush1.msra.mxu0 %v2073
        %2844 = vmatprep.subr.mxu0 0.0
        %2845 = vmatpush1.msra.mxu0 %v2074
        %2846 = vmatprep.subr.mxu0 0.0
        %2847 = vmatpush1.msra.mxu0 %v2075
        %2848 = vmatprep.subr.mxu0 0.0
        %2849 = vmatpush1.msra.mxu0 %v2076
        %2850 = vmatprep.subr.mxu0 0.0
        %2851 = vmatpush1.msra.mxu0 %v2077
        %2852 = vmatprep.subr.mxu0 0.0
        %2853 = vmatpush1.msra.mxu0 %v2078
        %2854 = vmatprep.subr.mxu0 0.0
        %2855 = vmatpush1.msra.mxu0 %v2079
        %2856 = vmatprep.subr.mxu0 0.0
        %2857 = vmatpush1.msra.mxu0 %v2080
        %2858 = vmatprep.subr.mxu0 0.0
        %2859 = vmatpush1.msra.mxu0 %v2081
        %2860 = vmatprep.subr.mxu0 0.0
        %2861 = vmatpush1.msra.mxu0 %v2082
        %2862 = vmatprep.subr.mxu0 0.0
        %2863 = vmatpush1.msra.mxu0 %v2083
        %2864 = vmatprep.subr.mxu0 0.0
        %2865 = vmatpush1.msra.mxu0 %v2084
        %2866 = vmatprep.subr.mxu0 0.0
        %2867 = vmatpush1.msra.mxu0 %v2085
        %2868 = vmatprep.subr.mxu0 0.0
        %2869 = vmatpush1.msra.mxu0 %v2086
        %2870 = vmatprep.subr.mxu0 0.0
        %2871 = vmatpush1.msra.mxu0 %v2087
        %2872 = vmatprep.subr.mxu0 0.0
        %2873 = vmatpush1.msra.mxu0 %v2088
        %2874 = vmatprep.mubr.f32.mxu0 %v2297
        %2875 = vmatmul.mubr.f32.gmra.mrb[0].mxu0 %v742
        %v2876 = vpop.f32.mrb[0].mxu0
        %v2877 = vadd.f32 %v2652, %v2876
        %v2878 = vpop.f32.mrb[0].mxu0
        %2879 = vmatprep.mubr.f32.mxu0 %v2203
        %2880 = vmatmul.mubr.f32.gmra.mrb[0].mxu0 %v744
        %v2881 = vpop.f32.mrb[0].mxu0
        %v2882 = vadd.f32 %v2657, %v2881
        %v2883 = vpop.f32.mrb[0].mxu0
        %2884 = vmatprep.mubr.f32.mxu0 %v2298
        %2885 = vmatmul.mubr.f32.gmra.mrb[0].mxu0 %v2466
        %v2886 = vpop.f32.mrb[0].mxu0
        %v2887 = vadd.f32 %v2662, %v2886
        %v2888 = vpop.f32.mrb[0].mxu0
        %2889 = vmatprep.mubr.f32.mxu0 %v2206
        %2890 = vmatmul.mubr.f32.gmra.mrb[0].mxu0 %v2468
        %v2891 = vpop.f32.mrb[0].mxu0
        %v2892 = vadd.f32 %v2667, %v2891
        %v2893 = vpop.f32.mrb[0].mxu0
        %2894 = vmatprep.mubr.f32.mxu0 %v2299
        %2895 = vmatmul.mubr.f32.gmra.mrb[0].mxu0 %v2471
        %v2896 = vpop.f32.mrb[0].mxu0
        %v2897 = vadd.f32 %v2672, %v2896
        %v2898 = vpop.f32.mrb[0].mxu0
        %2899 = vmatprep.mubr.f32.mxu0 %v2209
        %2900 = vmatmul.mubr.f32.gmra.mrb[0].mxu0 %v2473
        %v2901 = vpop.f32.mrb[0].mxu0
        %v2902 = vadd.f32 %v2677, %v2901
        %v2903 = vpop.f32.mrb[0].mxu0
        %2904 = vmatprep.mubr.f32.mxu0 %v2300
        %2905 = vmatmul.mubr.f32.gmra.mrb[0].mxu0 %v2476
        %v2906 = vpop.f32.mrb[0].mxu0
        %v2907 = vadd.f32 %v2682, %v2906
        %v2908 = vpop.f32.mrb[0].mxu0
        %2909 = vmatprep.mubr.f32.mxu0 %v2212
        %2910 = vmatmul.mubr.f32.gmra.mrb[0].mxu0 %v2478
        %v2911 = vpop.f32.mrb[0].mxu0
        %v2912 = vadd.f32 %v2687, %v2911
        %v2913 = vpop.f32.mrb[0].mxu0
        %2914 = vmatprep.mubr.f32.mxu0 %v2301
        %2915 = vmatmul.mubr.f32.gmra.mrb[0].mxu0 %v2481
        %v2916 = vpop.f32.mrb[0].mxu0
        %v2917 = vadd.f32 %v2692, %v2916
        %v2918 = vpop.f32.mrb[0].mxu0
        %2919 = vmatprep.mubr.f32.mxu0 %v2215
        %2920 = vmatmul.mubr.f32.gmra.mrb[0].mxu0 %v2483
        %v2921 = vpop.f32.mrb[0].mxu0
        %v2922 = vadd.f32 %v2697, %v2921
        %v2923 = vpop.f32.mrb[0].mxu0
        %2924 = vmatprep.mubr.f32.mxu0 %v2302
        %2925 = vmatmul.mubr.f32.gmra.mrb[0].mxu0 %v2486
        %v2926 = vpop.f32.mrb[0].mxu0
        %v2927 = vadd.f32 %v2702, %v2926
        %v2928 = vpop.f32.mrb[0].mxu0
        %2929 = vmatprep.mubr.f32.mxu0 %v2218
        %2930 = vmatmul.mubr.f32.gmra.mrb[0].mxu0 %v2488
        %v2931 = vpop.f32.mrb[0].mxu0
        %v2932 = vadd.f32 %v2707, %v2931
        %v2933 = vpop.f32.mrb[0].mxu0
        %2934 = vmatprep.mubr.f32.mxu0 %v2303
        %2935 = vmatmul.mubr.f32.gmra.mrb[0].mxu0 %v2491
        %v2936 = vpop.f32.mrb[0].mxu0
        %v2937 = vadd.f32 %v2712, %v2936
        %v2938 = vpop.f32.mrb[0].mxu0
        %2939 = vmatprep.mubr.f32.mxu0 %v2221
        %2940 = vmatmul.mubr.f32.gmra.mrb[0].mxu0 %v2493
        %v2941 = vpop.f32.mrb[0].mxu0
        %v2942 = vadd.f32 %v2717, %v2941
        %v2943 = vpop.f32.mrb[0].mxu0
        %2944 = vmatprep.mubr.f32.mxu0 %v2304
        %2945 = vmatmul.mubr.f32.gmra.mrb[0].mxu0 %v2496
        %v2946 = vpop.f32.mrb[0].mxu0
        %v2947 = vadd.f32 %v2722, %v2946
        %v2948 = vpop.f32.mrb[0].mxu0
        %2949 = vmatprep.mubr.f32.mxu0 %v2224
        %2950 = vmatmul.mubr.f32.gmra.mrb[0].mxu0 %v2498
        %v2951 = vpop.f32.mrb[0].mxu0
        %v2952 = vadd.f32 %v2727, %v2951
        %v2953 = vpop.f32.mrb[0].mxu0
        %2954 = vmatprep.mubr.f32.mxu0 %v2305
        %2955 = vmatmul.mubr.f32.gmra.mrb[0].mxu0 %v2501
        %v2956 = vpop.f32.mrb[0].mxu0
        %v2957 = vadd.f32 %v2732, %v2956
        %v2958 = vpop.f32.mrb[0].mxu0
        %2959 = vmatprep.mubr.f32.mxu0 %v2227
        %2960 = vmatmul.mubr.f32.gmra.mrb[0].mxu0 %v2503
        %v2961 = vpop.f32.mrb[0].mxu0
        %v2962 = vadd.f32 %v2737, %v2961
        %v2963 = vpop.f32.mrb[0].mxu0
        %2964 = vmatprep.mubr.f32.mxu0 %v2306
        %2965 = vmatmul.mubr.f32.gmra.mrb[0].mxu0 %v2506
        %v2966 = vpop.f32.mrb[0].mxu0
        %v2967 = vadd.f32 %v2742, %v2966
        %v2968 = vpop.f32.mrb[0].mxu0
        %2969 = vmatprep.mubr.f32.mxu0 %v2230
        %2970 = vmatmul.mubr.f32.gmra.mrb[0].mxu0 %v2508
        %v2971 = vpop.f32.mrb[0].mxu0
        %v2972 = vadd.f32 %v2747, %v2971
        %v2973 = vpop.f32.mrb[0].mxu0
        %2974 = vmatprep.mubr.f32.mxu0 %v2307
        %2975 = vmatmul.mubr.f32.gmra.mrb[0].mxu0 %v2511
        %v2976 = vpop.f32.mrb[0].mxu0
        %v2977 = vadd.f32 %v2752, %v2976
        %v2978 = vpop.f32.mrb[0].mxu0
        %2979 = vmatprep.mubr.f32.mxu0 %v2233
        %2980 = vmatmul.mubr.f32.gmra.mrb[0].mxu0 %v2513
        %v2981 = vpop.f32.mrb[0].mxu0
        %v2982 = vadd.f32 %v2757, %v2981
        %v2983 = vpop.f32.mrb[0].mxu0
        %2984 = vmatprep.mubr.f32.mxu0 %v2308
        %2985 = vmatmul.mubr.f32.gmra.mrb[0].mxu0 %v2516
        %v2986 = vpop.f32.mrb[0].mxu0
        %v2987 = vadd.f32 %v2762, %v2986
        %v2988 = vpop.f32.mrb[0].mxu0
        %2989 = vmatprep.mubr.f32.mxu0 %v2236
        %2990 = vmatmul.mubr.f32.gmra.mrb[0].mxu0 %v2518
        %v2991 = vpop.f32.mrb[0].mxu0
        %v2992 = vadd.f32 %v2767, %v2991
        %v2993 = vpop.f32.mrb[0].mxu0
        %2994 = vmatprep.mubr.f32.mxu0 %v2309
        %2995 = vmatmul.mubr.f32.gmra.mrb[0].mxu0 %v2521
        %v2996 = vpop.f32.mrb[0].mxu0
        %v2997 = vadd.f32 %v2772, %v2996
        %v2998 = vpop.f32.mrb[0].mxu0
        %2999 = vmatprep.mubr.f32.mxu0 %v2239
        %3000 = vmatmul.mubr.f32.gmra.mrb[0].mxu0 %v2523
        %v3001 = vpop.f32.mrb[0].mxu0
        %v3002 = vadd.f32 %v2777, %v3001
        %v3003 = vpop.f32.mrb[0].mxu0
        %3004 = vmatprep.mubr.f32.mxu0 %v2310
        %3005 = vmatmul.mubr.f32.gmra.mrb[0].mxu0 %v2526
        %v3006 = vpop.f32.mrb[0].mxu0
        %v3007 = vadd.f32 %v2782, %v3006
        %v3008 = vpop.f32.mrb[0].mxu0
        %3009 = vmatprep.mubr.f32.mxu0 %v2242
        %3010 = vmatmul.mubr.f32.gmra.mrb[0].mxu0 %v2528
        %v3011 = vpop.f32.mrb[0].mxu0
        %v3012 = vadd.f32 %v2787, %v3011
        %v3013 = vpop.f32.mrb[0].mxu0
        %3014 = vmatprep.mubr.f32.mxu0 %v2311
        %3015 = vmatmul.mubr.f32.gmra.mrb[0].mxu0 %v2531
        %v3016 = vpop.f32.mrb[0].mxu0
        %v3017 = vadd.f32 %v2792, %v3016
        %v3018 = vpop.f32.mrb[0].mxu0
        %3019 = vmatprep.mubr.f32.mxu0 %v2245
        %3020 = vmatmul.mubr.f32.gmra.mrb[0].mxu0 %v2533
        %v3021 = vpop.f32.mrb[0].mxu0
        %v3022 = vadd.f32 %v2797, %v3021
        %v3023 = vpop.f32.mrb[0].mxu0
        %3024 = vmatprep.mubr.f32.mxu0 %v2312
        %3025 = vmatmul.mubr.f32.gmra.mrb[0].mxu0 %v2536
        %v3026 = vpop.f32.mrb[0].mxu0
        %v3027 = vadd.f32 %v2802, %v3026
        %v3028 = vpop.f32.mrb[0].mxu0
        %3029 = vmatprep.mubr.f32.mxu0 %v2248
        %3030 = vmatmul.mubr.f32.gmra.mrb[0].mxu0 %v2538
        %v3031 = vpop.f32.mrb[0].mxu0
        %v3032 = vadd.f32 %v2807, %v3031
        %v3033 = vpop.f32.mrb[0].mxu0
        %3034 = vdwg.mxu0
        %3035 = vmatprep.subr.mxu0 0.0
        %3036 = vmatpush1.msra.mxu0 %v2089
        %3037 = vmatprep.subr.mxu0 0.0
        %3038 = vmatpush1.msra.mxu0 %v2090
        %3039 = vmatprep.subr.mxu0 0.0
        %3040 = vmatpush1.msra.mxu0 %v2091
        %3041 = vmatprep.subr.mxu0 0.0
        %3042 = vmatpush1.msra.mxu0 %v2092
        %3043 = vmatprep.subr.mxu0 0.0
        %3044 = vmatpush1.msra.mxu0 %v2093
        %3045 = vmatprep.subr.mxu0 0.0
        %3046 = vmatpush1.msra.mxu0 %v2094
        %3047 = vmatprep.subr.mxu0 0.0
        %3048 = vmatpush1.msra.mxu0 %v2095
        %3049 = vmatprep.subr.mxu0 0.0
        %3050 = vmatpush1.msra.mxu0 %v2096
        %3051 = vmatprep.subr.mxu0 0.0
        %3052 = vmatpush1.msra.mxu0 %v2097
        %3053 = vmatprep.subr.mxu0 0.0
        %3054 = vmatpush1.msra.mxu0 %v2098
        %3055 = vmatprep.subr.mxu0 0.0
        %3056 = vmatpush1.msra.mxu0 %v2099
        %3057 = vmatprep.subr.mxu0 0.0
        %3058 = vmatpush1.msra.mxu0 %v2100
        %3059 = vmatprep.subr.mxu0 0.0
        %3060 = vmatpush1.msra.mxu0 %v2101
        %3061 = vmatprep.subr.mxu0 0.0
        %3062 = vmatpush1.msra.mxu0 %v2102
        %3063 = vmatprep.subr.mxu0 0.0
        %3064 = vmatpush1.msra.mxu0 %v2103
        %3065 = vmatprep.subr.mxu0 0.0
        %3066 = vmatpush1.msra.mxu0 %v2104
        %3067 = vmatprep.subr.mxu0 0.0
        %3068 = vmatpush1.msra.mxu0 %v2105
        %3069 = vmatprep.subr.mxu0 0.0
        %3070 = vmatpush1.msra.mxu0 %v2106
        %3071 = vmatprep.subr.mxu0 0.0
        %3072 = vmatpush1.msra.mxu0 %v2107
        %3073 = vmatprep.subr.mxu0 0.0
        %3074 = vmatpush1.msra.mxu0 %v2108
        %3075 = vmatprep.subr.mxu0 0.0
        %3076 = vmatpush1.msra.mxu0 %v2109
        %3077 = vmatprep.subr.mxu0 0.0
        %3078 = vmatpush1.msra.mxu0 %v2110
        %3079 = vmatprep.subr.mxu0 0.0
        %3080 = vmatpush1.msra.mxu0 %v2111
        %3081 = vmatprep.subr.mxu0 0.0
        %3082 = vmatpush1.msra.mxu0 %v2112
        %3083 = vmatprep.subr.mxu0 0.0
        %3084 = vmatpush1.msra.mxu0 %v2113
        %3085 = vmatprep.subr.mxu0 0.0
        %3086 = vmatpush1.msra.mxu0 %v2114
        %3087 = vmatprep.subr.mxu0 0.0
        %3088 = vmatpush1.msra.mxu0 %v2115
        %3089 = vmatprep.subr.mxu0 0.0
        %3090 = vmatpush1.msra.mxu0 %v2116
        %3091 = vmatprep.subr.mxu0 0.0
        %3092 = vmatpush1.msra.mxu0 %v2117
        %3093 = vmatprep.subr.mxu0 0.0
        %3094 = vmatpush1.msra.mxu0 %v2118
        %3095 = vmatprep.subr.mxu0 0.0
        %3096 = vmatpush1.msra.mxu0 %v2119
        %3097 = vmatprep.subr.mxu0 0.0
        %3098 = vmatpush1.msra.mxu0 %v2120
        %3099 = vmatprep.mubr.f32.mxu0 %v2466
        %3100 = vmatmul.mubr.f32.gmra.mrb[0].mxu0 %v2361
        %v3101 = vpop.f32.mrb[0].mxu0
        %v3102 = vadd.f32 %v2877, %v3101
        %v3103 = vpop.f32.mrb[0].mxu0
        %3104 = vmatprep.mubr.f32.mxu0 %v2468
        %3105 = vmatmul.mubr.f32.gmra.mrb[0].mxu0 %v2363
        %v3106 = vpop.f32.mrb[0].mxu0
        %v3107 = vadd.f32 %v2882, %v3106
        %v3108 = vpop.f32.mrb[0].mxu0
        %3109 = vmatprep.mubr.f32.mxu0 %v2471
        %3110 = vmatmul.mubr.f32.gmra.mrb[0].mxu0 %v2366
        %v3111 = vpop.f32.mrb[0].mxu0
        %v3112 = vadd.f32 %v2887, %v3111
        %v3113 = vpop.f32.mrb[0].mxu0
        %3114 = vmatprep.mubr.f32.mxu0 %v2473
        %3115 = vmatmul.mubr.f32.gmra.mrb[0].mxu0 %v2368
        %v3116 = vpop.f32.mrb[0].mxu0
        %v3117 = vadd.f32 %v2892, %v3116
        %v3118 = vpop.f32.mrb[0].mxu0
        %3119 = vmatprep.mubr.f32.mxu0 %v2476
        %3120 = vmatmul.mubr.f32.gmra.mrb[0].mxu0 %v2371
        %v3121 = vpop.f32.mrb[0].mxu0
        %v3122 = vadd.f32 %v2897, %v3121
        %v3123 = vpop.f32.mrb[0].mxu0
        %3124 = vmatprep.mubr.f32.mxu0 %v2478
        %3125 = vmatmul.mubr.f32.gmra.mrb[0].mxu0 %v2373
        %v3126 = vpop.f32.mrb[0].mxu0
        %v3127 = vadd.f32 %v2902, %v3126
        %v3128 = vpop.f32.mrb[0].mxu0
        %3129 = vmatprep.mubr.f32.mxu0 %v2481
        %3130 = vmatmul.mubr.f32.gmra.mrb[0].mxu0 %v2376
        %v3131 = vpop.f32.mrb[0].mxu0
        %v3132 = vadd.f32 %v2907, %v3131
        %v3133 = vpop.f32.mrb[0].mxu0
        %3134 = vmatprep.mubr.f32.mxu0 %v2483
        %3135 = vmatmul.mubr.f32.gmra.mrb[0].mxu0 %v2378
        %v3136 = vpop.f32.mrb[0].mxu0
        %v3137 = vadd.f32 %v2912, %v3136
        %v3138 = vpop.f32.mrb[0].mxu0
        %3139 = vmatprep.mubr.f32.mxu0 %v2486
        %3140 = vmatmul.mubr.f32.gmra.mrb[0].mxu0 %v2381
        %v3141 = vpop.f32.mrb[0].mxu0
        %v3142 = vadd.f32 %v2917, %v3141
        %v3143 = vpop.f32.mrb[0].mxu0
        %3144 = vmatprep.mubr.f32.mxu0 %v2488
        %3145 = vmatmul.mubr.f32.gmra.mrb[0].mxu0 %v2383
        %v3146 = vpop.f32.mrb[0].mxu0
        %v3147 = vadd.f32 %v2922, %v3146
        %v3148 = vpop.f32.mrb[0].mxu0
        %3149 = vmatprep.mubr.f32.mxu0 %v2491
        %3150 = vmatmul.mubr.f32.gmra.mrb[0].mxu0 %v2386
        %v3151 = vpop.f32.mrb[0].mxu0
        %v3152 = vadd.f32 %v2927, %v3151
        %v3153 = vpop.f32.mrb[0].mxu0
        %3154 = vmatprep.mubr.f32.mxu0 %v2493
        %3155 = vmatmul.mubr.f32.gmra.mrb[0].mxu0 %v2388
        %v3156 = vpop.f32.mrb[0].mxu0
        %v3157 = vadd.f32 %v2932, %v3156
        %v3158 = vpop.f32.mrb[0].mxu0
        %3159 = vmatprep.mubr.f32.mxu0 %v2496
        %3160 = vmatmul.mubr.f32.gmra.mrb[0].mxu0 %v2391
        %v3161 = vpop.f32.mrb[0].mxu0
        %v3162 = vadd.f32 %v2937, %v3161
        %v3163 = vpop.f32.mrb[0].mxu0
        %3164 = vmatprep.mubr.f32.mxu0 %v2498
        %3165 = vmatmul.mubr.f32.gmra.mrb[0].mxu0 %v2393
        %v3166 = vpop.f32.mrb[0].mxu0
        %v3167 = vadd.f32 %v2942, %v3166
        %v3168 = vpop.f32.mrb[0].mxu0
        %3169 = vmatprep.mubr.f32.mxu0 %v2501
        %3170 = vmatmul.mubr.f32.gmra.mrb[0].mxu0 %v2396
        %v3171 = vpop.f32.mrb[0].mxu0
        %v3172 = vadd.f32 %v2947, %v3171
        %v3173 = vpop.f32.mrb[0].mxu0
        %3174 = vmatprep.mubr.f32.mxu0 %v2503
        %3175 = vmatmul.mubr.f32.gmra.mrb[0].mxu0 %v2398
        %v3176 = vpop.f32.mrb[0].mxu0
        %v3177 = vadd.f32 %v2952, %v3176
        %v3178 = vpop.f32.mrb[0].mxu0
        %3179 = vmatprep.mubr.f32.mxu0 %v2506
        %3180 = vmatmul.mubr.f32.gmra.mrb[0].mxu0 %v2401
        %v3181 = vpop.f32.mrb[0].mxu0
        %v3182 = vadd.f32 %v2957, %v3181
        %v3183 = vpop.f32.mrb[0].mxu0
        %3184 = vmatprep.mubr.f32.mxu0 %v2508
        %3185 = vmatmul.mubr.f32.gmra.mrb[0].mxu0 %v2403
        %v3186 = vpop.f32.mrb[0].mxu0
        %v3187 = vadd.f32 %v2962, %v3186
        %v3188 = vpop.f32.mrb[0].mxu0
        %3189 = vmatprep.mubr.f32.mxu0 %v2511
        %3190 = vmatmul.mubr.f32.gmra.mrb[0].mxu0 %v2406
        %v3191 = vpop.f32.mrb[0].mxu0
        %v3192 = vadd.f32 %v2967, %v3191
        %v3193 = vpop.f32.mrb[0].mxu0
        %3194 = vmatprep.mubr.f32.mxu0 %v2513
        %3195 = vmatmul.mubr.f32.gmra.mrb[0].mxu0 %v2408
        %v3196 = vpop.f32.mrb[0].mxu0
        %v3197 = vadd.f32 %v2972, %v3196
        %v3198 = vpop.f32.mrb[0].mxu0
        %3199 = vmatprep.mubr.f32.mxu0 %v2516
        %3200 = vmatmul.mubr.f32.gmra.mrb[0].mxu0 %v2411
        %v3201 = vpop.f32.mrb[0].mxu0
        %v3202 = vadd.f32 %v2977, %v3201
        %v3203 = vpop.f32.mrb[0].mxu0
        %3204 = vmatprep.mubr.f32.mxu0 %v2518
        %3205 = vmatmul.mubr.f32.gmra.mrb[0].mxu0 %v2413
        %v3206 = vpop.f32.mrb[0].mxu0
        %v3207 = vadd.f32 %v2982, %v3206
        %v3208 = vpop.f32.mrb[0].mxu0
        %3209 = vmatprep.mubr.f32.mxu0 %v2521
        %3210 = vmatmul.mubr.f32.gmra.mrb[0].mxu0 %v2416
        %v3211 = vpop.f32.mrb[0].mxu0
        %v3212 = vadd.f32 %v2987, %v3211
        %v3213 = vpop.f32.mrb[0].mxu0
        %3214 = vmatprep.mubr.f32.mxu0 %v2523
        %3215 = vmatmul.mubr.f32.gmra.mrb[0].mxu0 %v2418
        %v3216 = vpop.f32.mrb[0].mxu0
        %v3217 = vadd.f32 %v2992, %v3216
        %v3218 = vpop.f32.mrb[0].mxu0
        %3219 = vmatprep.mubr.f32.mxu0 %v2526
        %3220 = vmatmul.mubr.f32.gmra.mrb[0].mxu0 %v2421
        %v3221 = vpop.f32.mrb[0].mxu0
        %v3222 = vadd.f32 %v2997, %v3221
        %v3223 = vpop.f32.mrb[0].mxu0
        %3224 = vmatprep.mubr.f32.mxu0 %v2528
        %3225 = vmatmul.mubr.f32.gmra.mrb[0].mxu0 %v2423
        %v3226 = vpop.f32.mrb[0].mxu0
        %v3227 = vadd.f32 %v3002, %v3226
        %v3228 = vpop.f32.mrb[0].mxu0
        %3229 = vmatprep.mubr.f32.mxu0 %v2531
        %3230 = vmatmul.mubr.f32.gmra.mrb[0].mxu0 %v2426
        %v3231 = vpop.f32.mrb[0].mxu0
        %v3232 = vadd.f32 %v3007, %v3231
        %v3233 = vpop.f32.mrb[0].mxu0
        %3234 = vmatprep.mubr.f32.mxu0 %v2533
        %3235 = vmatmul.mubr.f32.gmra.mrb[0].mxu0 %v2428
        %v3236 = vpop.f32.mrb[0].mxu0
        %v3237 = vadd.f32 %v3012, %v3236
        %v3238 = vpop.f32.mrb[0].mxu0
        %3239 = vmatprep.mubr.f32.mxu0 %v2536
        %3240 = vmatmul.mubr.f32.gmra.mrb[0].mxu0 %v2431
        %v3241 = vpop.f32.mrb[0].mxu0
        %v3242 = vadd.f32 %v3017, %v3241
        %v3243 = vpop.f32.mrb[0].mxu0
        %3244 = vmatprep.mubr.f32.mxu0 %v2538
        %3245 = vmatmul.mubr.f32.gmra.mrb[0].mxu0 %v2433
        %v3246 = vpop.f32.mrb[0].mxu0
        %v3247 = vadd.f32 %v3022, %v3246
        %v3248 = vpop.f32.mrb[0].mxu0
        %3249 = vmatprep.mubr.f32.mxu0 %v2580
        %3250 = vmatmul.mubr.f32.gmra.mrb[0].mxu0 %v2573
        %v3251 = vpop.f32.mrb[0].mxu0
        %v3252 = vadd.f32 %v3027, %v3251
        %v3253 = vpop.f32.mrb[0].mxu0
        %3254 = vmatprep.mubr.f32.mxu0 %v2582
        %3255 = vmatmul.mubr.f32.gmra.mrb[0].mxu0 %v2575
        %v3256 = vpop.f32.mrb[0].mxu0
        %v3257 = vadd.f32 %v3032, %v3256
        %v3258 = vpop.f32.mrb[0].mxu0
        %3259 = vdwg.mxu0
        %3260 = vmatprep.subr.mxu0 0.0
        %3261 = vmatpush1.msra.mxu0 %v2121
        %3262 = vmatprep.subr.mxu0 0.0
        %3263 = vmatpush1.msra.mxu0 %v2122
        %3264 = vmatprep.subr.mxu0 0.0
        %3265 = vmatpush1.msra.mxu0 %v2123
        %3266 = vmatprep.subr.mxu0 0.0
        %3267 = vmatpush1.msra.mxu0 %v2124
        %3268 = vmatprep.subr.mxu0 0.0
        %3269 = vmatpush1.msra.mxu0 %v2125
        %3270 = vmatprep.subr.mxu0 0.0
        %3271 = vmatpush1.msra.mxu0 %v2126
        %3272 = vmatprep.subr.mxu0 0.0
        %3273 = vmatpush1.msra.mxu0 %v2127
        %3274 = vmatprep.subr.mxu0 0.0
        %3275 = vmatpush1.msra.mxu0 %v2128
        %3276 = vmatprep.subr.mxu0 0.0
        %3277 = vmatpush1.msra.mxu0 %v2129
        %3278 = vmatprep.subr.mxu0 0.0
        %3279 = vmatpush1.msra.mxu0 %v2130
        %3280 = vmatprep.subr.mxu0 0.0
        %3281 = vmatpush1.msra.mxu0 %v2131
        %3282 = vmatprep.subr.mxu0 0.0
        %3283 = vmatpush1.msra.mxu0 %v2132
        %3284 = vmatprep.subr.mxu0 0.0
        %3285 = vmatpush1.msra.mxu0 %v2133
        %3286 = vmatprep.subr.mxu0 0.0
        %3287 = vmatpush1.msra.mxu0 %v2134
        %3288 = vmatprep.subr.mxu0 0.0
        %3289 = vmatpush1.msra.mxu0 %v2135
        %3290 = vmatprep.subr.mxu0 0.0
        %3291 = vmatpush1.msra.mxu0 %v2136
        %3292 = vmatprep.subr.mxu0 0.0
        %3293 = vmatpush1.msra.mxu0 %v2137
        %3294 = vmatprep.subr.mxu0 0.0
        %3295 = vmatpush1.msra.mxu0 %v2138
        %3296 = vmatprep.subr.mxu0 0.0
        %3297 = vmatpush1.msra.mxu0 %v2139
        %3298 = vmatprep.subr.mxu0 0.0
        %3299 = vmatpush1.msra.mxu0 %v2140
        %3300 = vmatprep.subr.mxu0 0.0
        %3301 = vmatpush1.msra.mxu0 %v2141
        %3302 = vmatprep.subr.mxu0 0.0
        %3303 = vmatpush1.msra.mxu0 %v2142
        %3304 = vmatprep.subr.mxu0 0.0
        %3305 = vmatpush1.msra.mxu0 %v2143
        %3306 = vmatprep.subr.mxu0 0.0
        %3307 = vmatpush1.msra.mxu0 %v2144
        %3308 = vmatprep.subr.mxu0 0.0
        %3309 = vmatpush1.msra.mxu0 %v2145
        %3310 = vmatprep.subr.mxu0 0.0
        %3311 = vmatpush1.msra.mxu0 %v2146
        %3312 = vmatprep.subr.mxu0 0.0
        %3313 = vmatpush1.msra.mxu0 %v2147
        %3314 = vmatprep.subr.mxu0 0.0
        %3315 = vmatpush1.msra.mxu0 %v2148
        %3316 = vmatprep.subr.mxu0 0.0
        %3317 = vmatpush1.msra.mxu0 %v2149
        %3318 = vmatprep.subr.mxu0 0.0
        %3319 = vmatpush1.msra.mxu0 %v2150
        %3320 = vmatprep.subr.mxu0 0.0
        %3321 = vmatpush1.msra.mxu0 %v2151
        %3322 = vmatprep.subr.mxu0 0.0
        %3323 = vmatpush1.msra.mxu0 %v2152
        %3324 = vmatprep.mubr.f32.mxu0 %v2366
        %3325 = vmatmul.mubr.f32.gmra.mrb[0].mxu0 %v2298
        %v3326 = vpop.f32.mrb[0].mxu0
        %v3327 = vadd.f32 %v3102, %v3326
        %v3328 = vpop.f32.mrb[0].mxu0
        %3329 = vmatprep.mubr.f32.mxu0 %v2368
        %3330 = vmatmul.mubr.f32.gmra.mrb[0].mxu0 %v2206
        %v3331 = vpop.f32.mrb[0].mxu0
        %v3332 = vadd.f32 %v3107, %v3331
        %v3333 = vpop.f32.mrb[0].mxu0
        %3334 = vmatprep.mubr.f32.mxu0 %v2371
        %3335 = vmatmul.mubr.f32.gmra.mrb[0].mxu0 %v2299
        %v3336 = vpop.f32.mrb[0].mxu0
        %v3337 = vadd.f32 %v3112, %v3336
        %v3338 = vpop.f32.mrb[0].mxu0
        %3339 = vmatprep.mubr.f32.mxu0 %v2373
        %3340 = vmatmul.mubr.f32.gmra.mrb[0].mxu0 %v2209
        %v3341 = vpop.f32.mrb[0].mxu0
        %v3342 = vadd.f32 %v3117, %v3341
        %v3343 = vpop.f32.mrb[0].mxu0
        %3344 = vmatprep.mubr.f32.mxu0 %v2376
        %3345 = vmatmul.mubr.f32.gmra.mrb[0].mxu0 %v2300
        %v3346 = vpop.f32.mrb[0].mxu0
        %v3347 = vadd.f32 %v3122, %v3346
        %v3348 = vpop.f32.mrb[0].mxu0
        %3349 = vmatprep.mubr.f32.mxu0 %v2378
        %3350 = vmatmul.mubr.f32.gmra.mrb[0].mxu0 %v2212
        %v3351 = vpop.f32.mrb[0].mxu0
        %v3352 = vadd.f32 %v3127, %v3351
        %v3353 = vpop.f32.mrb[0].mxu0
        %3354 = vmatprep.mubr.f32.mxu0 %v2381
        %3355 = vmatmul.mubr.f32.gmra.mrb[0].mxu0 %v2301
        %v3356 = vpop.f32.mrb[0].mxu0
        %v3357 = vadd.f32 %v3132, %v3356
        %v3358 = vpop.f32.mrb[0].mxu0
        %3359 = vmatprep.mubr.f32.mxu0 %v2383
        %3360 = vmatmul.mubr.f32.gmra.mrb[0].mxu0 %v2215
        %v3361 = vpop.f32.mrb[0].mxu0
        %v3362 = vadd.f32 %v3137, %v3361
        %v3363 = vpop.f32.mrb[0].mxu0
        %3364 = vmatprep.mubr.f32.mxu0 %v2386
        %3365 = vmatmul.mubr.f32.gmra.mrb[0].mxu0 %v2302
        %v3366 = vpop.f32.mrb[0].mxu0
        %v3367 = vadd.f32 %v3142, %v3366
        %v3368 = vpop.f32.mrb[0].mxu0
        %3369 = vmatprep.mubr.f32.mxu0 %v2388
        %3370 = vmatmul.mubr.f32.gmra.mrb[0].mxu0 %v2218
        %v3371 = vpop.f32.mrb[0].mxu0
        %v3372 = vadd.f32 %v3147, %v3371
        %v3373 = vpop.f32.mrb[0].mxu0
        %3374 = vmatprep.mubr.f32.mxu0 %v2391
        %3375 = vmatmul.mubr.f32.gmra.mrb[0].mxu0 %v2303
        %v3376 = vpop.f32.mrb[0].mxu0
        %v3377 = vadd.f32 %v3152, %v3376
        %v3378 = vpop.f32.mrb[0].mxu0
        %3379 = vmatprep.mubr.f32.mxu0 %v2393
        %3380 = vmatmul.mubr.f32.gmra.mrb[0].mxu0 %v2221
        %v3381 = vpop.f32.mrb[0].mxu0
        %v3382 = vadd.f32 %v3157, %v3381
        %v3383 = vpop.f32.mrb[0].mxu0
        %3384 = vmatprep.mubr.f32.mxu0 %v2396
        %3385 = vmatmul.mubr.f32.gmra.mrb[0].mxu0 %v2304
        %v3386 = vpop.f32.mrb[0].mxu0
        %v3387 = vadd.f32 %v3162, %v3386
        %v3388 = vpop.f32.mrb[0].mxu0
        %3389 = vmatprep.mubr.f32.mxu0 %v2398
        %3390 = vmatmul.mubr.f32.gmra.mrb[0].mxu0 %v2224
        %v3391 = vpop.f32.mrb[0].mxu0
        %v3392 = vadd.f32 %v3167, %v3391
        %v3393 = vpop.f32.mrb[0].mxu0
        %3394 = vmatprep.mubr.f32.mxu0 %v2401
        %3395 = vmatmul.mubr.f32.gmra.mrb[0].mxu0 %v2305
        %v3396 = vpop.f32.mrb[0].mxu0
        %v3397 = vadd.f32 %v3172, %v3396
        %v3398 = vpop.f32.mrb[0].mxu0
        %3399 = vmatprep.mubr.f32.mxu0 %v2403
        %3400 = vmatmul.mubr.f32.gmra.mrb[0].mxu0 %v2227
        %v3401 = vpop.f32.mrb[0].mxu0
        %v3402 = vadd.f32 %v3177, %v3401
        %v3403 = vpop.f32.mrb[0].mxu0
        %3404 = vmatprep.mubr.f32.mxu0 %v2406
        %3405 = vmatmul.mubr.f32.gmra.mrb[0].mxu0 %v2306
        %v3406 = vpop.f32.mrb[0].mxu0
        %v3407 = vadd.f32 %v3182, %v3406
        %v3408 = vpop.f32.mrb[0].mxu0
        %3409 = vmatprep.mubr.f32.mxu0 %v2408
        %3410 = vmatmul.mubr.f32.gmra.mrb[0].mxu0 %v2230
        %v3411 = vpop.f32.mrb[0].mxu0
        %v3412 = vadd.f32 %v3187, %v3411
        %v3413 = vpop.f32.mrb[0].mxu0
        %3414 = vmatprep.mubr.f32.mxu0 %v2411
        %3415 = vmatmul.mubr.f32.gmra.mrb[0].mxu0 %v2307
        %v3416 = vpop.f32.mrb[0].mxu0
        %v3417 = vadd.f32 %v3192, %v3416
        %v3418 = vpop.f32.mrb[0].mxu0
        %3419 = vmatprep.mubr.f32.mxu0 %v2413
        %3420 = vmatmul.mubr.f32.gmra.mrb[0].mxu0 %v2233
        %v3421 = vpop.f32.mrb[0].mxu0
        %v3422 = vadd.f32 %v3197, %v3421
        %v3423 = vpop.f32.mrb[0].mxu0
        %3424 = vmatprep.mubr.f32.mxu0 %v2416
        %3425 = vmatmul.mubr.f32.gmra.mrb[0].mxu0 %v2308
        %v3426 = vpop.f32.mrb[0].mxu0
        %v3427 = vadd.f32 %v3202, %v3426
        %v3428 = vpop.f32.mrb[0].mxu0
        %3429 = vmatprep.mubr.f32.mxu0 %v2418
        %3430 = vmatmul.mubr.f32.gmra.mrb[0].mxu0 %v2236
        %v3431 = vpop.f32.mrb[0].mxu0
        %v3432 = vadd.f32 %v3207, %v3431
        %v3433 = vpop.f32.mrb[0].mxu0
        %3434 = vmatprep.mubr.f32.mxu0 %v2421
        %3435 = vmatmul.mubr.f32.gmra.mrb[0].mxu0 %v2309
        %v3436 = vpop.f32.mrb[0].mxu0
        %v3437 = vadd.f32 %v3212, %v3436
        %v3438 = vpop.f32.mrb[0].mxu0
        %3439 = vmatprep.mubr.f32.mxu0 %v2423
        %3440 = vmatmul.mubr.f32.gmra.mrb[0].mxu0 %v2239
        %v3441 = vpop.f32.mrb[0].mxu0
        %v3442 = vadd.f32 %v3217, %v3441
        %v3443 = vpop.f32.mrb[0].mxu0
        %3444 = vmatprep.mubr.f32.mxu0 %v2426
        %3445 = vmatmul.mubr.f32.gmra.mrb[0].mxu0 %v2310
        %v3446 = vpop.f32.mrb[0].mxu0
        %v3447 = vadd.f32 %v3222, %v3446
        %v3448 = vpop.f32.mrb[0].mxu0
        %3449 = vmatprep.mubr.f32.mxu0 %v2428
        %3450 = vmatmul.mubr.f32.gmra.mrb[0].mxu0 %v2242
        %v3451 = vpop.f32.mrb[0].mxu0
        %v3452 = vadd.f32 %v3227, %v3451
        %v3453 = vpop.f32.mrb[0].mxu0
        %3454 = vmatprep.mubr.f32.mxu0 %v2431
        %3455 = vmatmul.mubr.f32.gmra.mrb[0].mxu0 %v2311
        %v3456 = vpop.f32.mrb[0].mxu0
        %v3457 = vadd.f32 %v3232, %v3456
        %v3458 = vpop.f32.mrb[0].mxu0
        %3459 = vmatprep.mubr.f32.mxu0 %v2433
        %3460 = vmatmul.mubr.f32.gmra.mrb[0].mxu0 %v2245
        %v3461 = vpop.f32.mrb[0].mxu0
        %v3462 = vadd.f32 %v3237, %v3461
        %v3463 = vpop.f32.mrb[0].mxu0
        %3464 = vmatprep.mubr.f32.mxu0 %v2573
        %3465 = vmatmul.mubr.f32.gmra.mrb[0].mxu0 %v2312
        %v3466 = vpop.f32.mrb[0].mxu0
        %v3467 = vadd.f32 %v3242, %v3466
        %v3468 = vpop.f32.mrb[0].mxu0
        %3469 = vmatprep.mubr.f32.mxu0 %v2575
        %3470 = vmatmul.mubr.f32.gmra.mrb[0].mxu0 %v2248
        %v3471 = vpop.f32.mrb[0].mxu0
        %v3472 = vadd.f32 %v3247, %v3471
        %v3473 = vpop.f32.mrb[0].mxu0
        %3474 = vmatprep.mubr.f32.mxu0 %v629
        %3475 = vmatmul.mubr.f32.gmra.mrb[0].mxu0 %v560
        %v3476 = vpop.f32.mrb[0].mxu0
        %v3477 = vadd.f32 %v3252, %v3476
        %v3478 = vpop.f32.mrb[0].mxu0
        %3479 = vmatprep.mubr.f32.mxu0 %v631
        %3480 = vmatmul.mubr.f32.gmra.mrb[0].mxu0 %v461
        %v3481 = vpop.f32.mrb[0].mxu0
        %v3482 = vadd.f32 %v3257, %v3481
        %v3483 = vpop.f32.mrb[0].mxu0
        %3484 = vdwg.mxu0
        %3485 = vmatprep.subr.mxu0 0.0
        %3486 = vmatpush1.msra.mxu0 %v2153
        %3487 = vmatprep.subr.mxu0 0.0
        %3488 = vmatpush1.msra.mxu0 %v2154
        %3489 = vmatprep.subr.mxu0 0.0
        %3490 = vmatpush1.msra.mxu0 %v2155
        %3491 = vmatprep.subr.mxu0 0.0
        %3492 = vmatpush1.msra.mxu0 %v2156
        %3493 = vmatprep.subr.mxu0 0.0
        %3494 = vmatpush1.msra.mxu0 %v2157
        %3495 = vmatprep.subr.mxu0 0.0
        %3496 = vmatpush1.msra.mxu0 %v2158
        %3497 = vmatprep.subr.mxu0 0.0
        %3498 = vmatpush1.msra.mxu0 %v2159
        %3499 = vmatprep.subr.mxu0 0.0
        %3500 = vmatpush1.msra.mxu0 %v2160
        %3501 = vmatprep.subr.mxu0 0.0
        %3502 = vmatpush1.msra.mxu0 %v2161
        %3503 = vmatprep.subr.mxu0 0.0
        %3504 = vmatpush1.msra.mxu0 %v2162
        %3505 = vmatprep.subr.mxu0 0.0
        %3506 = vmatpush1.msra.mxu0 %v2163
        %3507 = vmatprep.subr.mxu0 0.0
        %3508 = vmatpush1.msra.mxu0 %v2164
        %3509 = vmatprep.subr.mxu0 0.0
        %3510 = vmatpush1.msra.mxu0 %v2165
        %3511 = vmatprep.subr.mxu0 0.0
        %3512 = vmatpush1.msra.mxu0 %v2166
        %3513 = vmatprep.subr.mxu0 0.0
        %3514 = vmatpush1.msra.mxu0 %v2167
        %3515 = vmatprep.subr.mxu0 0.0
        %3516 = vmatpush1.msra.mxu0 %v2168
        %3517 = vmatprep.subr.mxu0 0.0
        %3518 = vmatpush1.msra.mxu0 0.0
        %3519 = vmatprep.subr.mxu0 0.0
        %3520 = vmatpush1.msra.mxu0 0.0
        %3521 = vmatprep.subr.mxu0 0.0
        %3522 = vmatpush1.msra.mxu0 0.0
        %3523 = vmatprep.subr.mxu0 0.0
        %3524 = vmatpush1.msra.mxu0 0.0
        %3525 = vmatprep.subr.mxu0 0.0
        %3526 = vmatpush1.msra.mxu0 0.0
        %3527 = vmatprep.subr.mxu0 0.0
        %3528 = vmatpush1.msra.mxu0 0.0
        %3529 = vmatprep.subr.mxu0 0.0
        %3530 = vmatpush1.msra.mxu0 0.0
        %3531 = vmatprep.subr.mxu0 0.0
        %3532 = vmatpush1.msra.mxu0 0.0
        %3533 = vmatprep.subr.mxu0 0.0
        %3534 = vmatpush1.msra.mxu0 0.0
        %3535 = vmatprep.subr.mxu0 0.0
        %3536 = vmatpush1.msra.mxu0 0.0
        %3537 = vmatprep.subr.mxu0 0.0
        %3538 = vmatpush1.msra.mxu0 0.0
        %3539 = vmatprep.subr.mxu0 0.0
        %3540 = vmatpush1.msra.mxu0 0.0
        %3541 = vmatprep.subr.mxu0 0.0
        %3542 = vmatpush1.msra.mxu0 0.0
        %3543 = vmatprep.subr.mxu0 0.0
        %3544 = vmatpush1.msra.mxu0 0.0
        %3545 = vmatprep.subr.mxu0 0.0
        %3546 = vmatpush1.msra.mxu0 0.0
        %3547 = vmatprep.subr.mxu0 0.0
        %3548 = vmatpush1.msra.mxu0 0.0
        %3549 = vmatprep.mubr.f32.mxu0 0.0
        %3550 = vmatmul.mubr.f32.gmra.mrb[0].mxu0 %v2471
        %v3551 = vpop.f32.mrb[0].mxu0
        %v3552 = vadd.f32 %v3327, %v3551
        %v3553 = vpop.f32.mrb[0].mxu0
        %3554 = vmatprep.mubr.f32.mxu0 0.0
        %3555 = vmatmul.mubr.f32.gmra.mrb[0].mxu0 %v2473
        %v3556 = vpop.f32.mrb[0].mxu0
        %v3557 = vadd.f32 %v3332, %v3556
        %v3558 = vpop.f32.mrb[0].mxu0
        %3559 = vmatprep.mubr.f32.mxu0 0.0
        %3560 = vmatmul.mubr.f32.gmra.mrb[0].mxu0 %v2476
        %v3561 = vpop.f32.mrb[0].mxu0
        %v3562 = vadd.f32 %v3337, %v3561
        %v3563 = vpop.f32.mrb[0].mxu0
        %3564 = vmatprep.mubr.f32.mxu0 0.0
        %3565 = vmatmul.mubr.f32.gmra.mrb[0].mxu0 %v2478
        %v3566 = vpop.f32.mrb[0].mxu0
        %v3567 = vadd.f32 %v3342, %v3566
        %v3568 = vpop.f32.mrb[0].mxu0
        %3569 = vmatprep.mubr.f32.mxu0 0.0
        %3570 = vmatmul.mubr.f32.gmra.mrb[0].mxu0 %v2481
        %v3571 = vpop.f32.mrb[0].mxu0
        %v3572 = vadd.f32 %v3347, %v3571
        %v3573 = vpop.f32.mrb[0].mxu0
        %3574 = vmatprep.mubr.f32.mxu0 0.0
        %3575 = vmatmul.mubr.f32.gmra.mrb[0].mxu0 %v2483
        %v3576 = vpop.f32.mrb[0].mxu0
        %v3577 = vadd.f32 %v3352, %v3576
        %v3578 = vpop.f32.mrb[0].mxu0
        %3579 = vmatprep.mubr.f32.mxu0 0.0
        %3580 = vmatmul.mubr.f32.gmra.mrb[0].mxu0 %v2486
        %v3581 = vpop.f32.mrb[0].mxu0
        %v3582 = vadd.f32 %v3357, %v3581
        %v3583 = vpop.f32.mrb[0].mxu0
        %3584 = vmatprep.mubr.f32.mxu0 0.0
        %3585 = vmatmul.mubr.f32.gmra.mrb[0].mxu0 %v2488
        %v3586 = vpop.f32.mrb[0].mxu0
        %v3587 = vadd.f32 %v3362, %v3586
        %v3588 = vpop.f32.mrb[0].mxu0
        %3589 = vmatprep.mubr.f32.mxu0 0.0
        %3590 = vmatmul.mubr.f32.gmra.mrb[0].mxu0 %v2491
        %v3591 = vpop.f32.mrb[0].mxu0
        %v3592 = vadd.f32 %v3367, %v3591
        %v3593 = vpop.f32.mrb[0].mxu0
        %3594 = vmatprep.mubr.f32.mxu0 0.0
        %3595 = vmatmul.mubr.f32.gmra.mrb[0].mxu0 %v2493
        %v3596 = vpop.f32.mrb[0].mxu0
        %v3597 = vadd.f32 %v3372, %v3596
        %v3598 = vpop.f32.mrb[0].mxu0
        %3599 = vmatprep.mubr.f32.mxu0 0.0
        %3600 = vmatmul.mubr.f32.gmra.mrb[0].mxu0 %v2496
        %v3601 = vpop.f32.mrb[0].mxu0
        %v3602 = vadd.f32 %v3377, %v3601
        %v3603 = vpop.f32.mrb[0].mxu0
        %3604 = vmatprep.mubr.f32.mxu0 0.0
        %3605 = vmatmul.mubr.f32.gmra.mrb[0].mxu0 %v2498
        %v3606 = vpop.f32.mrb[0].mxu0
        %v3607 = vadd.f32 %v3382, %v3606
        %v3608 = vpop.f32.mrb[0].mxu0
        %3609 = vmatprep.mubr.f32.mxu0 0.0
        %3610 = vmatmul.mubr.f32.gmra.mrb[0].mxu0 %v2501
        %v3611 = vpop.f32.mrb[0].mxu0
        %v3612 = vadd.f32 %v3387, %v3611
        %v3613 = vpop.f32.mrb[0].mxu0
        %3614 = vmatprep.mubr.f32.mxu0 0.0
        %3615 = vmatmul.mubr.f32.gmra.mrb[0].mxu0 %v2503
        %v3616 = vpop.f32.mrb[0].mxu0
        %v3617 = vadd.f32 %v3392, %v3616
        %v3618 = vpop.f32.mrb[0].mxu0
        %3619 = vmatprep.mubr.f32.mxu0 0.0
        %3620 = vmatmul.mubr.f32.gmra.mrb[0].mxu0 %v2506
        %v3621 = vpop.f32.mrb[0].mxu0
        %v3622 = vadd.f32 %v3397, %v3621
        %v3623 = vpop.f32.mrb[0].mxu0
        %3624 = vmatprep.mubr.f32.mxu0 0.0
        %3625 = vmatmul.mubr.f32.gmra.mrb[0].mxu0 %v2508
        %v3626 = vpop.f32.mrb[0].mxu0
        %v3627 = vadd.f32 %v3402, %v3626
        %v3628 = vpop.f32.mrb[0].mxu0
        %3629 = vmatprep.mubr.f32.mxu0 0.0
        %3630 = vmatmul.mubr.f32.gmra.mrb[0].mxu0 %v2511
        %v3631 = vpop.f32.mrb[0].mxu0
        %v3632 = vadd.f32 %v3407, %v3631
        %v3633 = vpop.f32.mrb[0].mxu0
        %3634 = vmatprep.mubr.f32.mxu0 0.0
        %3635 = vmatmul.mubr.f32.gmra.mrb[0].mxu0 %v2513
        %v3636 = vpop.f32.mrb[0].mxu0
        %v3637 = vadd.f32 %v3412, %v3636
        %v3638 = vpop.f32.mrb[0].mxu0
        %3639 = vmatprep.mubr.f32.mxu0 0.0
        %3640 = vmatmul.mubr.f32.gmra.mrb[0].mxu0 %v2516
        %v3641 = vpop.f32.mrb[0].mxu0
        %v3642 = vadd.f32 %v3417, %v3641
        %v3643 = vpop.f32.mrb[0].mxu0
        %3644 = vmatprep.mubr.f32.mxu0 0.0
        %3645 = vmatmul.mubr.f32.gmra.mrb[0].mxu0 %v2518
        %v3646 = vpop.f32.mrb[0].mxu0
        %v3647 = vadd.f32 %v3422, %v3646
        %v3648 = vpop.f32.mrb[0].mxu0
        %3649 = vmatprep.mubr.f32.mxu0 0.0
        %3650 = vmatmul.mubr.f32.gmra.mrb[0].mxu0 %v2521
        %v3651 = vpop.f32.mrb[0].mxu0
        %v3652 = vadd.f32 %v3427, %v3651
        %v3653 = vpop.f32.mrb[0].mxu0
        %3654 = vmatprep.mubr.f32.mxu0 0.0
        %3655 = vmatmul.mubr.f32.gmra.mrb[0].mxu0 %v2523
        %v3656 = vpop.f32.mrb[0].mxu0
        %v3657 = vadd.f32 %v3432, %v3656
        %v3658 = vpop.f32.mrb[0].mxu0
        %3659 = vmatprep.mubr.f32.mxu0 0.0
        %3660 = vmatmul.mubr.f32.gmra.mrb[0].mxu0 %v2526
        %v3661 = vpop.f32.mrb[0].mxu0
        %v3662 = vadd.f32 %v3437, %v3661
        %v3663 = vpop.f32.mrb[0].mxu0
        %3664 = vmatprep.mubr.f32.mxu0 0.0
        %3665 = vmatmul.mubr.f32.gmra.mrb[0].mxu0 %v2528
        %v3666 = vpop.f32.mrb[0].mxu0
        %v3667 = vadd.f32 %v3442, %v3666
        %v3668 = vpop.f32.mrb[0].mxu0
        %3669 = vmatprep.mubr.f32.mxu0 0.0
        %3670 = vmatmul.mubr.f32.gmra.mrb[0].mxu0 %v2531
        %v3671 = vpop.f32.mrb[0].mxu0
        %v3672 = vadd.f32 %v3447, %v3671
        %v3673 = vpop.f32.mrb[0].mxu0
        %3674 = vmatprep.mubr.f32.mxu0 0.0
        %3675 = vmatmul.mubr.f32.gmra.mrb[0].mxu0 %v2533
        %v3676 = vpop.f32.mrb[0].mxu0
        %v3677 = vadd.f32 %v3452, %v3676
        %v3678 = vpop.f32.mrb[0].mxu0
        %3679 = vmatprep.mubr.f32.mxu0 0.0
        %3680 = vmatmul.mubr.f32.gmra.mrb[0].mxu0 %v2536
        %v3681 = vpop.f32.mrb[0].mxu0
        %v3682 = vadd.f32 %v3457, %v3681
        %v3683 = vpop.f32.mrb[0].mxu0
        %3684 = vmatprep.mubr.f32.mxu0 0.0
        %3685 = vmatmul.mubr.f32.gmra.mrb[0].mxu0 %v2538
        %v3686 = vpop.f32.mrb[0].mxu0
        %v3687 = vadd.f32 %v3462, %v3686
        %v3688 = vpop.f32.mrb[0].mxu0
        %3689 = vmatprep.mubr.f32.mxu0 0.0
        %3690 = vmatmul.mubr.f32.gmra.mrb[0].mxu0 %v2580
        %v3691 = vpop.f32.mrb[0].mxu0
        %v3692 = vadd.f32 %v3467, %v3691
        %v3693 = vpop.f32.mrb[0].mxu0
        %3694 = vmatprep.mubr.f32.mxu0 0.0
        %3695 = vmatmul.mubr.f32.gmra.mrb[0].mxu0 %v2582
        %v3696 = vpop.f32.mrb[0].mxu0
        %v3697 = vadd.f32 %v3472, %v3696
        %v3698 = vpop.f32.mrb[0].mxu0
        %3699 = vmatprep.mubr.f32.mxu0 0.0
        %3700 = vmatmul.mubr.f32.gmra.mrb[0].mxu0 %v742
        %v3701 = vpop.f32.mrb[0].mxu0
        %v3702 = vadd.f32 %v3477, %v3701
        %v3703 = vpop.f32.mrb[0].mxu0
        %3704 = vmatprep.mubr.f32.mxu0 0.0
        %3705 = vmatmul.mubr.f32.gmra.mrb[0].mxu0 %v744
        %v3706 = vpop.f32.mrb[0].mxu0
        %v3707 = vadd.f32 %v3482, %v3706
        %v3708 = vpop.f32.mrb[0].mxu0
        %3709 = vdwg.mxu0
        %v3710 = vadd.f32 %v3552, %v218
        %v3711 = vadd.f32 %v3557, %v219
        %v3712 = vadd.f32 %v3562, %v220
        %v3713 = vadd.f32 %v3567, %v221
        %v3714 = vadd.f32 %v3572, %v222
        %v3715 = vadd.f32 %v3577, %v223
        %v3716 = vadd.f32 %v3582, %v224
        %v3717 = vadd.f32 %v3587, %v225
        %v3718 = vadd.f32 %v3592, %v226
        %v3719 = vadd.f32 %v3597, %v227
        %v3720 = vadd.f32 %v3602, %v228
        %v3721 = vadd.f32 %v3607, %v229
        %v3722 = vadd.f32 %v3612, %v230
        %v3723 = vadd.f32 %v3617, %v231
        %v3724 = vadd.f32 %v3622, %v232
        %v3725 = vadd.f32 %v3627, %v233
        %v3726 = vadd.f32 %v3632, %v234
        %v3727 = vadd.f32 %v3637, %v235
        %v3728 = vadd.f32 %v3642, %v236
        %v3729 = vadd.f32 %v3647, %v237
        %v3730 = vadd.f32 %v3652, %v238
        %v3731 = vadd.f32 %v3657, %v239
        %v3732 = vadd.f32 %v3662, %v240
        %v3733 = vadd.f32 %v3667, %v241
        %v3734 = vadd.f32 %v3672, %v242
        %v3735 = vadd.f32 %v3677, %v243
        %v3736 = vadd.f32 %v3682, %v244
        %v3737 = vadd.f32 %v3687, %v245
        %v3738 = vadd.f32 %v3692, %v246
        %v3739 = vadd.f32 %v3697, %v247
        %v3740 = vadd.f32 %v3702, %v248
        %v3741 = vadd.f32 %v3707, %v249
        %3742 = vst [vmem:[%s217] sm:$0xff] %v3710
        %3743 = vst [vmem:[%s217 + $0x8] sm:$0xff] %v3711
        %3744 = vst [vmem:[%s217 + $0x10] sm:$0xff] %v3712
        %3745 = vst [vmem:[%s217 + $0x18] sm:$0xff] %v3713
        %3746 = vst [vmem:[%s217 + $0x20] sm:$0xff] %v3714
        %3747 = vst [vmem:[%s217 + $0x28] sm:$0xff] %v3715
        %3748 = vst [vmem:[%s217 + $0x30] sm:$0xff] %v3716
        %3749 = vst [vmem:[%s217 + $0x38] sm:$0xff] %v3717
        %3750 = vst [vmem:[%s217 + $0x40] sm:$0xff] %v3718
        %3751 = vst [vmem:[%s217 + $0x48] sm:$0xff] %v3719
        %3752 = vst [vmem:[%s217 + $0x50] sm:$0xff] %v3720
        %3753 = vst [vmem:[%s217 + $0x58] sm:$0xff] %v3721
        %3754 = vst [vmem:[%s217 + $0x60] sm:$0xff] %v3722
        %3755 = vst [vmem:[%s217 + $0x68] sm:$0xff] %v3723
        %3756 = vst [vmem:[%s217 + $0x70] sm:$0xff] %v3724
        %3757 = vst [vmem:[%s217 + $0x78] sm:$0xff] %v3725
        %3758 = vst [vmem:[%s217 + $0x80] sm:$0xff] %v3726
        %3759 = vst [vmem:[%s217 + $0x88] sm:$0xff] %v3727
        %3760 = vst [vmem:[%s217 + $0x90] sm:$0xff] %v3728
        %3761 = vst [vmem:[%s217 + $0x98] sm:$0xff] %v3729
        %3762 = vst [vmem:[%s217 + $0xa0] sm:$0xff] %v3730
        %3763 = vst [vmem:[%s217 + $0xa8] sm:$0xff] %v3731
        %3764 = vst [vmem:[%s217 + $0xb0] sm:$0xff] %v3732
        %3765 = vst [vmem:[%s217 + $0xb8] sm:$0xff] %v3733
        %3766 = vst [vmem:[%s217 + $0xc0] sm:$0xff] %v3734
        %3767 = vst [vmem:[%s217 + $0xc8] sm:$0xff] %v3735
        %3768 = vst [vmem:[%s217 + $0xd0] sm:$0xff] %v3736
        %3769 = vst [vmem:[%s217 + $0xd8] sm:$0xff] %v3737
        %3770 = vst [vmem:[%s217 + $0xe0] sm:$0xff] %v3738
        %3771 = vst [vmem:[%s217 + $0xe8] sm:$0xff] %v3739
        %3772 = vst [vmem:[%s217 + $0xf0] sm:$0xff] %v3740
        %3773 = vst [vmem:[%s217 + $0xf8] sm:$0xff] %v3741
        %s3774 = sand.u32 %s97, 1
        %s3775 = scalar_lea.sflag [#allocation4], %s3774
        %s3776 = sand.u32 %s97, 1
        %s3777 = smul.addr %s3776, 256
        %s3778 = scalar_lea.vmem [#allocation8], %s3777
        // Predicated region
        $region45: #{tpu_custom_call.1} parent=31 // pred_check
          %p3779 = pneg %p107
        $region46: #{tpu_custom_call.1} parent=31 // pred_check_branch
          %3781 = sbr.rel (%p3779) target = $region48
        $region47: #{tpu_custom_call.1} parent=31 // pred_region
          %s3783 = ssub.s32 4096, 4096
          %3784 = vsyncadd %s3775, %s3783
          %s3785 = smul.addr %s21, 32
          %s3786 = smul.addr %s3785, 128
          %s3787 = scalar_lea.hbm %s3, %s3786
          %s3788 = sshll.u32 %s3778, 4
          %s3789 = int_to_ptr.vmem [resolvable:$true] %s3788
          %3794 = dma.vmem_to_hbm [thread:$0]  %s3789, 4096, %s3787, %s3775, 128, 128, 8
        $region48: #{tpu_custom_call.1} parent=31 // pred_fallthru
          _
      $region32: #{tpu_custom_call.1} parent=5 // pred_fallthru
        _
      %p3795 = scmp.le.s32.totalorder 2, %s16
      // Predicated region
      $region49: #{tpu_custom_call.1} parent=5 // pred_check
        %p3796 = pneg %p3795
      $region50: #{tpu_custom_call.1} parent=5 // pred_check_branch
        %3798 = sbr.rel (%p3796) target = $region52
      $region51: #{tpu_custom_call.1} parent=5 // pred_region
        %s3799 = ssub.s32 %s16, 2
        // Predicated region
        $region53: #{tpu_custom_call.1} parent=51 // pred_check
          %p3800 = pneg %p113
        $region54: #{tpu_custom_call.1} parent=51 // pred_check_branch
          %3802 = sbr.rel (%p3800) target = $region56
        $region55: #{tpu_custom_call.1} parent=51 // pred_region
          %s3803 = sand.u32 %s98, 1
          %s3804 = scalar_lea.sflag [#allocation4], %s3803
          %s3805 = sand.u32 %s98, 1
          %s3806 = smul.addr %s3805, 256
          %s3807 = scalar_lea.vmem [#allocation8], %s3806
          %3808 = dma.done %s3804, 4096
        $region56: #{tpu_custom_call.1} parent=51 // pred_fallthru
          _
      $region52: #{tpu_custom_call.1} parent=5 // pred_fallthru
        _
    $region6: #{tpu_custom_call.1} parent=1 // loop_footer
      %s20 = sadd.s32 1, %s16
    $region7: #{tpu_custom_call.1} parent=1 // loop_footer_branch
      %15 = sbr.rel target = $region3
    $region8: #{tpu_custom_call.1} parent=1 // loop_exit
      _
    %3809 = vsyncpa [#allocation3], 1
    %s3810 = scalar_lea.sflag [#allocation3], 1
    %3811 = vsyncpa %s3810, 1
    %3812 = vsyncpa [#allocation6], 1
    %3813 = vsyncpa [#allocation4], 1
    %s3814 = scalar_lea.sflag [#allocation4], 1
    %3815 = vsyncpa %s3814, 1

</llo_original>
